<compile_context>
chip_gen: v7x
topology: tpu7x:2x2x1
jax: 0.10.0
libtpu: 0.0.40
codegen_flags: <defaults>
</compile_context>

<pallas_src>
import math
import functools

import jax
import jax.numpy as jnp
from jax.experimental import pallas as pl
from jax.experimental.pallas import tpu as pltpu


def _attn_integrator_kernel(x_ref, m_ref, out_ref, *, rank):
    # x_ref:  (TB, L, H)  VMEM, input dtype
    # m_ref:  (H, R*H)    VMEM, fused Wq_r^T @ Wk_r packed over heads (column blocks)
    # out_ref:(TB, H)     VMEM
    x = x_ref[...]                       # native dtype straight into the MXU
    m = m_ref[...]
    TB, L, H = x.shape
    R = rank
    inv_sqrt_d = 1.0 / math.sqrt(H)      # head_dim == hidden_dim in this module

    # Fused projection for ALL heads in one MXU matmul (f32 accumulation).
    xm = jnp.dot(x.reshape(TB * L, H), m, preferred_element_type=jnp.float32)

    # Stack the per-head query projections along the row (M) dim so the score matmul
    # and the softmax run once for all heads (head-batched, row index m = r*L + i).
    heads = []
    for r in range(R):
        qr = xm[:, r * H:(r + 1) * H].reshape(TB, L, H)
        if x.dtype != jnp.float32:
            qr = qr.astype(x.dtype)      # per-head downcast only when input is narrow
        heads.append(qr)
    q_all = heads[0] if R == 1 else jnp.concatenate(heads, axis=1)   # (TB, R*L, H)

    # Hoisted transpose of the shared key operand: one XLU pass reused by every head.
    xt = jnp.swapaxes(x, 1, 2)                                       # (TB, H, L)

    # All heads in ONE batched score matmul.
    s = jnp.einsum('bmd,bdj->bmj', q_all, xt,
                   preferred_element_type=jnp.float32) * inv_sqrt_d  # (TB, R*L, L)

    # Row softmax fused with the (head, query) sum: EUP reciprocal of the row sums,
    # then contract inv_l against exp(s) directly -- no (TB, R*L, L) `attn` temp.
    s = s - jnp.max(s, axis=-1, keepdims=True)
    p = jnp.exp(s)
    inv_l = pl.reciprocal(jnp.sum(p, axis=-1), approx=True)          # (TB, R*L)
    acc = jnp.einsum('bqm,bmj->bqj', inv_l[:, None, :], p,
                     preferred_element_type=jnp.float32)[:, 0, :]    # (TB, L)

    # Mean over heads and query positions, then second softmax over key positions.
    w = acc * (1.0 / (R * L))
    w = w - jnp.max(w, axis=-1, keepdims=True)
    w = jnp.exp(w)
    w = w * pl.reciprocal(jnp.sum(w, axis=-1, keepdims=True), approx=True)

    # pooled[b] = w[b] @ x[b]: trivial FLOPs, keep it off the MXU (VPU mul + XLU reduce).
    pooled = jnp.sum(w[:, :, None] * x, axis=1)                      # (TB, H) f32
    out_ref[...] = pooled.astype(out_ref.dtype)


def _vmem_capacity_bytes(default=64 * 1024 * 1024):
    """Physical VMEM of the current generation; conservative (v7x) default on failure."""
    try:
        info = pltpu.get_tpu_info()
        cap = getattr(info, "vmem_capacity_bytes", None)
        if cap:
            return int(cap)
    except Exception:
        pass
    return default


def _workset_bytes(tb, L, H, R, itemsize, weight_buffers=1):
    """Per-grid-step VMEM working set estimate for the head-batched kernel."""
    x_tile = 2 * tb * L * H * itemsize              # double-buffered x tile
    w_buf = weight_buffers * H * (R * H) * itemsize  # fused weight buffer(s)
    xt = tb * L * H * itemsize                      # hoisted transposed copy of x
    xm = tb * L * R * H * 4                         # f32 fused projection output
    q_all = tb * R * L * H * min(itemsize, 4)       # head-stacked query rows
    scores = 2 * tb * R * L * L * 4                 # scores + exp(scores), f32
    small = tb * (R * L + 2 * L + H) * 4            # inv_l / acc / w / pooled
    out = 2 * tb * H * itemsize                     # pipelined output tile
    slack = 2 * 1024 * 1024
    return x_tile + w_buf + xt + xm + q_all + scores + small + out + slack


def attention_integrator_pallas(x, wq, wk, *, seq_idx, emb_idx, hidden_dim, rank,
                                batch_tile=None, vmem_budget_bytes=None):
    """wq, wk: torch-style Linear weights of shape (rank*hidden_dim, hidden_dim)."""
    seq_len = x.shape[seq_idx]
    H, R, L = hidden_dim, rank, seq_len

    x_m = jnp.moveaxis(x, (seq_idx, emb_idx), (-2, -1))
    orig_shape = x_m.shape
    xf = x_m.reshape(-1, L, H)
    B = xf.shape[0]
    itemsize = jnp.dtype(xf.dtype).itemsize

    # Fused per-head bilinear weight: M_r = Wq_r^T @ Wk_r, packed as (H, R*H).
    wq3 = wq.reshape(R, H, H).astype(jnp.float32)
    wk3 = wk.reshape(R, H, H).astype(jnp.float32)
    mfull = jnp.einsum('rdh,rdg->rhg', wq3, wk3)                   # (R, H, H)
    m_packed = jnp.transpose(mfull, (1, 0, 2)).reshape(H, R * H).astype(xf.dtype)

    # Generation-aware budgets: ~29 MiB tile budget on v7x (64 MiB VMEM),
    # ~57 MiB on v5e/v6e (128 MiB VMEM).
    capacity = _vmem_capacity_bytes()
    if vmem_budget_bytes is None:
        vmem_budget_bytes = int(0.45 * capacity)

    # Batch tile: target TB*L >= ~1024 projection rows (fills 256-wide MXU M-dim),
    # shrink to the VMEM budget, keep the output second-minor dim 8-aligned.
    if batch_tile is None:
        batch_tile = max(8, -(-1024 // L))
    tb = min(batch_tile, B)
    if B > 8:
        tb = max(8, (tb // 8) * 8)
    while tb > 8 and _workset_bytes(tb, L, H, R, itemsize) > vmem_budget_bytes:
        tb = max(8, ((tb // 2) // 8) * 8)
    if B >= 16:
        # Guarantee >= 2 grid steps so the "parallel" axis can shard across both
        # v7x TensorCores (no effect on single-TC v5e/v6e).
        tb = min(tb, max(8, ((B // 2) // 8) * 8))
    elif tb >= B:
        tb = B                                    # single grid step, full-extent block

    Bp = pl.cdiv(B, tb) * tb
    if Bp != B:
        # Zero-padded rows give uniform (finite) softmax weights and are sliced off.
        xf = jnp.pad(xf, ((0, Bp - B), (0, 0), (0, 0)))

    # VMEM request derived from the real working set (weight conservatively counted
    # double-buffered so the fallback path also fits), capped at 70% of physical VMEM.
    workset = _workset_bytes(tb, L, H, R, itemsize, weight_buffers=2)
    vmem_limit = int(min(int(0.7 * capacity),
                         max(32 * 1024 * 1024, int(1.25 * workset))))
    # TODO(synk): very large L (O(L^2) score block > 0.7*VMEM even at tb=8) needs a
    # key-blocked two-pass softmax; not implemented here.

    kernel = functools.partial(_attn_integrator_kernel, rank=R)

    def build(weight_spec):
        return pl.pallas_call(
            kernel,
            out_shape=jax.ShapeDtypeStruct((Bp, H), x.dtype),
            grid=(Bp // tb,),
            in_specs=[
                pl.BlockSpec((tb, L, H), lambda i: (i, 0, 0)),
                weight_spec,
            ],
            out_specs=pl.BlockSpec((tb, H), lambda i: (i, 0)),
            compiler_params=pltpu.CompilerParams(
                dimension_semantics=("parallel",),
                vmem_limit_bytes=vmem_limit),
        )

    try:
        # Grid-invariant fused weight: constant index map (DMA'd once) + single buffer
        # (no point double-buffering a constant operand; halves its VMEM footprint,
        # which matters most under v7x's 64 MiB).
        w_spec = pl.BlockSpec((H, R * H), lambda i: (0, 0),
                              pipeline_mode=pl.Buffered(1))
        out = build(w_spec)(xf, m_packed)
    except Exception:
        # Fallback: default double-buffered pipelining for the constant weight.
        out = build(pl.BlockSpec((H, R * H), lambda i: (0, 0)))(xf, m_packed)

    out = out[:B]
    return out.reshape(*orig_shape[:-2], H)


def attention_integrator_ref(x, wq, wk, *, seq_idx, emb_idx, hidden_dim, rank):
    """Pure-JAX reference mirroring the PyTorch forward exactly."""
    seq_len = x.shape[seq_idx]
    x_m = jnp.moveaxis(x, (seq_idx, emb_idx), (-2, -1))
    orig_shape = x_m.shape
    xf = x_m.reshape(-1, seq_len, hidden_dim)
    q = xf @ wq.T
    k = xf @ wk.T
    B, L, E = q.shape
    Hh = rank
    D = E // Hh
    q = q.reshape(B, L, Hh, D).transpose(0, 2, 1, 3)
    k = k.reshape(B, L, Hh, D).transpose(0, 2, 1, 3)
    scores = jnp.einsum('bhid,bhjd->bhij', q, k) / math.sqrt(D)
    attn = jax.nn.softmax(scores, axis=-1)
    w = attn.mean(axis=1).mean(axis=1)
    w = jax.nn.softmax(w, axis=-1)
    pooled = jnp.einsum('bi,bij->bj', w, xf)
    return pooled.reshape(*orig_shape[:-2], hidden_dim)


if __name__ == "__main__":
    # Small shapes consistent with the module: x is (num_states, L_big, k, H)
    # with seq_idx=2 (the "k" nodes being integrated) and emb_idx=3.
    num_states, L_big, k_nodes, hidden_dim = 2, 4, 8, 32
    rank = 4
    seq_idx, emb_idx = 2, 3

    key = jax.random.PRNGKey(0)
    kx, kq, kk = jax.random.split(key, 3)
    x = jax.random.normal(kx, (num_states, L_big, k_nodes, hidden_dim),
                          dtype=jnp.float32)
    # Deterministic synthetic params (torch Linear weight shape: (R*H, H)).
    scale = 1.0 / math.sqrt(hidden_dim)
    wq = jax.random.normal(kq, (rank * hidden_dim, hidden_dim),
                           dtype=jnp.float32) * scale
    wk = jax.random.normal(kk, (rank * hidden_dim, hidden_dim),
                           dtype=jnp.float32) * scale

    out = attention_integrator_pallas(
        x, wq, wk, seq_idx=seq_idx, emb_idx=emb_idx,
        hidden_dim=hidden_dim, rank=rank)
    out = jax.block_until_ready(out)

    ref = attention_integrator_ref(
        x, wq, wk, seq_idx=seq_idx, emb_idx=emb_idx,
        hidden_dim=hidden_dim, rank=rank)

    assert out.shape == (num_states, L_big, hidden_dim), out.shape
    # Tolerance covers the fused Wq_r^T @ Wk_r rounding and the EUP approx-reciprocal
    # softmax denominators (structural bugs are orders of magnitude larger).
    err = float(jnp.max(jnp.abs(out - ref)))
    assert jnp.allclose(out, ref, atol=5e-3, rtol=5e-3), err
    print("KERNEL_OK")
</pallas_src>

<mosaic_0001>
module attributes {stable_mosaic.version = 11 : i64} {
  func.func @_attn_integrator_kernel(%arg0: i32, %arg1: memref<8x8x32xf32, #tpu.memory_space<vmem>>, %arg2: memref<32x128xf32, #tpu.memory_space<vmem>>, %arg3: memref<8x32xf32, #tpu.memory_space<vmem>>) attributes {dimension_semantics = [#tpu.dimension_semantics<parallel>], iteration_bounds = array<i64: 1>, scalar_prefetch = 0 : i64, scratch_operands = 0 : i64, tpu.core_type = #tpu.core_type<tc>, window_params = [{transform_indices = @transform_0, window_bounds = array<i64: 8, 8, 32>}, {pipeline_mode = #tpu.pipeline_mode<synchronous>, transform_indices = @transform_1, window_bounds = array<i64: 32, 128>}, {transform_indices = @transform_2, window_bounds = array<i64: 8, 32>}]} {
    %c0 = arith.constant 0 : index
    %c0_0 = arith.constant 0 : index
    %c0_1 = arith.constant 0 : index
    %0 = vector.load %arg1[%c0, %c0_0, %c0_1] : memref<8x8x32xf32, #tpu.memory_space<vmem>>, vector<8x8x32xf32>
    %c0_2 = arith.constant 0 : index
    %c0_3 = arith.constant 0 : index
    %1 = vector.load %arg2[%c0_2, %c0_3] : memref<32x128xf32, #tpu.memory_space<vmem>>, vector<32x128xf32>
    %2 = vector.shape_cast %0 : vector<8x8x32xf32> to vector<64x32xf32>
    %cst = arith.constant dense<0.000000e+00> : vector<64x128xf32>
    %3 = tpu.matmul %2, %1, %cst {dimension_numbers = #tpu.dot_dimension_numbers<[1], [0], [0], [1], [0, 0, 1, 1], [], []>} : vector<64x32xf32>, vector<32x128xf32>, vector<64x128xf32> -> vector<64x128xf32>
    %4 = vector.extract_strided_slice %3 {offsets = [0, 0], sizes = [64, 32], strides = [1, 1]} : vector<64x128xf32> to vector<64x32xf32>
    %5 = vector.shape_cast %4 : vector<64x32xf32> to vector<8x8x32xf32>
    %6 = vector.extract_strided_slice %3 {offsets = [0, 32], sizes = [64, 32], strides = [1, 1]} : vector<64x128xf32> to vector<64x32xf32>
    %7 = vector.shape_cast %6 : vector<64x32xf32> to vector<8x8x32xf32>
    %8 = vector.extract_strided_slice %3 {offsets = [0, 64], sizes = [64, 32], strides = [1, 1]} : vector<64x128xf32> to vector<64x32xf32>
    %9 = vector.shape_cast %8 : vector<64x32xf32> to vector<8x8x32xf32>
    %10 = vector.extract_strided_slice %3 {offsets = [0, 96], sizes = [64, 32], strides = [1, 1]} : vector<64x128xf32> to vector<64x32xf32>
    %11 = vector.shape_cast %10 : vector<64x32xf32> to vector<8x8x32xf32>
    %12 = tpu.concatenate %5, %7, %9, %11 in 1 : vector<8x8x32xf32>, vector<8x8x32xf32>, vector<8x8x32xf32>, vector<8x8x32xf32> -> vector<8x32x32xf32>
    %13 = tpu.transpose %0, [0, 2, 1] : vector<8x8x32xf32> -> vector<8x32x8xf32>
    "tpu.trace_start"() <{level = 10 : i32, message = "bmd,bdj->bmj"}> : () -> ()
    %cst_4 = arith.constant dense<0.000000e+00> : vector<8x32x8xf32>
    %14 = tpu.matmul %12, %13, %cst_4 {dimension_numbers = #tpu.dot_dimension_numbers<[2], [1], [1], [2], [0, 0, 0, 1, 1, 2], [0], [0]>} : vector<8x32x32xf32>, vector<8x32x8xf32>, vector<8x32x8xf32> -> vector<8x32x8xf32>
    "tpu.trace_stop"() : () -> ()
    %cst_5 = arith.constant 0.176776692 : f32
    %15 = vector.broadcast %cst_5 : f32 to vector<8x32x8xf32>
    %16 = arith.mulf %14, %15 : vector<8x32x8xf32>
    %cst_6 = arith.constant dense<0xFF800000> : vector<8x32xf32>
    %17 = vector.multi_reduction <maximumf>, %16, %cst_6 [2] : vector<8x32x8xf32> to vector<8x32xf32>
    %18 = vector.shape_cast %17 : vector<8x32xf32> to vector<8x32x1xf32>
    %19 = vector.broadcast %18 : vector<8x32x1xf32> to vector<8x32x8xf32>
    %20 = arith.subf %16, %19 : vector<8x32x8xf32>
    %21 = math.exp %20 : vector<8x32x8xf32>
    %cst_7 = arith.constant dense<0.000000e+00> : vector<8x32xf32>
    %22 = vector.multi_reduction <add>, %21, %cst_7 [2] : vector<8x32x8xf32> to vector<8x32xf32>
    %23 = tpu.reciprocal %22 {approx = true} : vector<8x32xf32> -> vector<8x32xf32>
    %24 = vector.shape_cast %23 : vector<8x32xf32> to vector<8x1x32xf32>
    "tpu.trace_start"() <{level = 10 : i32, message = "bqm,bmj->bqj"}> : () -> ()
    %cst_8 = arith.constant dense<0.000000e+00> : vector<8x1x8xf32>
    %25 = tpu.matmul %24, %21, %cst_8 {dimension_numbers = #tpu.dot_dimension_numbers<[2], [1], [1], [2], [0, 0, 0, 1, 1, 2], [0], [0]>} : vector<8x1x32xf32>, vector<8x32x8xf32>, vector<8x1x8xf32> -> vector<8x1x8xf32>
    "tpu.trace_stop"() : () -> ()
    %26 = vector.shape_cast %25 : vector<8x1x8xf32> to vector<8x8xf32>
    %cst_9 = arith.constant 3.125000e-02 : f32
    %27 = vector.broadcast %cst_9 : f32 to vector<8x8xf32>
    %28 = arith.mulf %26, %27 : vector<8x8xf32>
    %cst_10 = arith.constant dense<0xFF800000> : vector<8xf32>
    %29 = vector.multi_reduction <maximumf>, %28, %cst_10 [1] : vector<8x8xf32> to vector<8xf32>
    %30 = vector.shape_cast %29 : vector<8xf32> to vector<8x1xf32>
    %31 = vector.broadcast %30 : vector<8x1xf32> to vector<8x8xf32>
    %32 = arith.subf %28, %31 : vector<8x8xf32>
    %33 = math.exp %32 : vector<8x8xf32>
    %cst_11 = arith.constant dense<0.000000e+00> : vector<8xf32>
    %34 = vector.multi_reduction <add>, %33, %cst_11 [1] : vector<8x8xf32> to vector<8xf32>
    %35 = vector.shape_cast %34 : vector<8xf32> to vector<8x1xf32>
    %36 = tpu.reciprocal %35 {approx = true} : vector<8x1xf32> -> vector<8x1xf32>
    %37 = vector.broadcast %36 : vector<8x1xf32> to vector<8x8xf32>
    %38 = arith.mulf %33, %37 : vector<8x8xf32>
    %39 = vector.shape_cast %38 : vector<8x8xf32> to vector<8x8x1xf32>
    %40 = vector.broadcast %39 : vector<8x8x1xf32> to vector<8x8x32xf32>
    %41 = arith.mulf %40, %0 : vector<8x8x32xf32>
    %cst_12 = arith.constant dense<0.000000e+00> : vector<8x32xf32>
    %42 = vector.multi_reduction <add>, %41, %cst_12 [1] : vector<8x8x32xf32> to vector<8x32xf32>
    %c0_13 = arith.constant 0 : index
    %c0_14 = arith.constant 0 : index
    %43 = vector.load %arg3[%c0_13, %c0_14] : memref<8x32xf32, #tpu.memory_space<vmem>>, vector<8x32xf32>
    tpu.vector_store %arg3[%c0_13, %c0_14], %42 {strides = array<i32>} : memref<8x32xf32, #tpu.memory_space<vmem>>, vector<8x32xf32>,
    return
  }
  func.func @transform_0(%arg0: i32) -> (i32, i32, i32) {
    %c0_i32 = arith.constant 0 : i32
    %c0_i32_0 = arith.constant 0 : i32
    %c0_i32_1 = arith.constant 0 : i32
    return %arg0, %c0_i32, %c0_i32_0 : i32, i32, i32
  }
  func.func @transform_1(%arg0: i32) -> (i32, i32) {
    %c0_i32 = arith.constant 0 : i32
    %c0_i32_0 = arith.constant 0 : i32
    %c0_i32_1 = arith.constant 0 : i32
    return %c0_i32, %c0_i32_0 : i32, i32
  }
  func.func @transform_2(%arg0: i32) -> (i32, i32) {
    %c0_i32 = arith.constant 0 : i32
    %c0_i32_0 = arith.constant 0 : i32
    return %arg0, %c0_i32 : i32, i32
  }
}

module attributes {stable_mosaic.version = 11 : i64} {
  func.func @_attn_integrator_kernel(%arg0: i32, %arg1: memref<8x8x32xf32, #tpu.memory_space<vmem>>, %arg2: memref<32x128xf32, #tpu.memory_space<vmem>>, %arg3: memref<8x32xf32, #tpu.memory_space<vmem>>) attributes {dimension_semantics = [#tpu.dimension_semantics<parallel>], iteration_bounds = array<i64: 1>, scalar_prefetch = 0 : i64, scratch_operands = 0 : i64, tpu.core_type = #tpu.core_type<tc>, window_params = [{transform_indices = @transform_0, window_bounds = array<i64: 8, 8, 32>}, {pipeline_mode = #tpu.pipeline_mode<synchronous>, transform_indices = @transform_1, window_bounds = array<i64: 32, 128>}, {transform_indices = @transform_2, window_bounds = array<i64: 8, 32>}]} {
    %c0 = arith.constant 0 : index
    %c0_0 = arith.constant 0 : index
    %c0_1 = arith.constant 0 : index
    %0 = vector.load %arg1[%c0, %c0_0, %c0_1] : memref<8x8x32xf32, #tpu.memory_space<vmem>>, vector<8x8x32xf32>
    %c0_2 = arith.constant 0 : index
    %c0_3 = arith.constant 0 : index
    %1 = vector.load %arg2[%c0_2, %c0_3] : memref<32x128xf32, #tpu.memory_space<vmem>>, vector<32x128xf32>
    %2 = vector.shape_cast %0 : vector<8x8x32xf32> to vector<64x32xf32>
    %cst = arith.constant dense<0.000000e+00> : vector<64x128xf32>
    %3 = tpu.matmul %2, %1, %cst {dimension_numbers = #tpu.dot_dimension_numbers<[1], [0], [0], [1], [0, 0, 1, 1], [], []>} : vector<64x32xf32>, vector<32x128xf32>, vector<64x128xf32> -> vector<64x128xf32>
    %4 = vector.extract_strided_slice %3 {offsets = [0, 0], sizes = [64, 32], strides = [1, 1]} : vector<64x128xf32> to vector<64x32xf32>
    %5 = vector.shape_cast %4 : vector<64x32xf32> to vector<8x8x32xf32>
    %6 = vector.extract_strided_slice %3 {offsets = [0, 32], sizes = [64, 32], strides = [1, 1]} : vector<64x128xf32> to vector<64x32xf32>
    %7 = vector.shape_cast %6 : vector<64x32xf32> to vector<8x8x32xf32>
    %8 = vector.extract_strided_slice %3 {offsets = [0, 64], sizes = [64, 32], strides = [1, 1]} : vector<64x128xf32> to vector<64x32xf32>
    %9 = vector.shape_cast %8 : vector<64x32xf32> to vector<8x8x32xf32>
    %10 = vector.extract_strided_slice %3 {offsets = [0, 96], sizes = [64, 32], strides = [1, 1]} : vector<64x128xf32> to vector<64x32xf32>
    %11 = vector.shape_cast %10 : vector<64x32xf32> to vector<8x8x32xf32>
    %12 = tpu.concatenate %5, %7, %9, %11 in 1 : vector<8x8x32xf32>, vector<8x8x32xf32>, vector<8x8x32xf32>, vector<8x8x32xf32> -> vector<8x32x32xf32>
    %13 = tpu.transpose %0, [0, 2, 1] : vector<8x8x32xf32> -> vector<8x32x8xf32>
    "tpu.trace_start"() <{level = 10 : i32, message = "bmd,bdj->bmj"}> : () -> ()
    %cst_4 = arith.constant dense<0.000000e+00> : vector<8x32x8xf32>
    %14 = tpu.matmul %12, %13, %cst_4 {dimension_numbers = #tpu.dot_dimension_numbers<[2], [1], [1], [2], [0, 0, 0, 1, 1, 2], [0], [0]>} : vector<8x32x32xf32>, vector<8x32x8xf32>, vector<8x32x8xf32> -> vector<8x32x8xf32>
    "tpu.trace_stop"() : () -> ()
    %cst_5 = arith.constant 0.176776692 : f32
    %15 = vector.broadcast %cst_5 : f32 to vector<8x32x8xf32>
    %16 = arith.mulf %14, %15 : vector<8x32x8xf32>
    %cst_6 = arith.constant dense<0xFF800000> : vector<8x32xf32>
    %17 = vector.multi_reduction <maximumf>, %16, %cst_6 [2] : vector<8x32x8xf32> to vector<8x32xf32>
    %18 = vector.shape_cast %17 : vector<8x32xf32> to vector<8x32x1xf32>
    %19 = vector.broadcast %18 : vector<8x32x1xf32> to vector<8x32x8xf32>
    %20 = arith.subf %16, %19 : vector<8x32x8xf32>
    %21 = math.exp %20 : vector<8x32x8xf32>
    %cst_7 = arith.constant dense<0.000000e+00> : vector<8x32xf32>
    %22 = vector.multi_reduction <add>, %21, %cst_7 [2] : vector<8x32x8xf32> to vector<8x32xf32>
    %23 = tpu.reciprocal %22 {approx = true} : vector<8x32xf32> -> vector<8x32xf32>
    %24 = vector.shape_cast %23 : vector<8x32xf32> to vector<8x1x32xf32>
    "tpu.trace_start"() <{level = 10 : i32, message = "bqm,bmj->bqj"}> : () -> ()
    %cst_8 = arith.constant dense<0.000000e+00> : vector<8x1x8xf32>
    %25 = tpu.matmul %24, %21, %cst_8 {dimension_numbers = #tpu.dot_dimension_numbers<[2], [1], [1], [2], [0, 0, 0, 1, 1, 2], [0], [0]>} : vector<8x1x32xf32>, vector<8x32x8xf32>, vector<8x1x8xf32> -> vector<8x1x8xf32>
    "tpu.trace_stop"() : () -> ()
    %26 = vector.shape_cast %25 : vector<8x1x8xf32> to vector<8x8xf32>
    %cst_9 = arith.constant 3.125000e-02 : f32
    %27 = vector.broadcast %cst_9 : f32 to vector<8x8xf32>
    %28 = arith.mulf %26, %27 : vector<8x8xf32>
    %cst_10 = arith.constant dense<0xFF800000> : vector<8xf32>
    %29 = vector.multi_reduction <maximumf>, %28, %cst_10 [1] : vector<8x8xf32> to vector<8xf32>
    %30 = vector.shape_cast %29 : vector<8xf32> to vector<8x1xf32>
    %31 = vector.broadcast %30 : vector<8x1xf32> to vector<8x8xf32>
    %32 = arith.subf %28, %31 : vector<8x8xf32>
    %33 = math.exp %32 : vector<8x8xf32>
    %cst_11 = arith.constant dense<0.000000e+00> : vector<8xf32>
    %34 = vector.multi_reduction <add>, %33, %cst_11 [1] : vector<8x8xf32> to vector<8xf32>
    %35 = vector.shape_cast %34 : vector<8xf32> to vector<8x1xf32>
    %36 = tpu.reciprocal %35 {approx = true} : vector<8x1xf32> -> vector<8x1xf32>
    %37 = vector.broadcast %36 : vector<8x1xf32> to vector<8x8xf32>
    %38 = arith.mulf %33, %37 : vector<8x8xf32>
    %39 = vector.shape_cast %38 : vector<8x8xf32> to vector<8x8x1xf32>
    %40 = vector.broadcast %39 : vector<8x8x1xf32> to vector<8x8x32xf32>
    %41 = arith.mulf %40, %0 : vector<8x8x32xf32>
    %cst_12 = arith.constant dense<0.000000e+00> : vector<8x32xf32>
    %42 = vector.multi_reduction <add>, %41, %cst_12 [1] : vector<8x8x32xf32> to vector<8x32xf32>
    %c0_13 = arith.constant 0 : index
    %c0_14 = arith.constant 0 : index
    %43 = vector.load %arg3[%c0_13, %c0_14] : memref<8x32xf32, #tpu.memory_space<vmem>>, vector<8x32xf32>
    tpu.vector_store %arg3[%c0_13, %c0_14], %42 {strides = array<i32>} : memref<8x32xf32, #tpu.memory_space<vmem>>, vector<8x32xf32>,
    return
  }
  func.func @transform_0(%arg0: i32) -> (i32, i32, i32) {
    %c0_i32 = arith.constant 0 : i32
    %c0_i32_0 = arith.constant 0 : i32
    %c0_i32_1 = arith.constant 0 : i32
    return %arg0, %c0_i32, %c0_i32_0 : i32, i32, i32
  }
  func.func @transform_1(%arg0: i32) -> (i32, i32) {
    %c0_i32 = arith.constant 0 : i32
    %c0_i32_0 = arith.constant 0 : i32
    %c0_i32_1 = arith.constant 0 : i32
    return %c0_i32, %c0_i32_0 : i32, i32
  }
  func.func @transform_2(%arg0: i32) -> (i32, i32) {
    %c0_i32 = arith.constant 0 : i32
    %c0_i32_0 = arith.constant 0 : i32
    return %arg0, %c0_i32 : i32, i32
  }
}

</mosaic_0001>

<llo_original>
// kernel: tpu_custom_call.1
$region0: #{tpu_custom_call.1}
  #allocation0 [shape = 'u32[]', space=smem, size = 0x4, offset = 0x4, fixed_abs, tag = 'smem constant byte address 0x4 - core index']
  #allocation1 [shape = 'u32[144,128]{1,0:T(1,128)}', space=vmem, size = 0x12000, scoped, tag = 'internal scratch']
  %s0 = inlined_call_operand.hbm [shape: f32[8,8,32], index: 0, kind: input, shape index: {}]
  %s1 = inlined_call_operand.hbm [shape: f32[32,128], index: 1, kind: input, shape index: {}]
  %s2 = inlined_call_operand.hbm [shape: f32[8,32], index: 2, kind: output, shape index: {}]
  %s3 = sld [smem:[#allocation0]]
  $region26: #{tpu_custom_call.1} parent=0
    _
  %s5 = ssub.s32 1, %s3
  %s6 = scalar_select 0, %s5, %s3
  $region1: #{tpu_custom_call.1} parent=0
    #allocation2 [shape = 'u8[32768]{0}', space=vmem, size = 0x8000, scoped, tag = 'input window, operand 0, single buffered']
    #allocation3 [shape = 's32[1]{0}', space=sflag, size = 0x4, scoped, tag = 'scoped memory for tpu_custom_call.1']
    #allocation4 [shape = 's32[1]{0}', space=sflag, size = 0x4, scoped, tag = 'scoped memory for tpu_custom_call.1']
    #allocation5 [shape = 'u8[16384]{0}', space=vmem, size = 0x4000, scoped, tag = 'input window, operand 1, single buffered']
    #allocation6 [shape = 's32[1]{0}', space=sflag, size = 0x4, scoped, tag = 'scoped memory for tpu_custom_call.1']
    #allocation7 [shape = 'u8[4096]{0}', space=vmem, size = 0x1000, scoped, tag = 'output window, operand 0, single buffered']
    %7 = vsyncpa [#allocation3], 0
    %8 = vsyncpa [#allocation6], 0
    %9 = vsyncpa [#allocation4], 0
    // Predicated region
    $region2: #{tpu_custom_call.1} parent=1 // pred_check
      _
    $region3: #{tpu_custom_call.1} parent=1 // pred_check_branch
      %11 = sbr.rel (0) target = $region5
    $region4: #{tpu_custom_call.1} parent=1 // pred_region
      %s13 = ssub.s32 1024, 1024
      %14 = vsyncadd [#allocation3], %s13
      %s15 = sshll.u32 [#allocation2], 4
      %s16 = int_to_ptr.vmem [resolvable:$true] %s15
      %21 = dma.hbm_to_vmem [thread:$0]  %s0, 1024, %s16, [#allocation3], 128, 128, 8
    $region5: #{tpu_custom_call.1} parent=1 // pred_fallthru
      _
    // Predicated region
    $region6: #{tpu_custom_call.1} parent=1 // pred_check
      _
    $region7: #{tpu_custom_call.1} parent=1 // pred_check_branch
      %23 = sbr.rel (0) target = $region9
    $region8: #{tpu_custom_call.1} parent=1 // pred_region
      %s25 = ssub.s32 512, 512
      %26 = vsyncadd [#allocation6], %s25
      %s27 = sshll.u32 [#allocation5], 4
      %s28 = int_to_ptr.vmem [resolvable:$true] %s27
      %33 = dma.hbm_to_vmem [thread:$0]  %s1, 512, %s28, [#allocation6], 128, 128, 8
    $region9: #{tpu_custom_call.1} parent=1 // pred_fallthru
      _
    // Predicated region
    $region10: #{tpu_custom_call.1} parent=1 // pred_check
      _
    $region11: #{tpu_custom_call.1} parent=1 // pred_check_branch
      %35 = sbr.rel (0) target = $region13
    $region12: #{tpu_custom_call.1} parent=1 // pred_region
      %36 = dma.done [#allocation3], 1024
    $region13: #{tpu_custom_call.1} parent=1 // pred_fallthru
      _
    // Predicated region
    $region14: #{tpu_custom_call.1} parent=1 // pred_check
      _
    $region15: #{tpu_custom_call.1} parent=1 // pred_check_branch
      %38 = sbr.rel (0) target = $region17
    $region16: #{tpu_custom_call.1} parent=1 // pred_region
      %39 = dma.done [#allocation6], 512
    $region17: #{tpu_custom_call.1} parent=1 // pred_fallthru
      _
    %v40 = vld [vmem:[#allocation2] sm:$0xff]
    %v41 = vld [vmem:[#allocation2 + $0x8] sm:$0xff]
    %v42 = vld [vmem:[#allocation2 + $0x10] sm:$0xff]
    %v43 = vld [vmem:[#allocation2 + $0x18] sm:$0xff]
    %v44 = vld [vmem:[#allocation2 + $0x20] sm:$0xff]
    %v45 = vld [vmem:[#allocation2 + $0x28] sm:$0xff]
    %v46 = vld [vmem:[#allocation2 + $0x30] sm:$0xff]
    %v47 = vld [vmem:[#allocation2 + $0x38] sm:$0xff]
    %v48 = vld [vmem:[#allocation5] sm:$0xff]
    %v49 = vld [vmem:[#allocation5 + $0x8] sm:$0xff]
    %v50 = vld [vmem:[#allocation5 + $0x10] sm:$0xff]
    %v51 = vld [vmem:[#allocation5 + $0x18] sm:$0xff]
    %vm52 = vcmask 261120
    %v54 = vsel %vm52, %v40, 0
    %v57 = vsel %vm52, %v41, 0
    %v60 = vsel %vm52, %v42, 0
    %v63 = vsel %vm52, %v43, 0
    %v66 = vsel %vm52, %v44, 0
    %v69 = vsel %vm52, %v45, 0
    %v72 = vsel %vm52, %v46, 0
    %v75 = vsel %vm52, %v47, 0
    %77 = vmatprep.subr.mxu0 0.0
    %78 = vmatpush1.msra.mxu0 %v48
    %79 = vmatprep.subr.mxu0 0.0
    %80 = vmatpush1.msra.mxu0 %v49
    %81 = vmatprep.subr.mxu0 0.0
    %82 = vmatpush1.msra.mxu0 %v50
    %83 = vmatprep.subr.mxu0 0.0
    %84 = vmatpush1.msra.mxu0 %v51
    %85 = vmatprep.subr.mxu0 0.0
    %86 = vmatpush1.msra.mxu0 0.0
    %87 = vmatprep.subr.mxu0 0.0
    %88 = vmatpush1.msra.mxu0 0.0
    %89 = vmatprep.subr.mxu0 0.0
    %90 = vmatpush1.msra.mxu0 0.0
    %91 = vmatprep.subr.mxu0 0.0
    %92 = vmatpush1.msra.mxu0 0.0
    %93 = vmatprep.subr.mxu0 0.0
    %94 = vmatpush1.msra.mxu0 0.0
    %95 = vmatprep.subr.mxu0 0.0
    %96 = vmatpush1.msra.mxu0 0.0
    %97 = vmatprep.subr.mxu0 0.0
    %98 = vmatpush1.msra.mxu0 0.0
    %99 = vmatprep.subr.mxu0 0.0
    %100 = vmatpush1.msra.mxu0 0.0
    %101 = vmatprep.subr.mxu0 0.0
    %102 = vmatpush1.msra.mxu0 0.0
    %103 = vmatprep.subr.mxu0 0.0
    %104 = vmatpush1.msra.mxu0 0.0
    %105 = vmatprep.subr.mxu0 0.0
    %106 = vmatpush1.msra.mxu0 0.0
    %107 = vmatprep.subr.mxu0 0.0
    %108 = vmatpush1.msra.mxu0 0.0
    %109 = vmatprep.subr.mxu0 0.0
    %110 = vmatpush1.msra.mxu0 0.0
    %111 = vmatprep.subr.mxu0 0.0
    %112 = vmatpush1.msra.mxu0 0.0
    %113 = vmatprep.subr.mxu0 0.0
    %114 = vmatpush1.msra.mxu0 0.0
    %115 = vmatprep.subr.mxu0 0.0
    %116 = vmatpush1.msra.mxu0 0.0
    %117 = vmatprep.subr.mxu0 0.0
    %118 = vmatpush1.msra.mxu0 0.0
    %119 = vmatprep.subr.mxu0 0.0
    %120 = vmatpush1.msra.mxu0 0.0
    %121 = vmatprep.subr.mxu0 0.0
    %122 = vmatpush1.msra.mxu0 0.0
    %123 = vmatprep.subr.mxu0 0.0
    %124 = vmatpush1.msra.mxu0 0.0
    %125 = vmatprep.subr.mxu0 0.0
    %126 = vmatpush1.msra.mxu0 0.0
    %127 = vmatprep.subr.mxu0 0.0
    %128 = vmatpush1.msra.mxu0 0.0
    %129 = vmatprep.subr.mxu0 0.0
    %130 = vmatpush1.msra.mxu0 0.0
    %131 = vmatprep.subr.mxu0 0.0
    %132 = vmatpush1.msra.mxu0 0.0
    %133 = vmatprep.subr.mxu0 0.0
    %134 = vmatpush1.msra.mxu0 0.0
    %135 = vmatprep.subr.mxu0 0.0
    %136 = vmatpush1.msra.mxu0 0.0
    %137 = vmatprep.subr.mxu0 0.0
    %138 = vmatpush1.msra.mxu0 0.0
    %139 = vmatprep.subr.mxu0 0.0
    %140 = vmatpush1.msra.mxu0 0.0
    %141 = vmatprep.mubr.f32.mxu0 0.0
    %142 = vmatmul.mubr.f32.gmra.mrb[0].mxu0 %v54
    %v143 = vpop.f32.mrb[0].mxu0
    %v144 = vadd.f32 0.0, %v143
    %v145 = vpop.f32.mrb[0].mxu0
    %146 = vmatprep.mubr.f32.mxu0 0.0
    %147 = vmatmul.mubr.f32.gmra.mrb[0].mxu0 %v57
    %v148 = vpop.f32.mrb[0].mxu0
    %v149 = vadd.f32 0.0, %v148
    %v150 = vpop.f32.mrb[0].mxu0
    %151 = vmatprep.mubr.f32.mxu0 0.0
    %152 = vmatmul.mubr.f32.gmra.mrb[0].mxu0 %v60
    %v153 = vpop.f32.mrb[0].mxu0
    %v154 = vadd.f32 0.0, %v153
    %v155 = vpop.f32.mrb[0].mxu0
    %156 = vmatprep.mubr.f32.mxu0 0.0
    %157 = vmatmul.mubr.f32.gmra.mrb[0].mxu0 %v63
    %v158 = vpop.f32.mrb[0].mxu0
    %v159 = vadd.f32 0.0, %v158
    %v160 = vpop.f32.mrb[0].mxu0
    %161 = vmatprep.mubr.f32.mxu0 0.0
    %162 = vmatmul.mubr.f32.gmra.mrb[0].mxu0 %v66
    %v163 = vpop.f32.mrb[0].mxu0
    %v164 = vadd.f32 0.0, %v163
    %v165 = vpop.f32.mrb[0].mxu0
    %166 = vmatprep.mubr.f32.mxu0 0.0
    %167 = vmatmul.mubr.f32.gmra.mrb[0].mxu0 %v69
    %v168 = vpop.f32.mrb[0].mxu0
    %v169 = vadd.f32 0.0, %v168
    %v170 = vpop.f32.mrb[0].mxu0
    %171 = vmatprep.mubr.f32.mxu0 0.0
    %172 = vmatmul.mubr.f32.gmra.mrb[0].mxu0 %v72
    %v173 = vpop.f32.mrb[0].mxu0
    %v174 = vadd.f32 0.0, %v173
    %v175 = vpop.f32.mrb[0].mxu0
    %176 = vmatprep.mubr.f32.mxu0 0.0
    %177 = vmatmul.mubr.f32.gmra.mrb[0].mxu0 %v75
    %v178 = vpop.f32.mrb[0].mxu0
    %v179 = vadd.f32 0.0, %v178
    %v180 = vpop.f32.mrb[0].mxu0
    %181 = vdwg.mxu0
    %190 = vrot.lane.b32.xlu0 %v144, 96
    %v191 = vpop.permute.xlu0 %190
    %192 = vrot.lane.b32.xlu0 %v149, 96
    %v193 = vpop.permute.xlu0 %192
    %194 = vrot.lane.b32.xlu0 %v154, 96
    %v195 = vpop.permute.xlu0 %194
    %196 = vrot.lane.b32.xlu0 %v159, 96
    %v197 = vpop.permute.xlu0 %196
    %198 = vrot.lane.b32.xlu0 %v164, 96
    %v199 = vpop.permute.xlu0 %198
    %200 = vrot.lane.b32.xlu0 %v169, 96
    %v201 = vpop.permute.xlu0 %200
    %202 = vrot.lane.b32.xlu0 %v174, 96
    %v203 = vpop.permute.xlu0 %202
    %204 = vrot.lane.b32.xlu0 %v179, 96
    %v205 = vpop.permute.xlu0 %204
    %206 = vrot.lane.b32.xlu0 %v144, 64
    %v207 = vpop.permute.xlu0 %206
    %208 = vrot.lane.b32.xlu0 %v149, 64
    %v209 = vpop.permute.xlu0 %208
    %210 = vrot.lane.b32.xlu0 %v154, 64
    %v211 = vpop.permute.xlu0 %210
    %212 = vrot.lane.b32.xlu0 %v159, 64
    %v213 = vpop.permute.xlu0 %212
    %214 = vrot.lane.b32.xlu0 %v164, 64
    %v215 = vpop.permute.xlu0 %214
    %216 = vrot.lane.b32.xlu0 %v169, 64
    %v217 = vpop.permute.xlu0 %216
    %218 = vrot.lane.b32.xlu0 %v174, 64
    %v219 = vpop.permute.xlu0 %218
    %220 = vrot.lane.b32.xlu0 %v179, 64
    %v221 = vpop.permute.xlu0 %220
    %222 = vrot.lane.b32.xlu0 %v144, 32
    %v223 = vpop.permute.xlu0 %222
    %224 = vrot.lane.b32.xlu0 %v149, 32
    %v225 = vpop.permute.xlu0 %224
    %226 = vrot.lane.b32.xlu0 %v154, 32
    %v227 = vpop.permute.xlu0 %226
    %228 = vrot.lane.b32.xlu0 %v159, 32
    %v229 = vpop.permute.xlu0 %228
    %230 = vrot.lane.b32.xlu0 %v164, 32
    %v231 = vpop.permute.xlu0 %230
    %232 = vrot.lane.b32.xlu0 %v169, 32
    %v233 = vpop.permute.xlu0 %232
    %234 = vrot.lane.b32.xlu0 %v174, 32
    %v235 = vpop.permute.xlu0 %234
    %236 = vrot.lane.b32.xlu0 %v179, 32
    %v237 = vpop.permute.xlu0 %236
    %v238 = vsel %vm52, %v144, 0
    %v240 = vsel %vm52, %v191, 0
    %v242 = vsel %vm52, %v207, 0
    %v244 = vsel %vm52, %v223, 0
    %246 = vmatprep.subr.mxu0 0.0
    %247 = vmatpush1.xpose.msra.mxu0 %v54
    %248 = vmatprep.subr.mxu0 0.0
    %249 = vmatpush1.xpose.msra.mxu0 0.0
    %250 = vmatprep.subr.mxu0 0.0
    %251 = vmatpush1.xpose.msra.mxu0 0.0
    %252 = vmatprep.subr.mxu0 0.0
    %253 = vmatpush1.xpose.msra.mxu0 0.0
    %254 = vmatprep.subr.mxu0 0.0
    %255 = vmatpush1.xpose.msra.mxu0 0.0
    %256 = vmatprep.subr.mxu0 0.0
    %257 = vmatpush1.xpose.msra.mxu0 0.0
    %258 = vmatprep.subr.mxu0 0.0
    %259 = vmatpush1.xpose.msra.mxu0 0.0
    %260 = vmatprep.subr.mxu0 0.0
    %261 = vmatpush1.xpose.msra.mxu0 0.0
    %262 = vmatprep.subr.mxu0 0.0
    %263 = vmatpush1.xpose.msra.mxu0 0.0
    %264 = vmatprep.subr.mxu0 0.0
    %265 = vmatpush1.xpose.msra.mxu0 0.0
    %266 = vmatprep.subr.mxu0 0.0
    %267 = vmatpush1.xpose.msra.mxu0 0.0
    %268 = vmatprep.subr.mxu0 0.0
    %269 = vmatpush1.xpose.msra.mxu0 0.0
    %270 = vmatprep.subr.mxu0 0.0
    %271 = vmatpush1.xpose.msra.mxu0 0.0
    %272 = vmatprep.subr.mxu0 0.0
    %273 = vmatpush1.xpose.msra.mxu0 0.0
    %274 = vmatprep.subr.mxu0 0.0
    %275 = vmatpush1.xpose.msra.mxu0 0.0
    %276 = vmatprep.subr.mxu0 0.0
    %277 = vmatpush1.xpose.msra.mxu0 0.0
    %278 = vmatprep.subr.mxu0 0.0
    %279 = vmatpush1.xpose.msra.mxu0 0.0
    %280 = vmatprep.subr.mxu0 0.0
    %281 = vmatpush1.xpose.msra.mxu0 0.0
    %282 = vmatprep.subr.mxu0 0.0
    %283 = vmatpush1.xpose.msra.mxu0 0.0
    %284 = vmatprep.subr.mxu0 0.0
    %285 = vmatpush1.xpose.msra.mxu0 0.0
    %286 = vmatprep.subr.mxu0 0.0
    %287 = vmatpush1.xpose.msra.mxu0 0.0
    %288 = vmatprep.subr.mxu0 0.0
    %289 = vmatpush1.xpose.msra.mxu0 0.0
    %290 = vmatprep.subr.mxu0 0.0
    %291 = vmatpush1.xpose.msra.mxu0 0.0
    %292 = vmatprep.subr.mxu0 0.0
    %293 = vmatpush1.xpose.msra.mxu0 0.0
    %294 = vmatprep.subr.mxu0 0.0
    %295 = vmatpush1.xpose.msra.mxu0 0.0
    %296 = vmatprep.subr.mxu0 0.0
    %297 = vmatpush1.xpose.msra.mxu0 0.0
    %298 = vmatprep.subr.mxu0 0.0
    %299 = vmatpush1.xpose.msra.mxu0 0.0
    %300 = vmatprep.subr.mxu0 0.0
    %301 = vmatpush1.xpose.msra.mxu0 0.0
    %302 = vmatprep.subr.mxu0 0.0
    %303 = vmatpush1.xpose.msra.mxu0 0.0
    %304 = vmatprep.subr.mxu0 0.0
    %305 = vmatpush1.xpose.msra.mxu0 0.0
    %306 = vmatprep.subr.mxu0 0.0
    %307 = vmatpush1.xpose.msra.mxu0 0.0
    %308 = vmatprep.subr.mxu0 0.0
    %309 = vmatpush1.xpose.msra.mxu0 0.0
    %310 = vmatprep.mubr.f32.mxu0 0.0
    %311 = vmatmul.mubr.f32.gmra.mrb[0].mxu0 %v238
    %v312 = vpop.f32.mrb[0].mxu0
    %v313 = vadd.f32 0.0, %v312
    %v314 = vpop.f32.mrb[0].mxu0
    %315 = vmatprep.mubr.f32.mxu0 0.0
    %316 = vmatmul.mubr.f32.gmra.mrb[0].mxu0 %v240
    %v317 = vpop.f32.mrb[0].mxu0
    %v318 = vadd.f32 0.0, %v317
    %v319 = vpop.f32.mrb[0].mxu0
    %320 = vmatprep.mubr.f32.mxu0 0.0
    %321 = vmatmul.mubr.f32.gmra.mrb[0].mxu0 %v242
    %v322 = vpop.f32.mrb[0].mxu0
    %v323 = vadd.f32 0.0, %v322
    %v324 = vpop.f32.mrb[0].mxu0
    %325 = vmatprep.mubr.f32.mxu0 0.0
    %326 = vmatmul.mubr.f32.gmra.mrb[0].mxu0 %v244
    %v327 = vpop.f32.mrb[0].mxu0
    %v328 = vadd.f32 0.0, %v327
    %v329 = vpop.f32.mrb[0].mxu0
    %330 = vdwg.mxu0
    %v331 = vsel %vm52, %v149, 0
    %v333 = vsel %vm52, %v193, 0
    %v335 = vsel %vm52, %v209, 0
    %v337 = vsel %vm52, %v225, 0
    %339 = vmatprep.subr.mxu0 0.0
    %340 = vmatpush1.xpose.msra.mxu0 %v57
    %341 = vmatprep.subr.mxu0 0.0
    %342 = vmatpush1.xpose.msra.mxu0 0.0
    %343 = vmatprep.subr.mxu0 0.0
    %344 = vmatpush1.xpose.msra.mxu0 0.0
    %345 = vmatprep.subr.mxu0 0.0
    %346 = vmatpush1.xpose.msra.mxu0 0.0
    %347 = vmatprep.subr.mxu0 0.0
    %348 = vmatpush1.xpose.msra.mxu0 0.0
    %349 = vmatprep.subr.mxu0 0.0
    %350 = vmatpush1.xpose.msra.mxu0 0.0
    %351 = vmatprep.subr.mxu0 0.0
    %352 = vmatpush1.xpose.msra.mxu0 0.0
    %353 = vmatprep.subr.mxu0 0.0
    %354 = vmatpush1.xpose.msra.mxu0 0.0
    %355 = vmatprep.subr.mxu0 0.0
    %356 = vmatpush1.xpose.msra.mxu0 0.0
    %357 = vmatprep.subr.mxu0 0.0
    %358 = vmatpush1.xpose.msra.mxu0 0.0
    %359 = vmatprep.subr.mxu0 0.0
    %360 = vmatpush1.xpose.msra.mxu0 0.0
    %361 = vmatprep.subr.mxu0 0.0
    %362 = vmatpush1.xpose.msra.mxu0 0.0
    %363 = vmatprep.subr.mxu0 0.0
    %364 = vmatpush1.xpose.msra.mxu0 0.0
    %365 = vmatprep.subr.mxu0 0.0
    %366 = vmatpush1.xpose.msra.mxu0 0.0
    %367 = vmatprep.subr.mxu0 0.0
    %368 = vmatpush1.xpose.msra.mxu0 0.0
    %369 = vmatprep.subr.mxu0 0.0
    %370 = vmatpush1.xpose.msra.mxu0 0.0
    %371 = vmatprep.subr.mxu0 0.0
    %372 = vmatpush1.xpose.msra.mxu0 0.0
    %373 = vmatprep.subr.mxu0 0.0
    %374 = vmatpush1.xpose.msra.mxu0 0.0
    %375 = vmatprep.subr.mxu0 0.0
    %376 = vmatpush1.xpose.msra.mxu0 0.0
    %377 = vmatprep.subr.mxu0 0.0
    %378 = vmatpush1.xpose.msra.mxu0 0.0
    %379 = vmatprep.subr.mxu0 0.0
    %380 = vmatpush1.xpose.msra.mxu0 0.0
    %381 = vmatprep.subr.mxu0 0.0
    %382 = vmatpush1.xpose.msra.mxu0 0.0
    %383 = vmatprep.subr.mxu0 0.0
    %384 = vmatpush1.xpose.msra.mxu0 0.0
    %385 = vmatprep.subr.mxu0 0.0
    %386 = vmatpush1.xpose.msra.mxu0 0.0
    %387 = vmatprep.subr.mxu0 0.0
    %388 = vmatpush1.xpose.msra.mxu0 0.0
    %389 = vmatprep.subr.mxu0 0.0
    %390 = vmatpush1.xpose.msra.mxu0 0.0
    %391 = vmatprep.subr.mxu0 0.0
    %392 = vmatpush1.xpose.msra.mxu0 0.0
    %393 = vmatprep.subr.mxu0 0.0
    %394 = vmatpush1.xpose.msra.mxu0 0.0
    %395 = vmatprep.subr.mxu0 0.0
    %396 = vmatpush1.xpose.msra.mxu0 0.0
    %397 = vmatprep.subr.mxu0 0.0
    %398 = vmatpush1.xpose.msra.mxu0 0.0
    %399 = vmatprep.subr.mxu0 0.0
    %400 = vmatpush1.xpose.msra.mxu0 0.0
    %401 = vmatprep.subr.mxu0 0.0
    %402 = vmatpush1.xpose.msra.mxu0 0.0
    %403 = vmatprep.mubr.f32.mxu0 0.0
    %404 = vmatmul.mubr.f32.gmra.mrb[0].mxu0 %v331
    %v405 = vpop.f32.mrb[0].mxu0
    %v406 = vadd.f32 0.0, %v405
    %v407 = vpop.f32.mrb[0].mxu0
    %408 = vmatprep.mubr.f32.mxu0 0.0
    %409 = vmatmul.mubr.f32.gmra.mrb[0].mxu0 %v333
    %v410 = vpop.f32.mrb[0].mxu0
    %v411 = vadd.f32 0.0, %v410
    %v412 = vpop.f32.mrb[0].mxu0
    %413 = vmatprep.mubr.f32.mxu0 0.0
    %414 = vmatmul.mubr.f32.gmra.mrb[0].mxu0 %v335
    %v415 = vpop.f32.mrb[0].mxu0
    %v416 = vadd.f32 0.0, %v415
    %v417 = vpop.f32.mrb[0].mxu0
    %418 = vmatprep.mubr.f32.mxu0 0.0
    %419 = vmatmul.mubr.f32.gmra.mrb[0].mxu0 %v337
    %v420 = vpop.f32.mrb[0].mxu0
    %v421 = vadd.f32 0.0, %v420
    %v422 = vpop.f32.mrb[0].mxu0
    %423 = vdwg.mxu0
    %v424 = vsel %vm52, %v154, 0
    %v426 = vsel %vm52, %v195, 0
    %v428 = vsel %vm52, %v211, 0
    %v430 = vsel %vm52, %v227, 0
    %432 = vmatprep.subr.mxu0 0.0
    %433 = vmatpush1.xpose.msra.mxu0 %v60
    %434 = vmatprep.subr.mxu0 0.0
    %435 = vmatpush1.xpose.msra.mxu0 0.0
    %436 = vmatprep.subr.mxu0 0.0
    %437 = vmatpush1.xpose.msra.mxu0 0.0
    %438 = vmatprep.subr.mxu0 0.0
    %439 = vmatpush1.xpose.msra.mxu0 0.0
    %440 = vmatprep.subr.mxu0 0.0
    %441 = vmatpush1.xpose.msra.mxu0 0.0
    %442 = vmatprep.subr.mxu0 0.0
    %443 = vmatpush1.xpose.msra.mxu0 0.0
    %444 = vmatprep.subr.mxu0 0.0
    %445 = vmatpush1.xpose.msra.mxu0 0.0
    %446 = vmatprep.subr.mxu0 0.0
    %447 = vmatpush1.xpose.msra.mxu0 0.0
    %448 = vmatprep.subr.mxu0 0.0
    %449 = vmatpush1.xpose.msra.mxu0 0.0
    %450 = vmatprep.subr.mxu0 0.0
    %451 = vmatpush1.xpose.msra.mxu0 0.0
    %452 = vmatprep.subr.mxu0 0.0
    %453 = vmatpush1.xpose.msra.mxu0 0.0
    %454 = vmatprep.subr.mxu0 0.0
    %455 = vmatpush1.xpose.msra.mxu0 0.0
    %456 = vmatprep.subr.mxu0 0.0
    %457 = vmatpush1.xpose.msra.mxu0 0.0
    %458 = vmatprep.subr.mxu0 0.0
    %459 = vmatpush1.xpose.msra.mxu0 0.0
    %460 = vmatprep.subr.mxu0 0.0
    %461 = vmatpush1.xpose.msra.mxu0 0.0
    %462 = vmatprep.subr.mxu0 0.0
    %463 = vmatpush1.xpose.msra.mxu0 0.0
    %464 = vmatprep.subr.mxu0 0.0
    %465 = vmatpush1.xpose.msra.mxu0 0.0
    %466 = vmatprep.subr.mxu0 0.0
    %467 = vmatpush1.xpose.msra.mxu0 0.0
    %468 = vmatprep.subr.mxu0 0.0
    %469 = vmatpush1.xpose.msra.mxu0 0.0
    %470 = vmatprep.subr.mxu0 0.0
    %471 = vmatpush1.xpose.msra.mxu0 0.0
    %472 = vmatprep.subr.mxu0 0.0
    %473 = vmatpush1.xpose.msra.mxu0 0.0
    %474 = vmatprep.subr.mxu0 0.0
    %475 = vmatpush1.xpose.msra.mxu0 0.0
    %476 = vmatprep.subr.mxu0 0.0
    %477 = vmatpush1.xpose.msra.mxu0 0.0
    %478 = vmatprep.subr.mxu0 0.0
    %479 = vmatpush1.xpose.msra.mxu0 0.0
    %480 = vmatprep.subr.mxu0 0.0
    %481 = vmatpush1.xpose.msra.mxu0 0.0
    %482 = vmatprep.subr.mxu0 0.0
    %483 = vmatpush1.xpose.msra.mxu0 0.0
    %484 = vmatprep.subr.mxu0 0.0
    %485 = vmatpush1.xpose.msra.mxu0 0.0
    %486 = vmatprep.subr.mxu0 0.0
    %487 = vmatpush1.xpose.msra.mxu0 0.0
    %488 = vmatprep.subr.mxu0 0.0
    %489 = vmatpush1.xpose.msra.mxu0 0.0
    %490 = vmatprep.subr.mxu0 0.0
    %491 = vmatpush1.xpose.msra.mxu0 0.0
    %492 = vmatprep.subr.mxu0 0.0
    %493 = vmatpush1.xpose.msra.mxu0 0.0
    %494 = vmatprep.subr.mxu0 0.0
    %495 = vmatpush1.xpose.msra.mxu0 0.0
    %496 = vmatprep.mubr.f32.mxu0 0.0
    %497 = vmatmul.mubr.f32.gmra.mrb[0].mxu0 %v424
    %v498 = vpop.f32.mrb[0].mxu0
    %v499 = vadd.f32 0.0, %v498
    %v500 = vpop.f32.mrb[0].mxu0
    %501 = vmatprep.mubr.f32.mxu0 0.0
    %502 = vmatmul.mubr.f32.gmra.mrb[0].mxu0 %v426
    %v503 = vpop.f32.mrb[0].mxu0
    %v504 = vadd.f32 0.0, %v503
    %v505 = vpop.f32.mrb[0].mxu0
    %506 = vmatprep.mubr.f32.mxu0 0.0
    %507 = vmatmul.mubr.f32.gmra.mrb[0].mxu0 %v428
    %v508 = vpop.f32.mrb[0].mxu0
    %v509 = vadd.f32 0.0, %v508
    %v510 = vpop.f32.mrb[0].mxu0
    %511 = vmatprep.mubr.f32.mxu0 0.0
    %512 = vmatmul.mubr.f32.gmra.mrb[0].mxu0 %v430
    %v513 = vpop.f32.mrb[0].mxu0
    %v514 = vadd.f32 0.0, %v513
    %v515 = vpop.f32.mrb[0].mxu0
    %516 = vdwg.mxu0
    %v517 = vsel %vm52, %v159, 0
    %v519 = vsel %vm52, %v197, 0
    %v521 = vsel %vm52, %v213, 0
    %v523 = vsel %vm52, %v229, 0
    %525 = vmatprep.subr.mxu0 0.0
    %526 = vmatpush1.xpose.msra.mxu0 %v63
    %527 = vmatprep.subr.mxu0 0.0
    %528 = vmatpush1.xpose.msra.mxu0 0.0
    %529 = vmatprep.subr.mxu0 0.0
    %530 = vmatpush1.xpose.msra.mxu0 0.0
    %531 = vmatprep.subr.mxu0 0.0
    %532 = vmatpush1.xpose.msra.mxu0 0.0
    %533 = vmatprep.subr.mxu0 0.0
    %534 = vmatpush1.xpose.msra.mxu0 0.0
    %535 = vmatprep.subr.mxu0 0.0
    %536 = vmatpush1.xpose.msra.mxu0 0.0
    %537 = vmatprep.subr.mxu0 0.0
    %538 = vmatpush1.xpose.msra.mxu0 0.0
    %539 = vmatprep.subr.mxu0 0.0
    %540 = vmatpush1.xpose.msra.mxu0 0.0
    %541 = vmatprep.subr.mxu0 0.0
    %542 = vmatpush1.xpose.msra.mxu0 0.0
    %543 = vmatprep.subr.mxu0 0.0
    %544 = vmatpush1.xpose.msra.mxu0 0.0
    %545 = vmatprep.subr.mxu0 0.0
    %546 = vmatpush1.xpose.msra.mxu0 0.0
    %547 = vmatprep.subr.mxu0 0.0
    %548 = vmatpush1.xpose.msra.mxu0 0.0
    %549 = vmatprep.subr.mxu0 0.0
    %550 = vmatpush1.xpose.msra.mxu0 0.0
    %551 = vmatprep.subr.mxu0 0.0
    %552 = vmatpush1.xpose.msra.mxu0 0.0
    %553 = vmatprep.subr.mxu0 0.0
    %554 = vmatpush1.xpose.msra.mxu0 0.0
    %555 = vmatprep.subr.mxu0 0.0
    %556 = vmatpush1.xpose.msra.mxu0 0.0
    %557 = vmatprep.subr.mxu0 0.0
    %558 = vmatpush1.xpose.msra.mxu0 0.0
    %559 = vmatprep.subr.mxu0 0.0
    %560 = vmatpush1.xpose.msra.mxu0 0.0
    %561 = vmatprep.subr.mxu0 0.0
    %562 = vmatpush1.xpose.msra.mxu0 0.0
    %563 = vmatprep.subr.mxu0 0.0
    %564 = vmatpush1.xpose.msra.mxu0 0.0
    %565 = vmatprep.subr.mxu0 0.0
    %566 = vmatpush1.xpose.msra.mxu0 0.0
    %567 = vmatprep.subr.mxu0 0.0
    %568 = vmatpush1.xpose.msra.mxu0 0.0
    %569 = vmatprep.subr.mxu0 0.0
    %570 = vmatpush1.xpose.msra.mxu0 0.0
    %571 = vmatprep.subr.mxu0 0.0
    %572 = vmatpush1.xpose.msra.mxu0 0.0
    %573 = vmatprep.subr.mxu0 0.0
    %574 = vmatpush1.xpose.msra.mxu0 0.0
    %575 = vmatprep.subr.mxu0 0.0
    %576 = vmatpush1.xpose.msra.mxu0 0.0
    %577 = vmatprep.subr.mxu0 0.0
    %578 = vmatpush1.xpose.msra.mxu0 0.0
    %579 = vmatprep.subr.mxu0 0.0
    %580 = vmatpush1.xpose.msra.mxu0 0.0
    %581 = vmatprep.subr.mxu0 0.0
    %582 = vmatpush1.xpose.msra.mxu0 0.0
    %583 = vmatprep.subr.mxu0 0.0
    %584 = vmatpush1.xpose.msra.mxu0 0.0
    %585 = vmatprep.subr.mxu0 0.0
    %586 = vmatpush1.xpose.msra.mxu0 0.0
    %587 = vmatprep.subr.mxu0 0.0
    %588 = vmatpush1.xpose.msra.mxu0 0.0
    %589 = vmatprep.mubr.f32.mxu0 0.0
    %590 = vmatmul.mubr.f32.gmra.mrb[0].mxu0 %v517
    %v591 = vpop.f32.mrb[0].mxu0
    %v592 = vadd.f32 0.0, %v591
    %v593 = vpop.f32.mrb[0].mxu0
    %594 = vmatprep.mubr.f32.mxu0 0.0
    %595 = vmatmul.mubr.f32.gmra.mrb[0].mxu0 %v519
    %v596 = vpop.f32.mrb[0].mxu0
    %v597 = vadd.f32 0.0, %v596
    %v598 = vpop.f32.mrb[0].mxu0
    %599 = vmatprep.mubr.f32.mxu0 0.0
    %600 = vmatmul.mubr.f32.gmra.mrb[0].mxu0 %v521
    %v601 = vpop.f32.mrb[0].mxu0
    %v602 = vadd.f32 0.0, %v601
    %v603 = vpop.f32.mrb[0].mxu0
    %604 = vmatprep.mubr.f32.mxu0 0.0
    %605 = vmatmul.mubr.f32.gmra.mrb[0].mxu0 %v523
    %v606 = vpop.f32.mrb[0].mxu0
    %v607 = vadd.f32 0.0, %v606
    %v608 = vpop.f32.mrb[0].mxu0
    %609 = vdwg.mxu0
    %v610 = vsel %vm52, %v164, 0
    %v612 = vsel %vm52, %v199, 0
    %v614 = vsel %vm52, %v215, 0
    %v616 = vsel %vm52, %v231, 0
    %618 = vmatprep.subr.mxu0 0.0
    %619 = vmatpush1.xpose.msra.mxu0 %v66
    %620 = vmatprep.subr.mxu0 0.0
    %621 = vmatpush1.xpose.msra.mxu0 0.0
    %622 = vmatprep.subr.mxu0 0.0
    %623 = vmatpush1.xpose.msra.mxu0 0.0
    %624 = vmatprep.subr.mxu0 0.0
    %625 = vmatpush1.xpose.msra.mxu0 0.0
    %626 = vmatprep.subr.mxu0 0.0
    %627 = vmatpush1.xpose.msra.mxu0 0.0
    %628 = vmatprep.subr.mxu0 0.0
    %629 = vmatpush1.xpose.msra.mxu0 0.0
    %630 = vmatprep.subr.mxu0 0.0
    %631 = vmatpush1.xpose.msra.mxu0 0.0
    %632 = vmatprep.subr.mxu0 0.0
    %633 = vmatpush1.xpose.msra.mxu0 0.0
    %634 = vmatprep.subr.mxu0 0.0
    %635 = vmatpush1.xpose.msra.mxu0 0.0
    %636 = vmatprep.subr.mxu0 0.0
    %637 = vmatpush1.xpose.msra.mxu0 0.0
    %638 = vmatprep.subr.mxu0 0.0
    %639 = vmatpush1.xpose.msra.mxu0 0.0
    %640 = vmatprep.subr.mxu0 0.0
    %641 = vmatpush1.xpose.msra.mxu0 0.0
    %642 = vmatprep.subr.mxu0 0.0
    %643 = vmatpush1.xpose.msra.mxu0 0.0
    %644 = vmatprep.subr.mxu0 0.0
    %645 = vmatpush1.xpose.msra.mxu0 0.0
    %646 = vmatprep.subr.mxu0 0.0
    %647 = vmatpush1.xpose.msra.mxu0 0.0
    %648 = vmatprep.subr.mxu0 0.0
    %649 = vmatpush1.xpose.msra.mxu0 0.0
    %650 = vmatprep.subr.mxu0 0.0
    %651 = vmatpush1.xpose.msra.mxu0 0.0
    %652 = vmatprep.subr.mxu0 0.0
    %653 = vmatpush1.xpose.msra.mxu0 0.0
    %654 = vmatprep.subr.mxu0 0.0
    %655 = vmatpush1.xpose.msra.mxu0 0.0
    %656 = vmatprep.subr.mxu0 0.0
    %657 = vmatpush1.xpose.msra.mxu0 0.0
    %658 = vmatprep.subr.mxu0 0.0
    %659 = vmatpush1.xpose.msra.mxu0 0.0
    %660 = vmatprep.subr.mxu0 0.0
    %661 = vmatpush1.xpose.msra.mxu0 0.0
    %662 = vmatprep.subr.mxu0 0.0
    %663 = vmatpush1.xpose.msra.mxu0 0.0
    %664 = vmatprep.subr.mxu0 0.0
    %665 = vmatpush1.xpose.msra.mxu0 0.0
    %666 = vmatprep.subr.mxu0 0.0
    %667 = vmatpush1.xpose.msra.mxu0 0.0
    %668 = vmatprep.subr.mxu0 0.0
    %669 = vmatpush1.xpose.msra.mxu0 0.0
    %670 = vmatprep.subr.mxu0 0.0
    %671 = vmatpush1.xpose.msra.mxu0 0.0
    %672 = vmatprep.subr.mxu0 0.0
    %673 = vmatpush1.xpose.msra.mxu0 0.0
    %674 = vmatprep.subr.mxu0 0.0
    %675 = vmatpush1.xpose.msra.mxu0 0.0
    %676 = vmatprep.subr.mxu0 0.0
    %677 = vmatpush1.xpose.msra.mxu0 0.0
    %678 = vmatprep.subr.mxu0 0.0
    %679 = vmatpush1.xpose.msra.mxu0 0.0
    %680 = vmatprep.subr.mxu0 0.0
    %681 = vmatpush1.xpose.msra.mxu0 0.0
    %682 = vmatprep.mubr.f32.mxu0 0.0
    %683 = vmatmul.mubr.f32.gmra.mrb[0].mxu0 %v610
    %v684 = vpop.f32.mrb[0].mxu0
    %v685 = vadd.f32 0.0, %v684
    %v686 = vpop.f32.mrb[0].mxu0
    %687 = vmatprep.mubr.f32.mxu0 0.0
    %688 = vmatmul.mubr.f32.gmra.mrb[0].mxu0 %v612
    %v689 = vpop.f32.mrb[0].mxu0
    %v690 = vadd.f32 0.0, %v689
    %v691 = vpop.f32.mrb[0].mxu0
    %692 = vmatprep.mubr.f32.mxu0 0.0
    %693 = vmatmul.mubr.f32.gmra.mrb[0].mxu0 %v614
    %v694 = vpop.f32.mrb[0].mxu0
    %v695 = vadd.f32 0.0, %v694
    %v696 = vpop.f32.mrb[0].mxu0
    %697 = vmatprep.mubr.f32.mxu0 0.0
    %698 = vmatmul.mubr.f32.gmra.mrb[0].mxu0 %v616
    %v699 = vpop.f32.mrb[0].mxu0
    %v700 = vadd.f32 0.0, %v699
    %v701 = vpop.f32.mrb[0].mxu0
    %702 = vdwg.mxu0
    %v703 = vsel %vm52, %v169, 0
    %v705 = vsel %vm52, %v201, 0
    %v707 = vsel %vm52, %v217, 0
    %v709 = vsel %vm52, %v233, 0
    %711 = vmatprep.subr.mxu0 0.0
    %712 = vmatpush1.xpose.msra.mxu0 %v69
    %713 = vmatprep.subr.mxu0 0.0
    %714 = vmatpush1.xpose.msra.mxu0 0.0
    %715 = vmatprep.subr.mxu0 0.0
    %716 = vmatpush1.xpose.msra.mxu0 0.0
    %717 = vmatprep.subr.mxu0 0.0
    %718 = vmatpush1.xpose.msra.mxu0 0.0
    %719 = vmatprep.subr.mxu0 0.0
    %720 = vmatpush1.xpose.msra.mxu0 0.0
    %721 = vmatprep.subr.mxu0 0.0
    %722 = vmatpush1.xpose.msra.mxu0 0.0
    %723 = vmatprep.subr.mxu0 0.0
    %724 = vmatpush1.xpose.msra.mxu0 0.0
    %725 = vmatprep.subr.mxu0 0.0
    %726 = vmatpush1.xpose.msra.mxu0 0.0
    %727 = vmatprep.subr.mxu0 0.0
    %728 = vmatpush1.xpose.msra.mxu0 0.0
    %729 = vmatprep.subr.mxu0 0.0
    %730 = vmatpush1.xpose.msra.mxu0 0.0
    %731 = vmatprep.subr.mxu0 0.0
    %732 = vmatpush1.xpose.msra.mxu0 0.0
    %733 = vmatprep.subr.mxu0 0.0
    %734 = vmatpush1.xpose.msra.mxu0 0.0
    %735 = vmatprep.subr.mxu0 0.0
    %736 = vmatpush1.xpose.msra.mxu0 0.0
    %737 = vmatprep.subr.mxu0 0.0
    %738 = vmatpush1.xpose.msra.mxu0 0.0
    %739 = vmatprep.subr.mxu0 0.0
    %740 = vmatpush1.xpose.msra.mxu0 0.0
    %741 = vmatprep.subr.mxu0 0.0
    %742 = vmatpush1.xpose.msra.mxu0 0.0
    %743 = vmatprep.subr.mxu0 0.0
    %744 = vmatpush1.xpose.msra.mxu0 0.0
    %745 = vmatprep.subr.mxu0 0.0
    %746 = vmatpush1.xpose.msra.mxu0 0.0
    %747 = vmatprep.subr.mxu0 0.0
    %748 = vmatpush1.xpose.msra.mxu0 0.0
    %749 = vmatprep.subr.mxu0 0.0
    %750 = vmatpush1.xpose.msra.mxu0 0.0
    %751 = vmatprep.subr.mxu0 0.0
    %752 = vmatpush1.xpose.msra.mxu0 0.0
    %753 = vmatprep.subr.mxu0 0.0
    %754 = vmatpush1.xpose.msra.mxu0 0.0
    %755 = vmatprep.subr.mxu0 0.0
    %756 = vmatpush1.xpose.msra.mxu0 0.0
    %757 = vmatprep.subr.mxu0 0.0
    %758 = vmatpush1.xpose.msra.mxu0 0.0
    %759 = vmatprep.subr.mxu0 0.0
    %760 = vmatpush1.xpose.msra.mxu0 0.0
    %761 = vmatprep.subr.mxu0 0.0
    %762 = vmatpush1.xpose.msra.mxu0 0.0
    %763 = vmatprep.subr.mxu0 0.0
    %764 = vmatpush1.xpose.msra.mxu0 0.0
    %765 = vmatprep.subr.mxu0 0.0
    %766 = vmatpush1.xpose.msra.mxu0 0.0
    %767 = vmatprep.subr.mxu0 0.0
    %768 = vmatpush1.xpose.msra.mxu0 0.0
    %769 = vmatprep.subr.mxu0 0.0
    %770 = vmatpush1.xpose.msra.mxu0 0.0
    %771 = vmatprep.subr.mxu0 0.0
    %772 = vmatpush1.xpose.msra.mxu0 0.0
    %773 = vmatprep.subr.mxu0 0.0
    %774 = vmatpush1.xpose.msra.mxu0 0.0
    %775 = vmatprep.mubr.f32.mxu0 0.0
    %776 = vmatmul.mubr.f32.gmra.mrb[0].mxu0 %v703
    %v777 = vpop.f32.mrb[0].mxu0
    %v778 = vadd.f32 0.0, %v777
    %v779 = vpop.f32.mrb[0].mxu0
    %780 = vmatprep.mubr.f32.mxu0 0.0
    %781 = vmatmul.mubr.f32.gmra.mrb[0].mxu0 %v705
    %v782 = vpop.f32.mrb[0].mxu0
    %v783 = vadd.f32 0.0, %v782
    %v784 = vpop.f32.mrb[0].mxu0
    %785 = vmatprep.mubr.f32.mxu0 0.0
    %786 = vmatmul.mubr.f32.gmra.mrb[0].mxu0 %v707
    %v787 = vpop.f32.mrb[0].mxu0
    %v788 = vadd.f32 0.0, %v787
    %v789 = vpop.f32.mrb[0].mxu0
    %790 = vmatprep.mubr.f32.mxu0 0.0
    %791 = vmatmul.mubr.f32.gmra.mrb[0].mxu0 %v709
    %v792 = vpop.f32.mrb[0].mxu0
    %v793 = vadd.f32 0.0, %v792
    %v794 = vpop.f32.mrb[0].mxu0
    %795 = vdwg.mxu0
    %v796 = vsel %vm52, %v174, 0
    %v798 = vsel %vm52, %v203, 0
    %v800 = vsel %vm52, %v219, 0
    %v802 = vsel %vm52, %v235, 0
    %804 = vmatprep.subr.mxu0 0.0
    %805 = vmatpush1.xpose.msra.mxu0 %v72
    %806 = vmatprep.subr.mxu0 0.0
    %807 = vmatpush1.xpose.msra.mxu0 0.0
    %808 = vmatprep.subr.mxu0 0.0
    %809 = vmatpush1.xpose.msra.mxu0 0.0
    %810 = vmatprep.subr.mxu0 0.0
    %811 = vmatpush1.xpose.msra.mxu0 0.0
    %812 = vmatprep.subr.mxu0 0.0
    %813 = vmatpush1.xpose.msra.mxu0 0.0
    %814 = vmatprep.subr.mxu0 0.0
    %815 = vmatpush1.xpose.msra.mxu0 0.0
    %816 = vmatprep.subr.mxu0 0.0
    %817 = vmatpush1.xpose.msra.mxu0 0.0
    %818 = vmatprep.subr.mxu0 0.0
    %819 = vmatpush1.xpose.msra.mxu0 0.0
    %820 = vmatprep.subr.mxu0 0.0
    %821 = vmatpush1.xpose.msra.mxu0 0.0
    %822 = vmatprep.subr.mxu0 0.0
    %823 = vmatpush1.xpose.msra.mxu0 0.0
    %824 = vmatprep.subr.mxu0 0.0
    %825 = vmatpush1.xpose.msra.mxu0 0.0
    %826 = vmatprep.subr.mxu0 0.0
    %827 = vmatpush1.xpose.msra.mxu0 0.0
    %828 = vmatprep.subr.mxu0 0.0
    %829 = vmatpush1.xpose.msra.mxu0 0.0
    %830 = vmatprep.subr.mxu0 0.0
    %831 = vmatpush1.xpose.msra.mxu0 0.0
    %832 = vmatprep.subr.mxu0 0.0
    %833 = vmatpush1.xpose.msra.mxu0 0.0
    %834 = vmatprep.subr.mxu0 0.0
    %835 = vmatpush1.xpose.msra.mxu0 0.0
    %836 = vmatprep.subr.mxu0 0.0
    %837 = vmatpush1.xpose.msra.mxu0 0.0
    %838 = vmatprep.subr.mxu0 0.0
    %839 = vmatpush1.xpose.msra.mxu0 0.0
    %840 = vmatprep.subr.mxu0 0.0
    %841 = vmatpush1.xpose.msra.mxu0 0.0
    %842 = vmatprep.subr.mxu0 0.0
    %843 = vmatpush1.xpose.msra.mxu0 0.0
    %844 = vmatprep.subr.mxu0 0.0
    %845 = vmatpush1.xpose.msra.mxu0 0.0
    %846 = vmatprep.subr.mxu0 0.0
    %847 = vmatpush1.xpose.msra.mxu0 0.0
    %848 = vmatprep.subr.mxu0 0.0
    %849 = vmatpush1.xpose.msra.mxu0 0.0
    %850 = vmatprep.subr.mxu0 0.0
    %851 = vmatpush1.xpose.msra.mxu0 0.0
    %852 = vmatprep.subr.mxu0 0.0
    %853 = vmatpush1.xpose.msra.mxu0 0.0
    %854 = vmatprep.subr.mxu0 0.0
    %855 = vmatpush1.xpose.msra.mxu0 0.0
    %856 = vmatprep.subr.mxu0 0.0
    %857 = vmatpush1.xpose.msra.mxu0 0.0
    %858 = vmatprep.subr.mxu0 0.0
    %859 = vmatpush1.xpose.msra.mxu0 0.0
    %860 = vmatprep.subr.mxu0 0.0
    %861 = vmatpush1.xpose.msra.mxu0 0.0
    %862 = vmatprep.subr.mxu0 0.0
    %863 = vmatpush1.xpose.msra.mxu0 0.0
    %864 = vmatprep.subr.mxu0 0.0
    %865 = vmatpush1.xpose.msra.mxu0 0.0
    %866 = vmatprep.subr.mxu0 0.0
    %867 = vmatpush1.xpose.msra.mxu0 0.0
    %868 = vmatprep.mubr.f32.mxu0 0.0
    %869 = vmatmul.mubr.f32.gmra.mrb[0].mxu0 %v796
    %v870 = vpop.f32.mrb[0].mxu0
    %v871 = vadd.f32 0.0, %v870
    %v872 = vpop.f32.mrb[0].mxu0
    %873 = vmatprep.mubr.f32.mxu0 0.0
    %874 = vmatmul.mubr.f32.gmra.mrb[0].mxu0 %v798
    %v875 = vpop.f32.mrb[0].mxu0
    %v876 = vadd.f32 0.0, %v875
    %v877 = vpop.f32.mrb[0].mxu0
    %878 = vmatprep.mubr.f32.mxu0 0.0
    %879 = vmatmul.mubr.f32.gmra.mrb[0].mxu0 %v800
    %v880 = vpop.f32.mrb[0].mxu0
    %v881 = vadd.f32 0.0, %v880
    %v882 = vpop.f32.mrb[0].mxu0
    %883 = vmatprep.mubr.f32.mxu0 0.0
    %884 = vmatmul.mubr.f32.gmra.mrb[0].mxu0 %v802
    %v885 = vpop.f32.mrb[0].mxu0
    %v886 = vadd.f32 0.0, %v885
    %v887 = vpop.f32.mrb[0].mxu0
    %888 = vdwg.mxu0
    %v889 = vsel %vm52, %v179, 0
    %v891 = vsel %vm52, %v205, 0
    %v893 = vsel %vm52, %v221, 0
    %v895 = vsel %vm52, %v237, 0
    %897 = vmatprep.subr.mxu0 0.0
    %898 = vmatpush1.xpose.msra.mxu0 %v75
    %899 = vmatprep.subr.mxu0 0.0
    %900 = vmatpush1.xpose.msra.mxu0 0.0
    %901 = vmatprep.subr.mxu0 0.0
    %902 = vmatpush1.xpose.msra.mxu0 0.0
    %903 = vmatprep.subr.mxu0 0.0
    %904 = vmatpush1.xpose.msra.mxu0 0.0
    %905 = vmatprep.subr.mxu0 0.0
    %906 = vmatpush1.xpose.msra.mxu0 0.0
    %907 = vmatprep.subr.mxu0 0.0
    %908 = vmatpush1.xpose.msra.mxu0 0.0
    %909 = vmatprep.subr.mxu0 0.0
    %910 = vmatpush1.xpose.msra.mxu0 0.0
    %911 = vmatprep.subr.mxu0 0.0
    %912 = vmatpush1.xpose.msra.mxu0 0.0
    %913 = vmatprep.subr.mxu0 0.0
    %914 = vmatpush1.xpose.msra.mxu0 0.0
    %915 = vmatprep.subr.mxu0 0.0
    %916 = vmatpush1.xpose.msra.mxu0 0.0
    %917 = vmatprep.subr.mxu0 0.0
    %918 = vmatpush1.xpose.msra.mxu0 0.0
    %919 = vmatprep.subr.mxu0 0.0
    %920 = vmatpush1.xpose.msra.mxu0 0.0
    %921 = vmatprep.subr.mxu0 0.0
    %922 = vmatpush1.xpose.msra.mxu0 0.0
    %923 = vmatprep.subr.mxu0 0.0
    %924 = vmatpush1.xpose.msra.mxu0 0.0
    %925 = vmatprep.subr.mxu0 0.0
    %926 = vmatpush1.xpose.msra.mxu0 0.0
    %927 = vmatprep.subr.mxu0 0.0
    %928 = vmatpush1.xpose.msra.mxu0 0.0
    %929 = vmatprep.subr.mxu0 0.0
    %930 = vmatpush1.xpose.msra.mxu0 0.0
    %931 = vmatprep.subr.mxu0 0.0
    %932 = vmatpush1.xpose.msra.mxu0 0.0
    %933 = vmatprep.subr.mxu0 0.0
    %934 = vmatpush1.xpose.msra.mxu0 0.0
    %935 = vmatprep.subr.mxu0 0.0
    %936 = vmatpush1.xpose.msra.mxu0 0.0
    %937 = vmatprep.subr.mxu0 0.0
    %938 = vmatpush1.xpose.msra.mxu0 0.0
    %939 = vmatprep.subr.mxu0 0.0
    %940 = vmatpush1.xpose.msra.mxu0 0.0
    %941 = vmatprep.subr.mxu0 0.0
    %942 = vmatpush1.xpose.msra.mxu0 0.0
    %943 = vmatprep.subr.mxu0 0.0
    %944 = vmatpush1.xpose.msra.mxu0 0.0
    %945 = vmatprep.subr.mxu0 0.0
    %946 = vmatpush1.xpose.msra.mxu0 0.0
    %947 = vmatprep.subr.mxu0 0.0
    %948 = vmatpush1.xpose.msra.mxu0 0.0
    %949 = vmatprep.subr.mxu0 0.0
    %950 = vmatpush1.xpose.msra.mxu0 0.0
    %951 = vmatprep.subr.mxu0 0.0
    %952 = vmatpush1.xpose.msra.mxu0 0.0
    %953 = vmatprep.subr.mxu0 0.0
    %954 = vmatpush1.xpose.msra.mxu0 0.0
    %955 = vmatprep.subr.mxu0 0.0
    %956 = vmatpush1.xpose.msra.mxu0 0.0
    %957 = vmatprep.subr.mxu0 0.0
    %958 = vmatpush1.xpose.msra.mxu0 0.0
    %959 = vmatprep.subr.mxu0 0.0
    %960 = vmatpush1.xpose.msra.mxu0 0.0
    %961 = vmatprep.mubr.f32.mxu0 0.0
    %962 = vmatmul.mubr.f32.gmra.mrb[0].mxu0 %v889
    %v963 = vpop.f32.mrb[0].mxu0
    %v964 = vadd.f32 0.0, %v963
    %v965 = vpop.f32.mrb[0].mxu0
    %966 = vmatprep.mubr.f32.mxu0 0.0
    %967 = vmatmul.mubr.f32.gmra.mrb[0].mxu0 %v891
    %v968 = vpop.f32.mrb[0].mxu0
    %v969 = vadd.f32 0.0, %v968
    %v970 = vpop.f32.mrb[0].mxu0
    %971 = vmatprep.mubr.f32.mxu0 0.0
    %972 = vmatmul.mubr.f32.gmra.mrb[0].mxu0 %v893
    %v973 = vpop.f32.mrb[0].mxu0
    %v974 = vadd.f32 0.0, %v973
    %v975 = vpop.f32.mrb[0].mxu0
    %976 = vmatprep.mubr.f32.mxu0 0.0
    %977 = vmatmul.mubr.f32.gmra.mrb[0].mxu0 %v895
    %v978 = vpop.f32.mrb[0].mxu0
    %v979 = vadd.f32 0.0, %v978
    %v980 = vpop.f32.mrb[0].mxu0
    %981 = vdwg.mxu0
    %v982 = vmul.f32 %v313, 0.17677669
    %v983 = vmul.f32 %v318, 0.17677669
    %v984 = vmul.f32 %v323, 0.17677669
    %v985 = vmul.f32 %v328, 0.17677669
    %v986 = vmul.f32 %v406, 0.17677669
    %v987 = vmul.f32 %v411, 0.17677669
    %v988 = vmul.f32 %v416, 0.17677669
    %v989 = vmul.f32 %v421, 0.17677669
    %v990 = vmul.f32 %v499, 0.17677669
    %v991 = vmul.f32 %v504, 0.17677669
    %v992 = vmul.f32 %v509, 0.17677669
    %v993 = vmul.f32 %v514, 0.17677669
    %v994 = vmul.f32 %v592, 0.17677669
    %v995 = vmul.f32 %v597, 0.17677669
    %v996 = vmul.f32 %v602, 0.17677669
    %v997 = vmul.f32 %v607, 0.17677669
    %v998 = vmul.f32 %v685, 0.17677669
    %v999 = vmul.f32 %v690, 0.17677669
    %v1000 = vmul.f32 %v695, 0.17677669
    %v1001 = vmul.f32 %v700, 0.17677669
    %v1002 = vmul.f32 %v778, 0.17677669
    %v1003 = vmul.f32 %v783, 0.17677669
    %v1004 = vmul.f32 %v788, 0.17677669
    %v1005 = vmul.f32 %v793, 0.17677669
    %v1006 = vmul.f32 %v871, 0.17677669
    %v1007 = vmul.f32 %v876, 0.17677669
    %v1008 = vmul.f32 %v881, 0.17677669
    %v1009 = vmul.f32 %v886, 0.17677669
    %v1010 = vmul.f32 %v964, 0.17677669
    %v1011 = vmul.f32 %v969, 0.17677669
    %v1012 = vmul.f32 %v974, 0.17677669
    %v1013 = vmul.f32 %v979, 0.17677669
    %vm1014 = vcmask 64512
    %v1015 = vsel %vm1014, %v982, -inf
    %1016 = vmax.xlane.f32.xlu0 %v1015
    %v1017 = vpop.xlane.xlu0 %1016
    %v1018 = vsel %vm1014, %v983, -inf
    %1019 = vmax.xlane.f32.xlu0 %v1018
    %v1020 = vpop.xlane.xlu0 %1019
    %v1021 = vsel %vm1014, %v984, -inf
    %1022 = vmax.xlane.f32.xlu0 %v1021
    %v1023 = vpop.xlane.xlu0 %1022
    %v1024 = vsel %vm1014, %v985, -inf
    %1025 = vmax.xlane.f32.xlu0 %v1024
    %v1026 = vpop.xlane.xlu0 %1025
    %v1027 = vsel %vm1014, %v986, -inf
    %1028 = vmax.xlane.f32.xlu0 %v1027
    %v1029 = vpop.xlane.xlu0 %1028
    %v1030 = vsel %vm1014, %v987, -inf
    %1031 = vmax.xlane.f32.xlu0 %v1030
    %v1032 = vpop.xlane.xlu0 %1031
    %v1033 = vsel %vm1014, %v988, -inf
    %1034 = vmax.xlane.f32.xlu0 %v1033
    %v1035 = vpop.xlane.xlu0 %1034
    %v1036 = vsel %vm1014, %v989, -inf
    %1037 = vmax.xlane.f32.xlu0 %v1036
    %v1038 = vpop.xlane.xlu0 %1037
    %v1039 = vsel %vm1014, %v990, -inf
    %1040 = vmax.xlane.f32.xlu0 %v1039
    %v1041 = vpop.xlane.xlu0 %1040
    %v1042 = vsel %vm1014, %v991, -inf
    %1043 = vmax.xlane.f32.xlu0 %v1042
    %v1044 = vpop.xlane.xlu0 %1043
    %v1045 = vsel %vm1014, %v992, -inf
    %1046 = vmax.xlane.f32.xlu0 %v1045
    %v1047 = vpop.xlane.xlu0 %1046
    %v1048 = vsel %vm1014, %v993, -inf
    %1049 = vmax.xlane.f32.xlu0 %v1048
    %v1050 = vpop.xlane.xlu0 %1049
    %v1051 = vsel %vm1014, %v994, -inf
    %1052 = vmax.xlane.f32.xlu0 %v1051
    %v1053 = vpop.xlane.xlu0 %1052
    %v1054 = vsel %vm1014, %v995, -inf
    %1055 = vmax.xlane.f32.xlu0 %v1054
    %v1056 = vpop.xlane.xlu0 %1055
    %v1057 = vsel %vm1014, %v996, -inf
    %1058 = vmax.xlane.f32.xlu0 %v1057
    %v1059 = vpop.xlane.xlu0 %1058
    %v1060 = vsel %vm1014, %v997, -inf
    %1061 = vmax.xlane.f32.xlu0 %v1060
    %v1062 = vpop.xlane.xlu0 %1061
    %v1063 = vsel %vm1014, %v998, -inf
    %1064 = vmax.xlane.f32.xlu0 %v1063
    %v1065 = vpop.xlane.xlu0 %1064
    %v1066 = vsel %vm1014, %v999, -inf
    %1067 = vmax.xlane.f32.xlu0 %v1066
    %v1068 = vpop.xlane.xlu0 %1067
    %v1069 = vsel %vm1014, %v1000, -inf
    %1070 = vmax.xlane.f32.xlu0 %v1069
    %v1071 = vpop.xlane.xlu0 %1070
    %v1072 = vsel %vm1014, %v1001, -inf
    %1073 = vmax.xlane.f32.xlu0 %v1072
    %v1074 = vpop.xlane.xlu0 %1073
    %v1075 = vsel %vm1014, %v1002, -inf
    %1076 = vmax.xlane.f32.xlu0 %v1075
    %v1077 = vpop.xlane.xlu0 %1076
    %v1078 = vsel %vm1014, %v1003, -inf
    %1079 = vmax.xlane.f32.xlu0 %v1078
    %v1080 = vpop.xlane.xlu0 %1079
    %v1081 = vsel %vm1014, %v1004, -inf
    %1082 = vmax.xlane.f32.xlu0 %v1081
    %v1083 = vpop.xlane.xlu0 %1082
    %v1084 = vsel %vm1014, %v1005, -inf
    %1085 = vmax.xlane.f32.xlu0 %v1084
    %v1086 = vpop.xlane.xlu0 %1085
    %v1087 = vsel %vm1014, %v1006, -inf
    %1088 = vmax.xlane.f32.xlu0 %v1087
    %v1089 = vpop.xlane.xlu0 %1088
    %v1090 = vsel %vm1014, %v1007, -inf
    %1091 = vmax.xlane.f32.xlu0 %v1090
    %v1092 = vpop.xlane.xlu0 %1091
    %v1093 = vsel %vm1014, %v1008, -inf
    %1094 = vmax.xlane.f32.xlu0 %v1093
    %v1095 = vpop.xlane.xlu0 %1094
    %v1096 = vsel %vm1014, %v1009, -inf
    %1097 = vmax.xlane.f32.xlu0 %v1096
    %v1098 = vpop.xlane.xlu0 %1097
    %v1099 = vsel %vm1014, %v1010, -inf
    %1100 = vmax.xlane.f32.xlu0 %v1099
    %v1101 = vpop.xlane.xlu0 %1100
    %v1102 = vsel %vm1014, %v1011, -inf
    %1103 = vmax.xlane.f32.xlu0 %v1102
    %v1104 = vpop.xlane.xlu0 %1103
    %v1105 = vsel %vm1014, %v1012, -inf
    %1106 = vmax.xlane.f32.xlu0 %v1105
    %v1107 = vpop.xlane.xlu0 %1106
    %v1108 = vsel %vm1014, %v1013, -inf
    %1109 = vmax.xlane.f32.xlu0 %v1108
    %v1110 = vpop.xlane.xlu0 %1109
    %v1111 = vsub.f32 %v982, %v1017
    %v1112 = vsub.f32 %v983, %v1020
    %v1113 = vsub.f32 %v984, %v1023
    %v1114 = vsub.f32 %v985, %v1026
    %v1115 = vsub.f32 %v986, %v1029
    %v1116 = vsub.f32 %v987, %v1032
    %v1117 = vsub.f32 %v988, %v1035
    %v1118 = vsub.f32 %v989, %v1038
    %v1119 = vsub.f32 %v990, %v1041
    %v1120 = vsub.f32 %v991, %v1044
    %v1121 = vsub.f32 %v992, %v1047
    %v1122 = vsub.f32 %v993, %v1050
    %v1123 = vsub.f32 %v994, %v1053
    %v1124 = vsub.f32 %v995, %v1056
    %v1125 = vsub.f32 %v996, %v1059
    %v1126 = vsub.f32 %v997, %v1062
    %v1127 = vsub.f32 %v998, %v1065
    %v1128 = vsub.f32 %v999, %v1068
    %v1129 = vsub.f32 %v1000, %v1071
    %v1130 = vsub.f32 %v1001, %v1074
    %v1131 = vsub.f32 %v1002, %v1077
    %v1132 = vsub.f32 %v1003, %v1080
    %v1133 = vsub.f32 %v1004, %v1083
    %v1134 = vsub.f32 %v1005, %v1086
    %v1135 = vsub.f32 %v1006, %v1089
    %v1136 = vsub.f32 %v1007, %v1092
    %v1137 = vsub.f32 %v1008, %v1095
    %v1138 = vsub.f32 %v1009, %v1098
    %v1139 = vsub.f32 %v1010, %v1101
    %v1140 = vsub.f32 %v1011, %v1104
    %v1141 = vsub.f32 %v1012, %v1107
    %v1142 = vsub.f32 %v1013, %v1110
    %v1143 = vmul.f32 %v1111, 1.442695
    %v1144 = vpow.pop %v1143
    %v1145 = vmul.f32 %v1112, 1.442695
    %v1146 = vpow.pop %v1145
    %v1147 = vmul.f32 %v1113, 1.442695
    %v1148 = vpow.pop %v1147
    %v1149 = vmul.f32 %v1114, 1.442695
    %v1150 = vpow.pop %v1149
    %v1151 = vmul.f32 %v1115, 1.442695
    %v1152 = vpow.pop %v1151
    %v1153 = vmul.f32 %v1116, 1.442695
    %v1154 = vpow.pop %v1153
    %v1155 = vmul.f32 %v1117, 1.442695
    %v1156 = vpow.pop %v1155
    %v1157 = vmul.f32 %v1118, 1.442695
    %v1158 = vpow.pop %v1157
    %v1159 = vmul.f32 %v1119, 1.442695
    %v1160 = vpow.pop %v1159
    %v1161 = vmul.f32 %v1120, 1.442695
    %v1162 = vpow.pop %v1161
    %v1163 = vmul.f32 %v1121, 1.442695
    %v1164 = vpow.pop %v1163
    %v1165 = vmul.f32 %v1122, 1.442695
    %v1166 = vpow.pop %v1165
    %v1167 = vmul.f32 %v1123, 1.442695
    %v1168 = vpow.pop %v1167
    %v1169 = vmul.f32 %v1124, 1.442695
    %v1170 = vpow.pop %v1169
    %v1171 = vmul.f32 %v1125, 1.442695
    %v1172 = vpow.pop %v1171
    %v1173 = vmul.f32 %v1126, 1.442695
    %v1174 = vpow.pop %v1173
    %v1175 = vmul.f32 %v1127, 1.442695
    %v1176 = vpow.pop %v1175
    %v1177 = vmul.f32 %v1128, 1.442695
    %v1178 = vpow.pop %v1177
    %v1179 = vmul.f32 %v1129, 1.442695
    %v1180 = vpow.pop %v1179
    %v1181 = vmul.f32 %v1130, 1.442695
    %v1182 = vpow.pop %v1181
    %v1183 = vmul.f32 %v1131, 1.442695
    %v1184 = vpow.pop %v1183
    %v1185 = vmul.f32 %v1132, 1.442695
    %v1186 = vpow.pop %v1185
    %v1187 = vmul.f32 %v1133, 1.442695
    %v1188 = vpow.pop %v1187
    %v1189 = vmul.f32 %v1134, 1.442695
    %v1190 = vpow.pop %v1189
    %v1191 = vmul.f32 %v1135, 1.442695
    %v1192 = vpow.pop %v1191
    %v1193 = vmul.f32 %v1136, 1.442695
    %v1194 = vpow.pop %v1193
    %v1195 = vmul.f32 %v1137, 1.442695
    %v1196 = vpow.pop %v1195
    %v1197 = vmul.f32 %v1138, 1.442695
    %v1198 = vpow.pop %v1197
    %v1199 = vmul.f32 %v1139, 1.442695
    %v1200 = vpow.pop %v1199
    %v1201 = vmul.f32 %v1140, 1.442695
    %v1202 = vpow.pop %v1201
    %v1203 = vmul.f32 %v1141, 1.442695
    %v1204 = vpow.pop %v1203
    %v1205 = vmul.f32 %v1142, 1.442695
    %v1206 = vpow.pop %v1205
    %v1207 = vsel %vm1014, %v1144, 0.0
    %1208 = vadd.xlane.f32.xlu0 %v1207
    %v1209 = vpop.xlane.xlu0 %1208
    %v1210 = vsel %vm1014, %v1146, 0.0
    %1211 = vadd.xlane.f32.xlu0 %v1210
    %v1212 = vpop.xlane.xlu0 %1211
    %v1213 = vsel %vm1014, %v1148, 0.0
    %1214 = vadd.xlane.f32.xlu0 %v1213
    %v1215 = vpop.xlane.xlu0 %1214
    %v1216 = vsel %vm1014, %v1150, 0.0
    %1217 = vadd.xlane.f32.xlu0 %v1216
    %v1218 = vpop.xlane.xlu0 %1217
    %v1219 = vsel %vm1014, %v1152, 0.0
    %1220 = vadd.xlane.f32.xlu0 %v1219
    %v1221 = vpop.xlane.xlu0 %1220
    %v1222 = vsel %vm1014, %v1154, 0.0
    %1223 = vadd.xlane.f32.xlu0 %v1222
    %v1224 = vpop.xlane.xlu0 %1223
    %v1225 = vsel %vm1014, %v1156, 0.0
    %1226 = vadd.xlane.f32.xlu0 %v1225
    %v1227 = vpop.xlane.xlu0 %1226
    %v1228 = vsel %vm1014, %v1158, 0.0
    %1229 = vadd.xlane.f32.xlu0 %v1228
    %v1230 = vpop.xlane.xlu0 %1229
    %v1231 = vsel %vm1014, %v1160, 0.0
    %1232 = vadd.xlane.f32.xlu0 %v1231
    %v1233 = vpop.xlane.xlu0 %1232
    %v1234 = vsel %vm1014, %v1162, 0.0
    %1235 = vadd.xlane.f32.xlu0 %v1234
    %v1236 = vpop.xlane.xlu0 %1235
    %v1237 = vsel %vm1014, %v1164, 0.0
    %1238 = vadd.xlane.f32.xlu0 %v1237
    %v1239 = vpop.xlane.xlu0 %1238
    %v1240 = vsel %vm1014, %v1166, 0.0
    %1241 = vadd.xlane.f32.xlu0 %v1240
    %v1242 = vpop.xlane.xlu0 %1241
    %v1243 = vsel %vm1014, %v1168, 0.0
    %1244 = vadd.xlane.f32.xlu0 %v1243
    %v1245 = vpop.xlane.xlu0 %1244
    %v1246 = vsel %vm1014, %v1170, 0.0
    %1247 = vadd.xlane.f32.xlu0 %v1246
    %v1248 = vpop.xlane.xlu0 %1247
    %v1249 = vsel %vm1014, %v1172, 0.0
    %1250 = vadd.xlane.f32.xlu0 %v1249
    %v1251 = vpop.xlane.xlu0 %1250
    %v1252 = vsel %vm1014, %v1174, 0.0
    %1253 = vadd.xlane.f32.xlu0 %v1252
    %v1254 = vpop.xlane.xlu0 %1253
    %v1255 = vsel %vm1014, %v1176, 0.0
    %1256 = vadd.xlane.f32.xlu0 %v1255
    %v1257 = vpop.xlane.xlu0 %1256
    %v1258 = vsel %vm1014, %v1178, 0.0
    %1259 = vadd.xlane.f32.xlu0 %v1258
    %v1260 = vpop.xlane.xlu0 %1259
    %v1261 = vsel %vm1014, %v1180, 0.0
    %1262 = vadd.xlane.f32.xlu0 %v1261
    %v1263 = vpop.xlane.xlu0 %1262
    %v1264 = vsel %vm1014, %v1182, 0.0
    %1265 = vadd.xlane.f32.xlu0 %v1264
    %v1266 = vpop.xlane.xlu0 %1265
    %v1267 = vsel %vm1014, %v1184, 0.0
    %1268 = vadd.xlane.f32.xlu0 %v1267
    %v1269 = vpop.xlane.xlu0 %1268
    %v1270 = vsel %vm1014, %v1186, 0.0
    %1271 = vadd.xlane.f32.xlu0 %v1270
    %v1272 = vpop.xlane.xlu0 %1271
    %v1273 = vsel %vm1014, %v1188, 0.0
    %1274 = vadd.xlane.f32.xlu0 %v1273
    %v1275 = vpop.xlane.xlu0 %1274
    %v1276 = vsel %vm1014, %v1190, 0.0
    %1277 = vadd.xlane.f32.xlu0 %v1276
    %v1278 = vpop.xlane.xlu0 %1277
    %v1279 = vsel %vm1014, %v1192, 0.0
    %1280 = vadd.xlane.f32.xlu0 %v1279
    %v1281 = vpop.xlane.xlu0 %1280
    %v1282 = vsel %vm1014, %v1194, 0.0
    %1283 = vadd.xlane.f32.xlu0 %v1282
    %v1284 = vpop.xlane.xlu0 %1283
    %v1285 = vsel %vm1014, %v1196, 0.0
    %1286 = vadd.xlane.f32.xlu0 %v1285
    %v1287 = vpop.xlane.xlu0 %1286
    %v1288 = vsel %vm1014, %v1198, 0.0
    %1289 = vadd.xlane.f32.xlu0 %v1288
    %v1290 = vpop.xlane.xlu0 %1289
    %v1291 = vsel %vm1014, %v1200, 0.0
    %1292 = vadd.xlane.f32.xlu0 %v1291
    %v1293 = vpop.xlane.xlu0 %1292
    %v1294 = vsel %vm1014, %v1202, 0.0
    %1295 = vadd.xlane.f32.xlu0 %v1294
    %v1296 = vpop.xlane.xlu0 %1295
    %v1297 = vsel %vm1014, %v1204, 0.0
    %1298 = vadd.xlane.f32.xlu0 %v1297
    %v1299 = vpop.xlane.xlu0 %1298
    %v1300 = vsel %vm1014, %v1206, 0.0
    %1301 = vadd.xlane.f32.xlu0 %v1300
    %v1302 = vpop.xlane.xlu0 %1301
    %v1303 = vrcp.pop %v1209
    %v1304 = vrcp.pop %v1212
    %v1305 = vrcp.pop %v1215
    %v1306 = vrcp.pop %v1218
    %v1307 = vrcp.pop %v1221
    %v1308 = vrcp.pop %v1224
    %v1309 = vrcp.pop %v1227
    %v1310 = vrcp.pop %v1230
    %v1311 = vrcp.pop %v1233
    %v1312 = vrcp.pop %v1236
    %v1313 = vrcp.pop %v1239
    %v1314 = vrcp.pop %v1242
    %v1315 = vrcp.pop %v1245
    %v1316 = vrcp.pop %v1248
    %v1317 = vrcp.pop %v1251
    %v1318 = vrcp.pop %v1254
    %v1319 = vrcp.pop %v1257
    %v1320 = vrcp.pop %v1260
    %v1321 = vrcp.pop %v1263
    %v1322 = vrcp.pop %v1266
    %v1323 = vrcp.pop %v1269
    %v1324 = vrcp.pop %v1272
    %v1325 = vrcp.pop %v1275
    %v1326 = vrcp.pop %v1278
    %v1327 = vrcp.pop %v1281
    %v1328 = vrcp.pop %v1284
    %v1329 = vrcp.pop %v1287
    %v1330 = vrcp.pop %v1290
    %v1331 = vrcp.pop %v1293
    %v1332 = vrcp.pop %v1296
    %v1333 = vrcp.pop %v1299
    %v1334 = vrcp.pop %v1302
    %v1339 = vlaneseq
    %v1340 = vand.u32 %v1339, 127
    %v1341 = vlaneseq
    %v1342 = vshrl.u32 %v1341, 7
    %v1343 = vsub.s32 %v1340, %v1342
    %v1344 = vrot.slane %v1303, %v1343
    %v1345 = vadd.s32 %v1340, 4294967288
    %v1346 = vlaneseq
    %v1347 = vshrl.u32 %v1346, 7
    %v1348 = vsub.s32 %v1345, %v1347
    %v1349 = vrot.slane %v1304, %v1348
    %vm1350 = vcmask 130112
    %v1351 = vsel %vm1350, %v1349, %v1344
    %v1352 = vadd.s32 %v1340, 4294967280
    %v1353 = vlaneseq
    %v1354 = vshrl.u32 %v1353, 7
    %v1355 = vsub.s32 %v1352, %v1354
    %v1356 = vrot.slane %v1305, %v1355
    %vm1357 = vcmask 195712
    %v1358 = vsel %vm1357, %v1356, %v1351
    %v1359 = vadd.s32 %v1340, 4294967272
    %v1360 = vlaneseq
    %v1361 = vshrl.u32 %v1360, 7
    %v1362 = vsub.s32 %v1359, %v1361
    %v1363 = vrot.slane %v1306, %v1362
    %vm1364 = vcmask 261312
    %v1365 = vsel %vm1364, %v1363, %v1358
    %v1366 = vsel %vm52, %v1365, 0
    %1368 = vmatprep.subr.mxu0 0.0
    %1369 = vmatpush1.msra.mxu0 %v1144
    %1370 = vmatprep.subr.mxu0 0.0
    %1371 = vmatpush1.msra.mxu0 %v1146
    %1372 = vmatprep.subr.mxu0 0.0
    %1373 = vmatpush1.msra.mxu0 %v1148
    %1374 = vmatprep.subr.mxu0 0.0
    %1375 = vmatpush1.msra.mxu0 %v1150
    %1376 = vmatprep.subr.mxu0 0.0
    %1377 = vmatpush1.msra.mxu0 0.0
    %1378 = vmatprep.subr.mxu0 0.0
    %1379 = vmatpush1.msra.mxu0 0.0
    %1380 = vmatprep.subr.mxu0 0.0
    %1381 = vmatpush1.msra.mxu0 0.0
    %1382 = vmatprep.subr.mxu0 0.0
    %1383 = vmatpush1.msra.mxu0 0.0
    %1384 = vmatprep.subr.mxu0 0.0
    %1385 = vmatpush1.msra.mxu0 0.0
    %1386 = vmatprep.subr.mxu0 0.0
    %1387 = vmatpush1.msra.mxu0 0.0
    %1388 = vmatprep.subr.mxu0 0.0
    %1389 = vmatpush1.msra.mxu0 0.0
    %1390 = vmatprep.subr.mxu0 0.0
    %1391 = vmatpush1.msra.mxu0 0.0
    %1392 = vmatprep.subr.mxu0 0.0
    %1393 = vmatpush1.msra.mxu0 0.0
    %1394 = vmatprep.subr.mxu0 0.0
    %1395 = vmatpush1.msra.mxu0 0.0
    %1396 = vmatprep.subr.mxu0 0.0
    %1397 = vmatpush1.msra.mxu0 0.0
    %1398 = vmatprep.subr.mxu0 0.0
    %1399 = vmatpush1.msra.mxu0 0.0
    %1400 = vmatprep.subr.mxu0 0.0
    %1401 = vmatpush1.msra.mxu0 0.0
    %1402 = vmatprep.subr.mxu0 0.0
    %1403 = vmatpush1.msra.mxu0 0.0
    %1404 = vmatprep.subr.mxu0 0.0
    %1405 = vmatpush1.msra.mxu0 0.0
    %1406 = vmatprep.subr.mxu0 0.0
    %1407 = vmatpush1.msra.mxu0 0.0
    %1408 = vmatprep.subr.mxu0 0.0
    %1409 = vmatpush1.msra.mxu0 0.0
    %1410 = vmatprep.subr.mxu0 0.0
    %1411 = vmatpush1.msra.mxu0 0.0
    %1412 = vmatprep.subr.mxu0 0.0
    %1413 = vmatpush1.msra.mxu0 0.0
    %1414 = vmatprep.subr.mxu0 0.0
    %1415 = vmatpush1.msra.mxu0 0.0
    %1416 = vmatprep.subr.mxu0 0.0
    %1417 = vmatpush1.msra.mxu0 0.0
    %1418 = vmatprep.subr.mxu0 0.0
    %1419 = vmatpush1.msra.mxu0 0.0
    %1420 = vmatprep.subr.mxu0 0.0
    %1421 = vmatpush1.msra.mxu0 0.0
    %1422 = vmatprep.subr.mxu0 0.0
    %1423 = vmatpush1.msra.mxu0 0.0
    %1424 = vmatprep.subr.mxu0 0.0
    %1425 = vmatpush1.msra.mxu0 0.0
    %1426 = vmatprep.subr.mxu0 0.0
    %1427 = vmatpush1.msra.mxu0 0.0
    %1428 = vmatprep.subr.mxu0 0.0
    %1429 = vmatpush1.msra.mxu0 0.0
    %1430 = vmatprep.subr.mxu0 0.0
    %1431 = vmatpush1.msra.mxu0 0.0
    %1432 = vmatprep.mubr.f32.mxu0 0.0
    %1433 = vmatmul.mubr.f32.gmra.mrb[0].mxu0 %v1366
    %v1434 = vpop.f32.mrb[0].mxu0
    %v1435 = vadd.f32 0.0, %v1434
    %v1436 = vpop.f32.mrb[0].mxu0
    %1437 = vdwg.mxu0
    %v1442 = vlaneseq
    %v1443 = vshrl.u32 %v1442, 7
    %v1444 = vsub.s32 %v1340, %v1443
    %v1445 = vrot.slane %v1307, %v1444
    %v1446 = vlaneseq
    %v1447 = vshrl.u32 %v1446, 7
    %v1448 = vsub.s32 %v1345, %v1447
    %v1449 = vrot.slane %v1308, %v1448
    %v1450 = vsel %vm1350, %v1449, %v1445
    %v1451 = vlaneseq
    %v1452 = vshrl.u32 %v1451, 7
    %v1453 = vsub.s32 %v1352, %v1452
    %v1454 = vrot.slane %v1309, %v1453
    %v1455 = vsel %vm1357, %v1454, %v1450
    %v1456 = vlaneseq
    %v1457 = vshrl.u32 %v1456, 7
    %v1458 = vsub.s32 %v1359, %v1457
    %v1459 = vrot.slane %v1310, %v1458
    %v1460 = vsel %vm1364, %v1459, %v1455
    %v1461 = vsel %vm52, %v1460, 0
    %1463 = vmatprep.subr.mxu0 0.0
    %1464 = vmatpush1.msra.mxu0 %v1152
    %1465 = vmatprep.subr.mxu0 0.0
    %1466 = vmatpush1.msra.mxu0 %v1154
    %1467 = vmatprep.subr.mxu0 0.0
    %1468 = vmatpush1.msra.mxu0 %v1156
    %1469 = vmatprep.subr.mxu0 0.0
    %1470 = vmatpush1.msra.mxu0 %v1158
    %1471 = vmatprep.subr.mxu0 0.0
    %1472 = vmatpush1.msra.mxu0 0.0
    %1473 = vmatprep.subr.mxu0 0.0
    %1474 = vmatpush1.msra.mxu0 0.0
    %1475 = vmatprep.subr.mxu0 0.0
    %1476 = vmatpush1.msra.mxu0 0.0
    %1477 = vmatprep.subr.mxu0 0.0
    %1478 = vmatpush1.msra.mxu0 0.0
    %1479 = vmatprep.subr.mxu0 0.0
    %1480 = vmatpush1.msra.mxu0 0.0
    %1481 = vmatprep.subr.mxu0 0.0
    %1482 = vmatpush1.msra.mxu0 0.0
    %1483 = vmatprep.subr.mxu0 0.0
    %1484 = vmatpush1.msra.mxu0 0.0
    %1485 = vmatprep.subr.mxu0 0.0
    %1486 = vmatpush1.msra.mxu0 0.0
    %1487 = vmatprep.subr.mxu0 0.0
    %1488 = vmatpush1.msra.mxu0 0.0
    %1489 = vmatprep.subr.mxu0 0.0
    %1490 = vmatpush1.msra.mxu0 0.0
    %1491 = vmatprep.subr.mxu0 0.0
    %1492 = vmatpush1.msra.mxu0 0.0
    %1493 = vmatprep.subr.mxu0 0.0
    %1494 = vmatpush1.msra.mxu0 0.0
    %1495 = vmatprep.subr.mxu0 0.0
    %1496 = vmatpush1.msra.mxu0 0.0
    %1497 = vmatprep.subr.mxu0 0.0
    %1498 = vmatpush1.msra.mxu0 0.0
    %1499 = vmatprep.subr.mxu0 0.0
    %1500 = vmatpush1.msra.mxu0 0.0
    %1501 = vmatprep.subr.mxu0 0.0
    %1502 = vmatpush1.msra.mxu0 0.0
    %1503 = vmatprep.subr.mxu0 0.0
    %1504 = vmatpush1.msra.mxu0 0.0
    %1505 = vmatprep.subr.mxu0 0.0
    %1506 = vmatpush1.msra.mxu0 0.0
    %1507 = vmatprep.subr.mxu0 0.0
    %1508 = vmatpush1.msra.mxu0 0.0
    %1509 = vmatprep.subr.mxu0 0.0
    %1510 = vmatpush1.msra.mxu0 0.0
    %1511 = vmatprep.subr.mxu0 0.0
    %1512 = vmatpush1.msra.mxu0 0.0
    %1513 = vmatprep.subr.mxu0 0.0
    %1514 = vmatpush1.msra.mxu0 0.0
    %1515 = vmatprep.subr.mxu0 0.0
    %1516 = vmatpush1.msra.mxu0 0.0
    %1517 = vmatprep.subr.mxu0 0.0
    %1518 = vmatpush1.msra.mxu0 0.0
    %1519 = vmatprep.subr.mxu0 0.0
    %1520 = vmatpush1.msra.mxu0 0.0
    %1521 = vmatprep.subr.mxu0 0.0
    %1522 = vmatpush1.msra.mxu0 0.0
    %1523 = vmatprep.subr.mxu0 0.0
    %1524 = vmatpush1.msra.mxu0 0.0
    %1525 = vmatprep.subr.mxu0 0.0
    %1526 = vmatpush1.msra.mxu0 0.0
    %1527 = vmatprep.mubr.f32.mxu0 0.0
    %1528 = vmatmul.mubr.f32.gmra.mrb[0].mxu0 %v1461
    %v1529 = vpop.f32.mrb[0].mxu0
    %v1530 = vadd.f32 0.0, %v1529
    %v1531 = vpop.f32.mrb[0].mxu0
    %1532 = vdwg.mxu0
    %v1537 = vlaneseq
    %v1538 = vshrl.u32 %v1537, 7
    %v1539 = vsub.s32 %v1340, %v1538
    %v1540 = vrot.slane %v1311, %v1539
    %v1541 = vlaneseq
    %v1542 = vshrl.u32 %v1541, 7
    %v1543 = vsub.s32 %v1345, %v1542
    %v1544 = vrot.slane %v1312, %v1543
    %v1545 = vsel %vm1350, %v1544, %v1540
    %v1546 = vlaneseq
    %v1547 = vshrl.u32 %v1546, 7
    %v1548 = vsub.s32 %v1352, %v1547
    %v1549 = vrot.slane %v1313, %v1548
    %v1550 = vsel %vm1357, %v1549, %v1545
    %v1551 = vlaneseq
    %v1552 = vshrl.u32 %v1551, 7
    %v1553 = vsub.s32 %v1359, %v1552
    %v1554 = vrot.slane %v1314, %v1553
    %v1555 = vsel %vm1364, %v1554, %v1550
    %v1556 = vsel %vm52, %v1555, 0
    %1558 = vmatprep.subr.mxu0 0.0
    %1559 = vmatpush1.msra.mxu0 %v1160
    %1560 = vmatprep.subr.mxu0 0.0
    %1561 = vmatpush1.msra.mxu0 %v1162
    %1562 = vmatprep.subr.mxu0 0.0
    %1563 = vmatpush1.msra.mxu0 %v1164
    %1564 = vmatprep.subr.mxu0 0.0
    %1565 = vmatpush1.msra.mxu0 %v1166
    %1566 = vmatprep.subr.mxu0 0.0
    %1567 = vmatpush1.msra.mxu0 0.0
    %1568 = vmatprep.subr.mxu0 0.0
    %1569 = vmatpush1.msra.mxu0 0.0
    %1570 = vmatprep.subr.mxu0 0.0
    %1571 = vmatpush1.msra.mxu0 0.0
    %1572 = vmatprep.subr.mxu0 0.0
    %1573 = vmatpush1.msra.mxu0 0.0
    %1574 = vmatprep.subr.mxu0 0.0
    %1575 = vmatpush1.msra.mxu0 0.0
    %1576 = vmatprep.subr.mxu0 0.0
    %1577 = vmatpush1.msra.mxu0 0.0
    %1578 = vmatprep.subr.mxu0 0.0
    %1579 = vmatpush1.msra.mxu0 0.0
    %1580 = vmatprep.subr.mxu0 0.0
    %1581 = vmatpush1.msra.mxu0 0.0
    %1582 = vmatprep.subr.mxu0 0.0
    %1583 = vmatpush1.msra.mxu0 0.0
    %1584 = vmatprep.subr.mxu0 0.0
    %1585 = vmatpush1.msra.mxu0 0.0
    %1586 = vmatprep.subr.mxu0 0.0
    %1587 = vmatpush1.msra.mxu0 0.0
    %1588 = vmatprep.subr.mxu0 0.0
    %1589 = vmatpush1.msra.mxu0 0.0
    %1590 = vmatprep.subr.mxu0 0.0
    %1591 = vmatpush1.msra.mxu0 0.0
    %1592 = vmatprep.subr.mxu0 0.0
    %1593 = vmatpush1.msra.mxu0 0.0
    %1594 = vmatprep.subr.mxu0 0.0
    %1595 = vmatpush1.msra.mxu0 0.0
    %1596 = vmatprep.subr.mxu0 0.0
    %1597 = vmatpush1.msra.mxu0 0.0
    %1598 = vmatprep.subr.mxu0 0.0
    %1599 = vmatpush1.msra.mxu0 0.0
    %1600 = vmatprep.subr.mxu0 0.0
    %1601 = vmatpush1.msra.mxu0 0.0
    %1602 = vmatprep.subr.mxu0 0.0
    %1603 = vmatpush1.msra.mxu0 0.0
    %1604 = vmatprep.subr.mxu0 0.0
    %1605 = vmatpush1.msra.mxu0 0.0
    %1606 = vmatprep.subr.mxu0 0.0
    %1607 = vmatpush1.msra.mxu0 0.0
    %1608 = vmatprep.subr.mxu0 0.0
    %1609 = vmatpush1.msra.mxu0 0.0
    %1610 = vmatprep.subr.mxu0 0.0
    %1611 = vmatpush1.msra.mxu0 0.0
    %1612 = vmatprep.subr.mxu0 0.0
    %1613 = vmatpush1.msra.mxu0 0.0
    %1614 = vmatprep.subr.mxu0 0.0
    %1615 = vmatpush1.msra.mxu0 0.0
    %1616 = vmatprep.subr.mxu0 0.0
    %1617 = vmatpush1.msra.mxu0 0.0
    %1618 = vmatprep.subr.mxu0 0.0
    %1619 = vmatpush1.msra.mxu0 0.0
    %1620 = vmatprep.subr.mxu0 0.0
    %1621 = vmatpush1.msra.mxu0 0.0
    %1622 = vmatprep.mubr.f32.mxu0 0.0
    %1623 = vmatmul.mubr.f32.gmra.mrb[0].mxu0 %v1556
    %v1624 = vpop.f32.mrb[0].mxu0
    %v1625 = vadd.f32 0.0, %v1624
    %v1626 = vpop.f32.mrb[0].mxu0
    %1627 = vdwg.mxu0
    %v1632 = vlaneseq
    %v1633 = vshrl.u32 %v1632, 7
    %v1634 = vsub.s32 %v1340, %v1633
    %v1635 = vrot.slane %v1315, %v1634
    %v1636 = vlaneseq
    %v1637 = vshrl.u32 %v1636, 7
    %v1638 = vsub.s32 %v1345, %v1637
    %v1639 = vrot.slane %v1316, %v1638
    %v1640 = vsel %vm1350, %v1639, %v1635
    %v1641 = vlaneseq
    %v1642 = vshrl.u32 %v1641, 7
    %v1643 = vsub.s32 %v1352, %v1642
    %v1644 = vrot.slane %v1317, %v1643
    %v1645 = vsel %vm1357, %v1644, %v1640
    %v1646 = vlaneseq
    %v1647 = vshrl.u32 %v1646, 7
    %v1648 = vsub.s32 %v1359, %v1647
    %v1649 = vrot.slane %v1318, %v1648
    %v1650 = vsel %vm1364, %v1649, %v1645
    %v1651 = vsel %vm52, %v1650, 0
    %1653 = vmatprep.subr.mxu0 0.0
    %1654 = vmatpush1.msra.mxu0 %v1168
    %1655 = vmatprep.subr.mxu0 0.0
    %1656 = vmatpush1.msra.mxu0 %v1170
    %1657 = vmatprep.subr.mxu0 0.0
    %1658 = vmatpush1.msra.mxu0 %v1172
    %1659 = vmatprep.subr.mxu0 0.0
    %1660 = vmatpush1.msra.mxu0 %v1174
    %1661 = vmatprep.subr.mxu0 0.0
    %1662 = vmatpush1.msra.mxu0 0.0
    %1663 = vmatprep.subr.mxu0 0.0
    %1664 = vmatpush1.msra.mxu0 0.0
    %1665 = vmatprep.subr.mxu0 0.0
    %1666 = vmatpush1.msra.mxu0 0.0
    %1667 = vmatprep.subr.mxu0 0.0
    %1668 = vmatpush1.msra.mxu0 0.0
    %1669 = vmatprep.subr.mxu0 0.0
    %1670 = vmatpush1.msra.mxu0 0.0
    %1671 = vmatprep.subr.mxu0 0.0
    %1672 = vmatpush1.msra.mxu0 0.0
    %1673 = vmatprep.subr.mxu0 0.0
    %1674 = vmatpush1.msra.mxu0 0.0
    %1675 = vmatprep.subr.mxu0 0.0
    %1676 = vmatpush1.msra.mxu0 0.0
    %1677 = vmatprep.subr.mxu0 0.0
    %1678 = vmatpush1.msra.mxu0 0.0
    %1679 = vmatprep.subr.mxu0 0.0
    %1680 = vmatpush1.msra.mxu0 0.0
    %1681 = vmatprep.subr.mxu0 0.0
    %1682 = vmatpush1.msra.mxu0 0.0
    %1683 = vmatprep.subr.mxu0 0.0
    %1684 = vmatpush1.msra.mxu0 0.0
    %1685 = vmatprep.subr.mxu0 0.0
    %1686 = vmatpush1.msra.mxu0 0.0
    %1687 = vmatprep.subr.mxu0 0.0
    %1688 = vmatpush1.msra.mxu0 0.0
    %1689 = vmatprep.subr.mxu0 0.0
    %1690 = vmatpush1.msra.mxu0 0.0
    %1691 = vmatprep.subr.mxu0 0.0
    %1692 = vmatpush1.msra.mxu0 0.0
    %1693 = vmatprep.subr.mxu0 0.0
    %1694 = vmatpush1.msra.mxu0 0.0
    %1695 = vmatprep.subr.mxu0 0.0
    %1696 = vmatpush1.msra.mxu0 0.0
    %1697 = vmatprep.subr.mxu0 0.0
    %1698 = vmatpush1.msra.mxu0 0.0
    %1699 = vmatprep.subr.mxu0 0.0
    %1700 = vmatpush1.msra.mxu0 0.0
    %1701 = vmatprep.subr.mxu0 0.0
    %1702 = vmatpush1.msra.mxu0 0.0
    %1703 = vmatprep.subr.mxu0 0.0
    %1704 = vmatpush1.msra.mxu0 0.0
    %1705 = vmatprep.subr.mxu0 0.0
    %1706 = vmatpush1.msra.mxu0 0.0
    %1707 = vmatprep.subr.mxu0 0.0
    %1708 = vmatpush1.msra.mxu0 0.0
    %1709 = vmatprep.subr.mxu0 0.0
    %1710 = vmatpush1.msra.mxu0 0.0
    %1711 = vmatprep.subr.mxu0 0.0
    %1712 = vmatpush1.msra.mxu0 0.0
    %1713 = vmatprep.subr.mxu0 0.0
    %1714 = vmatpush1.msra.mxu0 0.0
    %1715 = vmatprep.subr.mxu0 0.0
    %1716 = vmatpush1.msra.mxu0 0.0
    %1717 = vmatprep.mubr.f32.mxu0 0.0
    %1718 = vmatmul.mubr.f32.gmra.mrb[0].mxu0 %v1651
    %v1719 = vpop.f32.mrb[0].mxu0
    %v1720 = vadd.f32 0.0, %v1719
    %v1721 = vpop.f32.mrb[0].mxu0
    %1722 = vdwg.mxu0
    %v1727 = vlaneseq
    %v1728 = vshrl.u32 %v1727, 7
    %v1729 = vsub.s32 %v1340, %v1728
    %v1730 = vrot.slane %v1319, %v1729
    %v1731 = vlaneseq
    %v1732 = vshrl.u32 %v1731, 7
    %v1733 = vsub.s32 %v1345, %v1732
    %v1734 = vrot.slane %v1320, %v1733
    %v1735 = vsel %vm1350, %v1734, %v1730
    %v1736 = vlaneseq
    %v1737 = vshrl.u32 %v1736, 7
    %v1738 = vsub.s32 %v1352, %v1737
    %v1739 = vrot.slane %v1321, %v1738
    %v1740 = vsel %vm1357, %v1739, %v1735
    %v1741 = vlaneseq
    %v1742 = vshrl.u32 %v1741, 7
    %v1743 = vsub.s32 %v1359, %v1742
    %v1744 = vrot.slane %v1322, %v1743
    %v1745 = vsel %vm1364, %v1744, %v1740
    %v1746 = vsel %vm52, %v1745, 0
    %1748 = vmatprep.subr.mxu0 0.0
    %1749 = vmatpush1.msra.mxu0 %v1176
    %1750 = vmatprep.subr.mxu0 0.0
    %1751 = vmatpush1.msra.mxu0 %v1178
    %1752 = vmatprep.subr.mxu0 0.0
    %1753 = vmatpush1.msra.mxu0 %v1180
    %1754 = vmatprep.subr.mxu0 0.0
    %1755 = vmatpush1.msra.mxu0 %v1182
    %1756 = vmatprep.subr.mxu0 0.0
    %1757 = vmatpush1.msra.mxu0 0.0
    %1758 = vmatprep.subr.mxu0 0.0
    %1759 = vmatpush1.msra.mxu0 0.0
    %1760 = vmatprep.subr.mxu0 0.0
    %1761 = vmatpush1.msra.mxu0 0.0
    %1762 = vmatprep.subr.mxu0 0.0
    %1763 = vmatpush1.msra.mxu0 0.0
    %1764 = vmatprep.subr.mxu0 0.0
    %1765 = vmatpush1.msra.mxu0 0.0
    %1766 = vmatprep.subr.mxu0 0.0
    %1767 = vmatpush1.msra.mxu0 0.0
    %1768 = vmatprep.subr.mxu0 0.0
    %1769 = vmatpush1.msra.mxu0 0.0
    %1770 = vmatprep.subr.mxu0 0.0
    %1771 = vmatpush1.msra.mxu0 0.0
    %1772 = vmatprep.subr.mxu0 0.0
    %1773 = vmatpush1.msra.mxu0 0.0
    %1774 = vmatprep.subr.mxu0 0.0
    %1775 = vmatpush1.msra.mxu0 0.0
    %1776 = vmatprep.subr.mxu0 0.0
    %1777 = vmatpush1.msra.mxu0 0.0
    %1778 = vmatprep.subr.mxu0 0.0
    %1779 = vmatpush1.msra.mxu0 0.0
    %1780 = vmatprep.subr.mxu0 0.0
    %1781 = vmatpush1.msra.mxu0 0.0
    %1782 = vmatprep.subr.mxu0 0.0
    %1783 = vmatpush1.msra.mxu0 0.0
    %1784 = vmatprep.subr.mxu0 0.0
    %1785 = vmatpush1.msra.mxu0 0.0
    %1786 = vmatprep.subr.mxu0 0.0
    %1787 = vmatpush1.msra.mxu0 0.0
    %1788 = vmatprep.subr.mxu0 0.0
    %1789 = vmatpush1.msra.mxu0 0.0
    %1790 = vmatprep.subr.mxu0 0.0
    %1791 = vmatpush1.msra.mxu0 0.0
    %1792 = vmatprep.subr.mxu0 0.0
    %1793 = vmatpush1.msra.mxu0 0.0
    %1794 = vmatprep.subr.mxu0 0.0
    %1795 = vmatpush1.msra.mxu0 0.0
    %1796 = vmatprep.subr.mxu0 0.0
    %1797 = vmatpush1.msra.mxu0 0.0
    %1798 = vmatprep.subr.mxu0 0.0
    %1799 = vmatpush1.msra.mxu0 0.0
    %1800 = vmatprep.subr.mxu0 0.0
    %1801 = vmatpush1.msra.mxu0 0.0
    %1802 = vmatprep.subr.mxu0 0.0
    %1803 = vmatpush1.msra.mxu0 0.0
    %1804 = vmatprep.subr.mxu0 0.0
    %1805 = vmatpush1.msra.mxu0 0.0
    %1806 = vmatprep.subr.mxu0 0.0
    %1807 = vmatpush1.msra.mxu0 0.0
    %1808 = vmatprep.subr.mxu0 0.0
    %1809 = vmatpush1.msra.mxu0 0.0
    %1810 = vmatprep.subr.mxu0 0.0
    %1811 = vmatpush1.msra.mxu0 0.0
    %1812 = vmatprep.mubr.f32.mxu0 0.0
    %1813 = vmatmul.mubr.f32.gmra.mrb[0].mxu0 %v1746
    %v1814 = vpop.f32.mrb[0].mxu0
    %v1815 = vadd.f32 0.0, %v1814
    %v1816 = vpop.f32.mrb[0].mxu0
    %1817 = vdwg.mxu0
    %v1822 = vlaneseq
    %v1823 = vshrl.u32 %v1822, 7
    %v1824 = vsub.s32 %v1340, %v1823
    %v1825 = vrot.slane %v1323, %v1824
    %v1826 = vlaneseq
    %v1827 = vshrl.u32 %v1826, 7
    %v1828 = vsub.s32 %v1345, %v1827
    %v1829 = vrot.slane %v1324, %v1828
    %v1830 = vsel %vm1350, %v1829, %v1825
    %v1831 = vlaneseq
    %v1832 = vshrl.u32 %v1831, 7
    %v1833 = vsub.s32 %v1352, %v1832
    %v1834 = vrot.slane %v1325, %v1833
    %v1835 = vsel %vm1357, %v1834, %v1830
    %v1836 = vlaneseq
    %v1837 = vshrl.u32 %v1836, 7
    %v1838 = vsub.s32 %v1359, %v1837
    %v1839 = vrot.slane %v1326, %v1838
    %v1840 = vsel %vm1364, %v1839, %v1835
    %v1841 = vsel %vm52, %v1840, 0
    %1843 = vmatprep.subr.mxu0 0.0
    %1844 = vmatpush1.msra.mxu0 %v1184
    %1845 = vmatprep.subr.mxu0 0.0
    %1846 = vmatpush1.msra.mxu0 %v1186
    %1847 = vmatprep.subr.mxu0 0.0
    %1848 = vmatpush1.msra.mxu0 %v1188
    %1849 = vmatprep.subr.mxu0 0.0
    %1850 = vmatpush1.msra.mxu0 %v1190
    %1851 = vmatprep.subr.mxu0 0.0
    %1852 = vmatpush1.msra.mxu0 0.0
    %1853 = vmatprep.subr.mxu0 0.0
    %1854 = vmatpush1.msra.mxu0 0.0
    %1855 = vmatprep.subr.mxu0 0.0
    %1856 = vmatpush1.msra.mxu0 0.0
    %1857 = vmatprep.subr.mxu0 0.0
    %1858 = vmatpush1.msra.mxu0 0.0
    %1859 = vmatprep.subr.mxu0 0.0
    %1860 = vmatpush1.msra.mxu0 0.0
    %1861 = vmatprep.subr.mxu0 0.0
    %1862 = vmatpush1.msra.mxu0 0.0
    %1863 = vmatprep.subr.mxu0 0.0
    %1864 = vmatpush1.msra.mxu0 0.0
    %1865 = vmatprep.subr.mxu0 0.0
    %1866 = vmatpush1.msra.mxu0 0.0
    %1867 = vmatprep.subr.mxu0 0.0
    %1868 = vmatpush1.msra.mxu0 0.0
    %1869 = vmatprep.subr.mxu0 0.0
    %1870 = vmatpush1.msra.mxu0 0.0
    %1871 = vmatprep.subr.mxu0 0.0
    %1872 = vmatpush1.msra.mxu0 0.0
    %1873 = vmatprep.subr.mxu0 0.0
    %1874 = vmatpush1.msra.mxu0 0.0
    %1875 = vmatprep.subr.mxu0 0.0
    %1876 = vmatpush1.msra.mxu0 0.0
    %1877 = vmatprep.subr.mxu0 0.0
    %1878 = vmatpush1.msra.mxu0 0.0
    %1879 = vmatprep.subr.mxu0 0.0
    %1880 = vmatpush1.msra.mxu0 0.0
    %1881 = vmatprep.subr.mxu0 0.0
    %1882 = vmatpush1.msra.mxu0 0.0
    %1883 = vmatprep.subr.mxu0 0.0
    %1884 = vmatpush1.msra.mxu0 0.0
    %1885 = vmatprep.subr.mxu0 0.0
    %1886 = vmatpush1.msra.mxu0 0.0
    %1887 = vmatprep.subr.mxu0 0.0
    %1888 = vmatpush1.msra.mxu0 0.0
    %1889 = vmatprep.subr.mxu0 0.0
    %1890 = vmatpush1.msra.mxu0 0.0
    %1891 = vmatprep.subr.mxu0 0.0
    %1892 = vmatpush1.msra.mxu0 0.0
    %1893 = vmatprep.subr.mxu0 0.0
    %1894 = vmatpush1.msra.mxu0 0.0
    %1895 = vmatprep.subr.mxu0 0.0
    %1896 = vmatpush1.msra.mxu0 0.0
    %1897 = vmatprep.subr.mxu0 0.0
    %1898 = vmatpush1.msra.mxu0 0.0
    %1899 = vmatprep.subr.mxu0 0.0
    %1900 = vmatpush1.msra.mxu0 0.0
    %1901 = vmatprep.subr.mxu0 0.0
    %1902 = vmatpush1.msra.mxu0 0.0
    %1903 = vmatprep.subr.mxu0 0.0
    %1904 = vmatpush1.msra.mxu0 0.0
    %1905 = vmatprep.subr.mxu0 0.0
    %1906 = vmatpush1.msra.mxu0 0.0
    %1907 = vmatprep.mubr.f32.mxu0 0.0
    %1908 = vmatmul.mubr.f32.gmra.mrb[0].mxu0 %v1841
    %v1909 = vpop.f32.mrb[0].mxu0
    %v1910 = vadd.f32 0.0, %v1909
    %v1911 = vpop.f32.mrb[0].mxu0
    %1912 = vdwg.mxu0
    %v1917 = vlaneseq
    %v1918 = vshrl.u32 %v1917, 7
    %v1919 = vsub.s32 %v1340, %v1918
    %v1920 = vrot.slane %v1327, %v1919
    %v1921 = vlaneseq
    %v1922 = vshrl.u32 %v1921, 7
    %v1923 = vsub.s32 %v1345, %v1922
    %v1924 = vrot.slane %v1328, %v1923
    %v1925 = vsel %vm1350, %v1924, %v1920
    %v1926 = vlaneseq
    %v1927 = vshrl.u32 %v1926, 7
    %v1928 = vsub.s32 %v1352, %v1927
    %v1929 = vrot.slane %v1329, %v1928
    %v1930 = vsel %vm1357, %v1929, %v1925
    %v1931 = vlaneseq
    %v1932 = vshrl.u32 %v1931, 7
    %v1933 = vsub.s32 %v1359, %v1932
    %v1934 = vrot.slane %v1330, %v1933
    %v1935 = vsel %vm1364, %v1934, %v1930
    %v1936 = vsel %vm52, %v1935, 0
    %1938 = vmatprep.subr.mxu0 0.0
    %1939 = vmatpush1.msra.mxu0 %v1192
    %1940 = vmatprep.subr.mxu0 0.0
    %1941 = vmatpush1.msra.mxu0 %v1194
    %1942 = vmatprep.subr.mxu0 0.0
    %1943 = vmatpush1.msra.mxu0 %v1196
    %1944 = vmatprep.subr.mxu0 0.0
    %1945 = vmatpush1.msra.mxu0 %v1198
    %1946 = vmatprep.subr.mxu0 0.0
    %1947 = vmatpush1.msra.mxu0 0.0
    %1948 = vmatprep.subr.mxu0 0.0
    %1949 = vmatpush1.msra.mxu0 0.0
    %1950 = vmatprep.subr.mxu0 0.0
    %1951 = vmatpush1.msra.mxu0 0.0
    %1952 = vmatprep.subr.mxu0 0.0
    %1953 = vmatpush1.msra.mxu0 0.0
    %1954 = vmatprep.subr.mxu0 0.0
    %1955 = vmatpush1.msra.mxu0 0.0
    %1956 = vmatprep.subr.mxu0 0.0
    %1957 = vmatpush1.msra.mxu0 0.0
    %1958 = vmatprep.subr.mxu0 0.0
    %1959 = vmatpush1.msra.mxu0 0.0
    %1960 = vmatprep.subr.mxu0 0.0
    %1961 = vmatpush1.msra.mxu0 0.0
    %1962 = vmatprep.subr.mxu0 0.0
    %1963 = vmatpush1.msra.mxu0 0.0
    %1964 = vmatprep.subr.mxu0 0.0
    %1965 = vmatpush1.msra.mxu0 0.0
    %1966 = vmatprep.subr.mxu0 0.0
    %1967 = vmatpush1.msra.mxu0 0.0
    %1968 = vmatprep.subr.mxu0 0.0
    %1969 = vmatpush1.msra.mxu0 0.0
    %1970 = vmatprep.subr.mxu0 0.0
    %1971 = vmatpush1.msra.mxu0 0.0
    %1972 = vmatprep.subr.mxu0 0.0
    %1973 = vmatpush1.msra.mxu0 0.0
    %1974 = vmatprep.subr.mxu0 0.0
    %1975 = vmatpush1.msra.mxu0 0.0
    %1976 = vmatprep.subr.mxu0 0.0
    %1977 = vmatpush1.msra.mxu0 0.0
    %1978 = vmatprep.subr.mxu0 0.0
    %1979 = vmatpush1.msra.mxu0 0.0
    %1980 = vmatprep.subr.mxu0 0.0
    %1981 = vmatpush1.msra.mxu0 0.0
    %1982 = vmatprep.subr.mxu0 0.0
    %1983 = vmatpush1.msra.mxu0 0.0
    %1984 = vmatprep.subr.mxu0 0.0
    %1985 = vmatpush1.msra.mxu0 0.0
    %1986 = vmatprep.subr.mxu0 0.0
    %1987 = vmatpush1.msra.mxu0 0.0
    %1988 = vmatprep.subr.mxu0 0.0
    %1989 = vmatpush1.msra.mxu0 0.0
    %1990 = vmatprep.subr.mxu0 0.0
    %1991 = vmatpush1.msra.mxu0 0.0
    %1992 = vmatprep.subr.mxu0 0.0
    %1993 = vmatpush1.msra.mxu0 0.0
    %1994 = vmatprep.subr.mxu0 0.0
    %1995 = vmatpush1.msra.mxu0 0.0
    %1996 = vmatprep.subr.mxu0 0.0
    %1997 = vmatpush1.msra.mxu0 0.0
    %1998 = vmatprep.subr.mxu0 0.0
    %1999 = vmatpush1.msra.mxu0 0.0
    %2000 = vmatprep.subr.mxu0 0.0
    %2001 = vmatpush1.msra.mxu0 0.0
    %2002 = vmatprep.mubr.f32.mxu0 0.0
    %2003 = vmatmul.mubr.f32.gmra.mrb[0].mxu0 %v1936
    %v2004 = vpop.f32.mrb[0].mxu0
    %v2005 = vadd.f32 0.0, %v2004
    %v2006 = vpop.f32.mrb[0].mxu0
    %2007 = vdwg.mxu0
    %v2012 = vlaneseq
    %v2013 = vshrl.u32 %v2012, 7
    %v2014 = vsub.s32 %v1340, %v2013
    %v2015 = vrot.slane %v1331, %v2014
    %v2016 = vlaneseq
    %v2017 = vshrl.u32 %v2016, 7
    %v2018 = vsub.s32 %v1345, %v2017
    %v2019 = vrot.slane %v1332, %v2018
    %v2020 = vsel %vm1350, %v2019, %v2015
    %v2021 = vlaneseq
    %v2022 = vshrl.u32 %v2021, 7
    %v2023 = vsub.s32 %v1352, %v2022
    %v2024 = vrot.slane %v1333, %v2023
    %v2025 = vsel %vm1357, %v2024, %v2020
    %v2026 = vlaneseq
    %v2027 = vshrl.u32 %v2026, 7
    %v2028 = vsub.s32 %v1359, %v2027
    %v2029 = vrot.slane %v1334, %v2028
    %v2030 = vsel %vm1364, %v2029, %v2025
    %v2031 = vsel %vm52, %v2030, 0
    %2033 = vmatprep.subr.mxu0 0.0
    %2034 = vmatpush1.msra.mxu0 %v1200
    %2035 = vmatprep.subr.mxu0 0.0
    %2036 = vmatpush1.msra.mxu0 %v1202
    %2037 = vmatprep.subr.mxu0 0.0
    %2038 = vmatpush1.msra.mxu0 %v1204
    %2039 = vmatprep.subr.mxu0 0.0
    %2040 = vmatpush1.msra.mxu0 %v1206
    %2041 = vmatprep.subr.mxu0 0.0
    %2042 = vmatpush1.msra.mxu0 0.0
    %2043 = vmatprep.subr.mxu0 0.0
    %2044 = vmatpush1.msra.mxu0 0.0
    %2045 = vmatprep.subr.mxu0 0.0
    %2046 = vmatpush1.msra.mxu0 0.0
    %2047 = vmatprep.subr.mxu0 0.0
    %2048 = vmatpush1.msra.mxu0 0.0
    %2049 = vmatprep.subr.mxu0 0.0
    %2050 = vmatpush1.msra.mxu0 0.0
    %2051 = vmatprep.subr.mxu0 0.0
    %2052 = vmatpush1.msra.mxu0 0.0
    %2053 = vmatprep.subr.mxu0 0.0
    %2054 = vmatpush1.msra.mxu0 0.0
    %2055 = vmatprep.subr.mxu0 0.0
    %2056 = vmatpush1.msra.mxu0 0.0
    %2057 = vmatprep.subr.mxu0 0.0
    %2058 = vmatpush1.msra.mxu0 0.0
    %2059 = vmatprep.subr.mxu0 0.0
    %2060 = vmatpush1.msra.mxu0 0.0
    %2061 = vmatprep.subr.mxu0 0.0
    %2062 = vmatpush1.msra.mxu0 0.0
    %2063 = vmatprep.subr.mxu0 0.0
    %2064 = vmatpush1.msra.mxu0 0.0
    %2065 = vmatprep.subr.mxu0 0.0
    %2066 = vmatpush1.msra.mxu0 0.0
    %2067 = vmatprep.subr.mxu0 0.0
    %2068 = vmatpush1.msra.mxu0 0.0
    %2069 = vmatprep.subr.mxu0 0.0
    %2070 = vmatpush1.msra.mxu0 0.0
    %2071 = vmatprep.subr.mxu0 0.0
    %2072 = vmatpush1.msra.mxu0 0.0
    %2073 = vmatprep.subr.mxu0 0.0
    %2074 = vmatpush1.msra.mxu0 0.0
    %2075 = vmatprep.subr.mxu0 0.0
    %2076 = vmatpush1.msra.mxu0 0.0
    %2077 = vmatprep.subr.mxu0 0.0
    %2078 = vmatpush1.msra.mxu0 0.0
    %2079 = vmatprep.subr.mxu0 0.0
    %2080 = vmatpush1.msra.mxu0 0.0
    %2081 = vmatprep.subr.mxu0 0.0
    %2082 = vmatpush1.msra.mxu0 0.0
    %2083 = vmatprep.subr.mxu0 0.0
    %2084 = vmatpush1.msra.mxu0 0.0
    %2085 = vmatprep.subr.mxu0 0.0
    %2086 = vmatpush1.msra.mxu0 0.0
    %2087 = vmatprep.subr.mxu0 0.0
    %2088 = vmatpush1.msra.mxu0 0.0
    %2089 = vmatprep.subr.mxu0 0.0
    %2090 = vmatpush1.msra.mxu0 0.0
    %2091 = vmatprep.subr.mxu0 0.0
    %2092 = vmatpush1.msra.mxu0 0.0
    %2093 = vmatprep.subr.mxu0 0.0
    %2094 = vmatpush1.msra.mxu0 0.0
    %2095 = vmatprep.subr.mxu0 0.0
    %2096 = vmatpush1.msra.mxu0 0.0
    %2097 = vmatprep.mubr.f32.mxu0 0.0
    %2098 = vmatmul.mubr.f32.gmra.mrb[0].mxu0 %v2031
    %v2099 = vpop.f32.mrb[0].mxu0
    %v2100 = vadd.f32 0.0, %v2099
    %v2101 = vpop.f32.mrb[0].mxu0
    %2102 = vdwg.mxu0
    %v2103 = vmul.f32 %v1435, 0.03125
    %v2104 = vmul.f32 %v1530, 0.03125
    %v2105 = vmul.f32 %v1625, 0.03125
    %v2106 = vmul.f32 %v1720, 0.03125
    %v2107 = vmul.f32 %v1815, 0.03125
    %v2108 = vmul.f32 %v1910, 0.03125
    %v2109 = vmul.f32 %v2005, 0.03125
    %v2110 = vmul.f32 %v2100, 0.03125
    %v2119 = vrot.slane %v2104, 7
    %vm2120 = vcmask 1041409
    %v2121 = vsel %vm2120, %v2119, %v2103
    %v2122 = vrot.slane %v2105, 6
    %vm2123 = vcmask 1042434
    %v2124 = vsel %vm2123, %v2122, %v2121
    %v2125 = vrot.slane %v2106, 5
    %vm2126 = vcmask 1043459
    %v2127 = vsel %vm2126, %v2125, %v2124
    %v2128 = vrot.slane %v2107, 4
    %vm2129 = vcmask 1044484
    %v2130 = vsel %vm2129, %v2128, %v2127
    %v2131 = vrot.slane %v2108, 3
    %vm2132 = vcmask 1045509
    %v2133 = vsel %vm2132, %v2131, %v2130
    %v2134 = vrot.slane %v2109, 2
    %vm2135 = vcmask 1046534
    %v2136 = vsel %vm2135, %v2134, %v2133
    %v2137 = vrot.slane %v2110, 1
    %vm2138 = vcmask 1047559
    %v2139 = vsel %vm2138, %v2137, %v2136
    %v2141 = vsel %vm1014, %v2139, -inf
    %2142 = vmax.xlane.f32.xlu0 %v2141
    %v2143 = vpop.xlane.xlu0 %2142
    %v2145 = vrot.slane %v2143, 1
    %v2146 = vrot.slane %v2143, 2
    %v2147 = vrot.slane %v2143, 3
    %v2148 = vrot.slane %v2143, 4
    %v2149 = vrot.slane %v2143, 5
    %v2150 = vrot.slane %v2143, 6
    %v2151 = vrot.slane %v2143, 7
    %v2160 = vsub.f32 %v2103, %v2143
    %v2161 = vsub.f32 %v2104, %v2145
    %v2162 = vsub.f32 %v2105, %v2146
    %v2163 = vsub.f32 %v2106, %v2147
    %v2164 = vsub.f32 %v2107, %v2148
    %v2165 = vsub.f32 %v2108, %v2149
    %v2166 = vsub.f32 %v2109, %v2150
    %v2167 = vsub.f32 %v2110, %v2151
    %v2168 = vmul.f32 %v2160, 1.442695
    %v2169 = vpow.pop %v2168
    %v2170 = vmul.f32 %v2161, 1.442695
    %v2171 = vpow.pop %v2170
    %v2172 = vmul.f32 %v2162, 1.442695
    %v2173 = vpow.pop %v2172
    %v2174 = vmul.f32 %v2163, 1.442695
    %v2175 = vpow.pop %v2174
    %v2176 = vmul.f32 %v2164, 1.442695
    %v2177 = vpow.pop %v2176
    %v2178 = vmul.f32 %v2165, 1.442695
    %v2179 = vpow.pop %v2178
    %v2180 = vmul.f32 %v2166, 1.442695
    %v2181 = vpow.pop %v2180
    %v2182 = vmul.f32 %v2167, 1.442695
    %v2183 = vpow.pop %v2182
    %v2192 = vrot.slane %v2171, 7
    %v2193 = vsel %vm2120, %v2192, %v2169
    %v2194 = vrot.slane %v2173, 6
    %v2195 = vsel %vm2123, %v2194, %v2193
    %v2196 = vrot.slane %v2175, 5
    %v2197 = vsel %vm2126, %v2196, %v2195
    %v2198 = vrot.slane %v2177, 4
    %v2199 = vsel %vm2129, %v2198, %v2197
    %v2200 = vrot.slane %v2179, 3
    %v2201 = vsel %vm2132, %v2200, %v2199
    %v2202 = vrot.slane %v2181, 2
    %v2203 = vsel %vm2135, %v2202, %v2201
    %v2204 = vrot.slane %v2183, 1
    %v2205 = vsel %vm2138, %v2204, %v2203
    %v2207 = vsel %vm1014, %v2205, 0.0
    %2208 = vadd.xlane.f32.xlu0 %v2207
    %v2209 = vpop.xlane.xlu0 %2208
    %v2210 = vrcp.pop %v2209
    %v2212 = vrot.slane %v2210, 1
    %v2213 = vrot.slane %v2210, 2
    %v2214 = vrot.slane %v2210, 3
    %v2215 = vrot.slane %v2210, 4
    %v2216 = vrot.slane %v2210, 5
    %v2217 = vrot.slane %v2210, 6
    %v2218 = vrot.slane %v2210, 7
    %v2227 = vmul.f32 %v2169, %v2210
    %v2228 = vmul.f32 %v2171, %v2212
    %v2229 = vmul.f32 %v2173, %v2213
    %v2230 = vmul.f32 %v2175, %v2214
    %v2231 = vmul.f32 %v2177, %v2215
    %v2232 = vmul.f32 %v2179, %v2216
    %v2233 = vmul.f32 %v2181, %v2217
    %v2234 = vmul.f32 %v2183, %v2218
    %v2235 = vlaneseq
    %v2236 = vshrl.u32 %v2235, 7
    %v2237 = vsub.s32 0, %v2236
    %v2238 = vrot.slane %v2227, %v2237
    %2240 = vbcast.lane.b32.xlu0 %v2238, 256
    %v2241 = vpop.permute.xlu0 %2240
    %v2242 = vlaneseq
    %v2243 = vshrl.u32 %v2242, 7
    %v2244 = vsub.s32 0, %v2243
    %v2245 = vrot.slane %v2228, %v2244
    %2247 = vbcast.lane.b32.xlu0 %v2245, 256
    %v2248 = vpop.permute.xlu0 %2247
    %v2249 = vlaneseq
    %v2250 = vshrl.u32 %v2249, 7
    %v2251 = vsub.s32 0, %v2250
    %v2252 = vrot.slane %v2229, %v2251
    %2254 = vbcast.lane.b32.xlu0 %v2252, 256
    %v2255 = vpop.permute.xlu0 %2254
    %v2256 = vlaneseq
    %v2257 = vshrl.u32 %v2256, 7
    %v2258 = vsub.s32 0, %v2257
    %v2259 = vrot.slane %v2230, %v2258
    %2261 = vbcast.lane.b32.xlu0 %v2259, 256
    %v2262 = vpop.permute.xlu0 %2261
    %v2263 = vlaneseq
    %v2264 = vshrl.u32 %v2263, 7
    %v2265 = vsub.s32 0, %v2264
    %v2266 = vrot.slane %v2231, %v2265
    %2268 = vbcast.lane.b32.xlu0 %v2266, 256
    %v2269 = vpop.permute.xlu0 %2268
    %v2270 = vlaneseq
    %v2271 = vshrl.u32 %v2270, 7
    %v2272 = vsub.s32 0, %v2271
    %v2273 = vrot.slane %v2232, %v2272
    %2275 = vbcast.lane.b32.xlu0 %v2273, 256
    %v2276 = vpop.permute.xlu0 %2275
    %v2277 = vlaneseq
    %v2278 = vshrl.u32 %v2277, 7
    %v2279 = vsub.s32 0, %v2278
    %v2280 = vrot.slane %v2233, %v2279
    %2282 = vbcast.lane.b32.xlu0 %v2280, 256
    %v2283 = vpop.permute.xlu0 %2282
    %v2284 = vlaneseq
    %v2285 = vshrl.u32 %v2284, 7
    %v2286 = vsub.s32 0, %v2285
    %v2287 = vrot.slane %v2234, %v2286
    %2289 = vbcast.lane.b32.xlu0 %v2287, 256
    %v2290 = vpop.permute.xlu0 %2289
    %v2291 = vmul.f32 %v2241, %v40
    %v2292 = vmul.f32 %v2248, %v41
    %v2293 = vmul.f32 %v2255, %v42
    %v2294 = vmul.f32 %v2262, %v43
    %v2295 = vmul.f32 %v2269, %v44
    %v2296 = vmul.f32 %v2276, %v45
    %v2297 = vmul.f32 %v2283, %v46
    %v2298 = vmul.f32 %v2290, %v47
    %v2299 = vsel %vm52, %v2291, 0.0
    %v2300 = vrot.slane %v2299, 4
    %v2301 = vadd.f32 %v2299, %v2300
    %v2302 = vrot.slane %v2301, 2
    %v2303 = vadd.f32 %v2301, %v2302
    %v2304 = vrot.slane %v2303, 1
    %v2305 = vadd.f32 %v2303, %v2304
    %v2306 = vsel %vm52, %v2292, 0.0
    %v2307 = vrot.slane %v2306, 4
    %v2308 = vadd.f32 %v2306, %v2307
    %v2309 = vrot.slane %v2308, 2
    %v2310 = vadd.f32 %v2308, %v2309
    %v2311 = vrot.slane %v2310, 1
    %v2312 = vadd.f32 %v2310, %v2311
    %v2313 = vsel %vm52, %v2293, 0.0
    %v2314 = vrot.slane %v2313, 4
    %v2315 = vadd.f32 %v2313, %v2314
    %v2316 = vrot.slane %v2315, 2
    %v2317 = vadd.f32 %v2315, %v2316
    %v2318 = vrot.slane %v2317, 1
    %v2319 = vadd.f32 %v2317, %v2318
    %v2320 = vsel %vm52, %v2294, 0.0
    %v2321 = vrot.slane %v2320, 4
    %v2322 = vadd.f32 %v2320, %v2321
    %v2323 = vrot.slane %v2322, 2
    %v2324 = vadd.f32 %v2322, %v2323
    %v2325 = vrot.slane %v2324, 1
    %v2326 = vadd.f32 %v2324, %v2325
    %v2327 = vsel %vm52, %v2295, 0.0
    %v2328 = vrot.slane %v2327, 4
    %v2329 = vadd.f32 %v2327, %v2328
    %v2330 = vrot.slane %v2329, 2
    %v2331 = vadd.f32 %v2329, %v2330
    %v2332 = vrot.slane %v2331, 1
    %v2333 = vadd.f32 %v2331, %v2332
    %v2334 = vsel %vm52, %v2296, 0.0
    %v2335 = vrot.slane %v2334, 4
    %v2336 = vadd.f32 %v2334, %v2335
    %v2337 = vrot.slane %v2336, 2
    %v2338 = vadd.f32 %v2336, %v2337
    %v2339 = vrot.slane %v2338, 1
    %v2340 = vadd.f32 %v2338, %v2339
    %v2341 = vsel %vm52, %v2297, 0.0
    %v2342 = vrot.slane %v2341, 4
    %v2343 = vadd.f32 %v2341, %v2342
    %v2344 = vrot.slane %v2343, 2
    %v2345 = vadd.f32 %v2343, %v2344
    %v2346 = vrot.slane %v2345, 1
    %v2347 = vadd.f32 %v2345, %v2346
    %v2348 = vsel %vm52, %v2298, 0.0
    %v2349 = vrot.slane %v2348, 4
    %v2350 = vadd.f32 %v2348, %v2349
    %v2351 = vrot.slane %v2350, 2
    %v2352 = vadd.f32 %v2350, %v2351
    %v2353 = vrot.slane %v2352, 1
    %v2354 = vadd.f32 %v2352, %v2353
    %v2363 = vsel %vm2120, %v2312, %v2305
    %v2364 = vsel %vm2123, %v2319, %v2363
    %v2365 = vsel %vm2126, %v2326, %v2364
    %v2366 = vsel %vm2129, %v2333, %v2365
    %v2367 = vsel %vm2132, %v2340, %v2366
    %v2368 = vsel %vm2135, %v2347, %v2367
    %v2369 = vsel %vm2138, %v2354, %v2368
    %2371 = vst.msk [vmem:[#allocation7] sm:$0xff] %vm52, %v2369
    // Predicated region
    $region18: #{tpu_custom_call.1} parent=1 // pred_check
      _
    $region19: #{tpu_custom_call.1} parent=1 // pred_check_branch
      %2373 = sbr.rel (0) target = $region21
    $region20: #{tpu_custom_call.1} parent=1 // pred_region
      %s2375 = ssub.s32 128, 128
      %2376 = vsyncadd [#allocation4], %s2375
      %s2378 = sshll.u32 [#allocation7], 4
      %s2379 = int_to_ptr.vmem [resolvable:$true] %s2378
      %2381 = dma.vmem_to_hbm [thread:$0]  %s2379, 128, %s2, [#allocation4]
    $region21: #{tpu_custom_call.1} parent=1 // pred_fallthru
      _
    // Predicated region
    $region22: #{tpu_custom_call.1} parent=1 // pred_check
      _
    $region23: #{tpu_custom_call.1} parent=1 // pred_check_branch
      %2383 = sbr.rel (0) target = $region25
    $region24: #{tpu_custom_call.1} parent=1 // pred_region
      %2384 = dma.done [#allocation4], 128
    $region25: #{tpu_custom_call.1} parent=1 // pred_fallthru
      _
    %2385 = vsyncpa [#allocation3], 1
    %2386 = vsyncpa [#allocation6], 1
    %2387 = vsyncpa [#allocation4], 1

// kernel: tpu_custom_call.1
$region0: #{tpu_custom_call.1}
  #allocation0 [shape = 'u32[]', space=smem, size = 0x4, offset = 0x4, fixed_abs, tag = 'smem constant byte address 0x4 - core index']
  #allocation1 [shape = 'u32[144,128]{1,0:T(1,128)}', space=vmem, size = 0x12000, scoped, tag = 'internal scratch']
  %s0 = inlined_call_operand.hbm [shape: f32[8,8,32], index: 0, kind: input, shape index: {}]
  %s1 = inlined_call_operand.hbm [shape: f32[32,128], index: 1, kind: input, shape index: {}]
  %s2 = inlined_call_operand.hbm [shape: f32[8,32], index: 2, kind: output, shape index: {}]
  %s3 = sld [smem:[#allocation0]]
  $region26: #{tpu_custom_call.1} parent=0
    _
  %s5 = ssub.s32 1, %s3
  %s6 = scalar_select 0, %s5, %s3
  $region1: #{tpu_custom_call.1} parent=0
    #allocation2 [shape = 'u8[32768]{0}', space=vmem, size = 0x8000, scoped, tag = 'input window, operand 0, single buffered']
    #allocation3 [shape = 's32[1]{0}', space=sflag, size = 0x4, scoped, tag = 'scoped memory for tpu_custom_call.1']
    #allocation4 [shape = 's32[1]{0}', space=sflag, size = 0x4, scoped, tag = 'scoped memory for tpu_custom_call.1']
    #allocation5 [shape = 'u8[16384]{0}', space=vmem, size = 0x4000, scoped, tag = 'input window, operand 1, single buffered']
    #allocation6 [shape = 's32[1]{0}', space=sflag, size = 0x4, scoped, tag = 'scoped memory for tpu_custom_call.1']
    #allocation7 [shape = 'u8[4096]{0}', space=vmem, size = 0x1000, scoped, tag = 'output window, operand 0, single buffered']
    %7 = vsyncpa [#allocation3], 0
    %8 = vsyncpa [#allocation6], 0
    %9 = vsyncpa [#allocation4], 0
    // Predicated region
    $region2: #{tpu_custom_call.1} parent=1 // pred_check
      _
    $region3: #{tpu_custom_call.1} parent=1 // pred_check_branch
      %11 = sbr.rel (0) target = $region5
    $region4: #{tpu_custom_call.1} parent=1 // pred_region
      %s13 = ssub.s32 1024, 1024
      %14 = vsyncadd [#allocation3], %s13
      %s15 = sshll.u32 [#allocation2], 4
      %s16 = int_to_ptr.vmem [resolvable:$true] %s15
      %21 = dma.hbm_to_vmem [thread:$0]  %s0, 1024, %s16, [#allocation3], 128, 128, 8
    $region5: #{tpu_custom_call.1} parent=1 // pred_fallthru
      _
    // Predicated region
    $region6: #{tpu_custom_call.1} parent=1 // pred_check
      _
    $region7: #{tpu_custom_call.1} parent=1 // pred_check_branch
      %23 = sbr.rel (0) target = $region9
    $region8: #{tpu_custom_call.1} parent=1 // pred_region
      %s25 = ssub.s32 512, 512
      %26 = vsyncadd [#allocation6], %s25
      %s27 = sshll.u32 [#allocation5], 4
      %s28 = int_to_ptr.vmem [resolvable:$true] %s27
      %33 = dma.hbm_to_vmem [thread:$0]  %s1, 512, %s28, [#allocation6], 128, 128, 8
    $region9: #{tpu_custom_call.1} parent=1 // pred_fallthru
      _
    // Predicated region
    $region10: #{tpu_custom_call.1} parent=1 // pred_check
      _
    $region11: #{tpu_custom_call.1} parent=1 // pred_check_branch
      %35 = sbr.rel (0) target = $region13
    $region12: #{tpu_custom_call.1} parent=1 // pred_region
      %36 = dma.done [#allocation3], 1024
    $region13: #{tpu_custom_call.1} parent=1 // pred_fallthru
      _
    // Predicated region
    $region14: #{tpu_custom_call.1} parent=1 // pred_check
      _
    $region15: #{tpu_custom_call.1} parent=1 // pred_check_branch
      %38 = sbr.rel (0) target = $region17
    $region16: #{tpu_custom_call.1} parent=1 // pred_region
      %39 = dma.done [#allocation6], 512
    $region17: #{tpu_custom_call.1} parent=1 // pred_fallthru
      _
    %v40 = vld [vmem:[#allocation2] sm:$0xff]
    %v41 = vld [vmem:[#allocation2 + $0x8] sm:$0xff]
    %v42 = vld [vmem:[#allocation2 + $0x10] sm:$0xff]
    %v43 = vld [vmem:[#allocation2 + $0x18] sm:$0xff]
    %v44 = vld [vmem:[#allocation2 + $0x20] sm:$0xff]
    %v45 = vld [vmem:[#allocation2 + $0x28] sm:$0xff]
    %v46 = vld [vmem:[#allocation2 + $0x30] sm:$0xff]
    %v47 = vld [vmem:[#allocation2 + $0x38] sm:$0xff]
    %v48 = vld [vmem:[#allocation5] sm:$0xff]
    %v49 = vld [vmem:[#allocation5 + $0x8] sm:$0xff]
    %v50 = vld [vmem:[#allocation5 + $0x10] sm:$0xff]
    %v51 = vld [vmem:[#allocation5 + $0x18] sm:$0xff]
    %vm52 = vcmask 261120
    %v54 = vsel %vm52, %v40, 0
    %v57 = vsel %vm52, %v41, 0
    %v60 = vsel %vm52, %v42, 0
    %v63 = vsel %vm52, %v43, 0
    %v66 = vsel %vm52, %v44, 0
    %v69 = vsel %vm52, %v45, 0
    %v72 = vsel %vm52, %v46, 0
    %v75 = vsel %vm52, %v47, 0
    %77 = vmatprep.subr.mxu0 0.0
    %78 = vmatpush1.msra.mxu0 %v48
    %79 = vmatprep.subr.mxu0 0.0
    %80 = vmatpush1.msra.mxu0 %v49
    %81 = vmatprep.subr.mxu0 0.0
    %82 = vmatpush1.msra.mxu0 %v50
    %83 = vmatprep.subr.mxu0 0.0
    %84 = vmatpush1.msra.mxu0 %v51
    %85 = vmatprep.subr.mxu0 0.0
    %86 = vmatpush1.msra.mxu0 0.0
    %87 = vmatprep.subr.mxu0 0.0
    %88 = vmatpush1.msra.mxu0 0.0
    %89 = vmatprep.subr.mxu0 0.0
    %90 = vmatpush1.msra.mxu0 0.0
    %91 = vmatprep.subr.mxu0 0.0
    %92 = vmatpush1.msra.mxu0 0.0
    %93 = vmatprep.subr.mxu0 0.0
    %94 = vmatpush1.msra.mxu0 0.0
    %95 = vmatprep.subr.mxu0 0.0
    %96 = vmatpush1.msra.mxu0 0.0
    %97 = vmatprep.subr.mxu0 0.0
    %98 = vmatpush1.msra.mxu0 0.0
    %99 = vmatprep.subr.mxu0 0.0
    %100 = vmatpush1.msra.mxu0 0.0
    %101 = vmatprep.subr.mxu0 0.0
    %102 = vmatpush1.msra.mxu0 0.0
    %103 = vmatprep.subr.mxu0 0.0
    %104 = vmatpush1.msra.mxu0 0.0
    %105 = vmatprep.subr.mxu0 0.0
    %106 = vmatpush1.msra.mxu0 0.0
    %107 = vmatprep.subr.mxu0 0.0
    %108 = vmatpush1.msra.mxu0 0.0
    %109 = vmatprep.subr.mxu0 0.0
    %110 = vmatpush1.msra.mxu0 0.0
    %111 = vmatprep.subr.mxu0 0.0
    %112 = vmatpush1.msra.mxu0 0.0
    %113 = vmatprep.subr.mxu0 0.0
    %114 = vmatpush1.msra.mxu0 0.0
    %115 = vmatprep.subr.mxu0 0.0
    %116 = vmatpush1.msra.mxu0 0.0
    %117 = vmatprep.subr.mxu0 0.0
    %118 = vmatpush1.msra.mxu0 0.0
    %119 = vmatprep.subr.mxu0 0.0
    %120 = vmatpush1.msra.mxu0 0.0
    %121 = vmatprep.subr.mxu0 0.0
    %122 = vmatpush1.msra.mxu0 0.0
    %123 = vmatprep.subr.mxu0 0.0
    %124 = vmatpush1.msra.mxu0 0.0
    %125 = vmatprep.subr.mxu0 0.0
    %126 = vmatpush1.msra.mxu0 0.0
    %127 = vmatprep.subr.mxu0 0.0
    %128 = vmatpush1.msra.mxu0 0.0
    %129 = vmatprep.subr.mxu0 0.0
    %130 = vmatpush1.msra.mxu0 0.0
    %131 = vmatprep.subr.mxu0 0.0
    %132 = vmatpush1.msra.mxu0 0.0
    %133 = vmatprep.subr.mxu0 0.0
    %134 = vmatpush1.msra.mxu0 0.0
    %135 = vmatprep.subr.mxu0 0.0
    %136 = vmatpush1.msra.mxu0 0.0
    %137 = vmatprep.subr.mxu0 0.0
    %138 = vmatpush1.msra.mxu0 0.0
    %139 = vmatprep.subr.mxu0 0.0
    %140 = vmatpush1.msra.mxu0 0.0
    %141 = vmatprep.mubr.f32.mxu0 0.0
    %142 = vmatmul.mubr.f32.gmra.mrb[0].mxu0 %v54
    %v143 = vpop.f32.mrb[0].mxu0
    %v144 = vadd.f32 0.0, %v143
    %v145 = vpop.f32.mrb[0].mxu0
    %146 = vmatprep.mubr.f32.mxu0 0.0
    %147 = vmatmul.mubr.f32.gmra.mrb[0].mxu0 %v57
    %v148 = vpop.f32.mrb[0].mxu0
    %v149 = vadd.f32 0.0, %v148
    %v150 = vpop.f32.mrb[0].mxu0
    %151 = vmatprep.mubr.f32.mxu0 0.0
    %152 = vmatmul.mubr.f32.gmra.mrb[0].mxu0 %v60
    %v153 = vpop.f32.mrb[0].mxu0
    %v154 = vadd.f32 0.0, %v153
    %v155 = vpop.f32.mrb[0].mxu0
    %156 = vmatprep.mubr.f32.mxu0 0.0
    %157 = vmatmul.mubr.f32.gmra.mrb[0].mxu0 %v63
    %v158 = vpop.f32.mrb[0].mxu0
    %v159 = vadd.f32 0.0, %v158
    %v160 = vpop.f32.mrb[0].mxu0
    %161 = vmatprep.mubr.f32.mxu0 0.0
    %162 = vmatmul.mubr.f32.gmra.mrb[0].mxu0 %v66
    %v163 = vpop.f32.mrb[0].mxu0
    %v164 = vadd.f32 0.0, %v163
    %v165 = vpop.f32.mrb[0].mxu0
    %166 = vmatprep.mubr.f32.mxu0 0.0
    %167 = vmatmul.mubr.f32.gmra.mrb[0].mxu0 %v69
    %v168 = vpop.f32.mrb[0].mxu0
    %v169 = vadd.f32 0.0, %v168
    %v170 = vpop.f32.mrb[0].mxu0
    %171 = vmatprep.mubr.f32.mxu0 0.0
    %172 = vmatmul.mubr.f32.gmra.mrb[0].mxu0 %v72
    %v173 = vpop.f32.mrb[0].mxu0
    %v174 = vadd.f32 0.0, %v173
    %v175 = vpop.f32.mrb[0].mxu0
    %176 = vmatprep.mubr.f32.mxu0 0.0
    %177 = vmatmul.mubr.f32.gmra.mrb[0].mxu0 %v75
    %v178 = vpop.f32.mrb[0].mxu0
    %v179 = vadd.f32 0.0, %v178
    %v180 = vpop.f32.mrb[0].mxu0
    %181 = vdwg.mxu0
    %190 = vrot.lane.b32.xlu0 %v144, 96
    %v191 = vpop.permute.xlu0 %190
    %192 = vrot.lane.b32.xlu0 %v149, 96
    %v193 = vpop.permute.xlu0 %192
    %194 = vrot.lane.b32.xlu0 %v154, 96
    %v195 = vpop.permute.xlu0 %194
    %196 = vrot.lane.b32.xlu0 %v159, 96
    %v197 = vpop.permute.xlu0 %196
    %198 = vrot.lane.b32.xlu0 %v164, 96
    %v199 = vpop.permute.xlu0 %198
    %200 = vrot.lane.b32.xlu0 %v169, 96
    %v201 = vpop.permute.xlu0 %200
    %202 = vrot.lane.b32.xlu0 %v174, 96
    %v203 = vpop.permute.xlu0 %202
    %204 = vrot.lane.b32.xlu0 %v179, 96
    %v205 = vpop.permute.xlu0 %204
    %206 = vrot.lane.b32.xlu0 %v144, 64
    %v207 = vpop.permute.xlu0 %206
    %208 = vrot.lane.b32.xlu0 %v149, 64
    %v209 = vpop.permute.xlu0 %208
    %210 = vrot.lane.b32.xlu0 %v154, 64
    %v211 = vpop.permute.xlu0 %210
    %212 = vrot.lane.b32.xlu0 %v159, 64
    %v213 = vpop.permute.xlu0 %212
    %214 = vrot.lane.b32.xlu0 %v164, 64
    %v215 = vpop.permute.xlu0 %214
    %216 = vrot.lane.b32.xlu0 %v169, 64
    %v217 = vpop.permute.xlu0 %216
    %218 = vrot.lane.b32.xlu0 %v174, 64
    %v219 = vpop.permute.xlu0 %218
    %220 = vrot.lane.b32.xlu0 %v179, 64
    %v221 = vpop.permute.xlu0 %220
    %222 = vrot.lane.b32.xlu0 %v144, 32
    %v223 = vpop.permute.xlu0 %222
    %224 = vrot.lane.b32.xlu0 %v149, 32
    %v225 = vpop.permute.xlu0 %224
    %226 = vrot.lane.b32.xlu0 %v154, 32
    %v227 = vpop.permute.xlu0 %226
    %228 = vrot.lane.b32.xlu0 %v159, 32
    %v229 = vpop.permute.xlu0 %228
    %230 = vrot.lane.b32.xlu0 %v164, 32
    %v231 = vpop.permute.xlu0 %230
    %232 = vrot.lane.b32.xlu0 %v169, 32
    %v233 = vpop.permute.xlu0 %232
    %234 = vrot.lane.b32.xlu0 %v174, 32
    %v235 = vpop.permute.xlu0 %234
    %236 = vrot.lane.b32.xlu0 %v179, 32
    %v237 = vpop.permute.xlu0 %236
    %v238 = vsel %vm52, %v144, 0
    %v240 = vsel %vm52, %v191, 0
    %v242 = vsel %vm52, %v207, 0
    %v244 = vsel %vm52, %v223, 0
    %246 = vmatprep.subr.mxu0 0.0
    %247 = vmatpush1.xpose.msra.mxu0 %v54
    %248 = vmatprep.subr.mxu0 0.0
    %249 = vmatpush1.xpose.msra.mxu0 0.0
    %250 = vmatprep.subr.mxu0 0.0
    %251 = vmatpush1.xpose.msra.mxu0 0.0
    %252 = vmatprep.subr.mxu0 0.0
    %253 = vmatpush1.xpose.msra.mxu0 0.0
    %254 = vmatprep.subr.mxu0 0.0
    %255 = vmatpush1.xpose.msra.mxu0 0.0
    %256 = vmatprep.subr.mxu0 0.0
    %257 = vmatpush1.xpose.msra.mxu0 0.0
    %258 = vmatprep.subr.mxu0 0.0
    %259 = vmatpush1.xpose.msra.mxu0 0.0
    %260 = vmatprep.subr.mxu0 0.0
    %261 = vmatpush1.xpose.msra.mxu0 0.0
    %262 = vmatprep.subr.mxu0 0.0
    %263 = vmatpush1.xpose.msra.mxu0 0.0
    %264 = vmatprep.subr.mxu0 0.0
    %265 = vmatpush1.xpose.msra.mxu0 0.0
    %266 = vmatprep.subr.mxu0 0.0
    %267 = vmatpush1.xpose.msra.mxu0 0.0
    %268 = vmatprep.subr.mxu0 0.0
    %269 = vmatpush1.xpose.msra.mxu0 0.0
    %270 = vmatprep.subr.mxu0 0.0
    %271 = vmatpush1.xpose.msra.mxu0 0.0
    %272 = vmatprep.subr.mxu0 0.0
    %273 = vmatpush1.xpose.msra.mxu0 0.0
    %274 = vmatprep.subr.mxu0 0.0
    %275 = vmatpush1.xpose.msra.mxu0 0.0
    %276 = vmatprep.subr.mxu0 0.0
    %277 = vmatpush1.xpose.msra.mxu0 0.0
    %278 = vmatprep.subr.mxu0 0.0
    %279 = vmatpush1.xpose.msra.mxu0 0.0
    %280 = vmatprep.subr.mxu0 0.0
    %281 = vmatpush1.xpose.msra.mxu0 0.0
    %282 = vmatprep.subr.mxu0 0.0
    %283 = vmatpush1.xpose.msra.mxu0 0.0
    %284 = vmatprep.subr.mxu0 0.0
    %285 = vmatpush1.xpose.msra.mxu0 0.0
    %286 = vmatprep.subr.mxu0 0.0
    %287 = vmatpush1.xpose.msra.mxu0 0.0
    %288 = vmatprep.subr.mxu0 0.0
    %289 = vmatpush1.xpose.msra.mxu0 0.0
    %290 = vmatprep.subr.mxu0 0.0
    %291 = vmatpush1.xpose.msra.mxu0 0.0
    %292 = vmatprep.subr.mxu0 0.0
    %293 = vmatpush1.xpose.msra.mxu0 0.0
    %294 = vmatprep.subr.mxu0 0.0
    %295 = vmatpush1.xpose.msra.mxu0 0.0
    %296 = vmatprep.subr.mxu0 0.0
    %297 = vmatpush1.xpose.msra.mxu0 0.0
    %298 = vmatprep.subr.mxu0 0.0
    %299 = vmatpush1.xpose.msra.mxu0 0.0
    %300 = vmatprep.subr.mxu0 0.0
    %301 = vmatpush1.xpose.msra.mxu0 0.0
    %302 = vmatprep.subr.mxu0 0.0
    %303 = vmatpush1.xpose.msra.mxu0 0.0
    %304 = vmatprep.subr.mxu0 0.0
    %305 = vmatpush1.xpose.msra.mxu0 0.0
    %306 = vmatprep.subr.mxu0 0.0
    %307 = vmatpush1.xpose.msra.mxu0 0.0
    %308 = vmatprep.subr.mxu0 0.0
    %309 = vmatpush1.xpose.msra.mxu0 0.0
    %310 = vmatprep.mubr.f32.mxu0 0.0
    %311 = vmatmul.mubr.f32.gmra.mrb[0].mxu0 %v238
    %v312 = vpop.f32.mrb[0].mxu0
    %v313 = vadd.f32 0.0, %v312
    %v314 = vpop.f32.mrb[0].mxu0
    %315 = vmatprep.mubr.f32.mxu0 0.0
    %316 = vmatmul.mubr.f32.gmra.mrb[0].mxu0 %v240
    %v317 = vpop.f32.mrb[0].mxu0
    %v318 = vadd.f32 0.0, %v317
    %v319 = vpop.f32.mrb[0].mxu0
    %320 = vmatprep.mubr.f32.mxu0 0.0
    %321 = vmatmul.mubr.f32.gmra.mrb[0].mxu0 %v242
    %v322 = vpop.f32.mrb[0].mxu0
    %v323 = vadd.f32 0.0, %v322
    %v324 = vpop.f32.mrb[0].mxu0
    %325 = vmatprep.mubr.f32.mxu0 0.0
    %326 = vmatmul.mubr.f32.gmra.mrb[0].mxu0 %v244
    %v327 = vpop.f32.mrb[0].mxu0
    %v328 = vadd.f32 0.0, %v327
    %v329 = vpop.f32.mrb[0].mxu0
    %330 = vdwg.mxu0
    %v331 = vsel %vm52, %v149, 0
    %v333 = vsel %vm52, %v193, 0
    %v335 = vsel %vm52, %v209, 0
    %v337 = vsel %vm52, %v225, 0
    %339 = vmatprep.subr.mxu0 0.0
    %340 = vmatpush1.xpose.msra.mxu0 %v57
    %341 = vmatprep.subr.mxu0 0.0
    %342 = vmatpush1.xpose.msra.mxu0 0.0
    %343 = vmatprep.subr.mxu0 0.0
    %344 = vmatpush1.xpose.msra.mxu0 0.0
    %345 = vmatprep.subr.mxu0 0.0
    %346 = vmatpush1.xpose.msra.mxu0 0.0
    %347 = vmatprep.subr.mxu0 0.0
    %348 = vmatpush1.xpose.msra.mxu0 0.0
    %349 = vmatprep.subr.mxu0 0.0
    %350 = vmatpush1.xpose.msra.mxu0 0.0
    %351 = vmatprep.subr.mxu0 0.0
    %352 = vmatpush1.xpose.msra.mxu0 0.0
    %353 = vmatprep.subr.mxu0 0.0
    %354 = vmatpush1.xpose.msra.mxu0 0.0
    %355 = vmatprep.subr.mxu0 0.0
    %356 = vmatpush1.xpose.msra.mxu0 0.0
    %357 = vmatprep.subr.mxu0 0.0
    %358 = vmatpush1.xpose.msra.mxu0 0.0
    %359 = vmatprep.subr.mxu0 0.0
    %360 = vmatpush1.xpose.msra.mxu0 0.0
    %361 = vmatprep.subr.mxu0 0.0
    %362 = vmatpush1.xpose.msra.mxu0 0.0
    %363 = vmatprep.subr.mxu0 0.0
    %364 = vmatpush1.xpose.msra.mxu0 0.0
    %365 = vmatprep.subr.mxu0 0.0
    %366 = vmatpush1.xpose.msra.mxu0 0.0
    %367 = vmatprep.subr.mxu0 0.0
    %368 = vmatpush1.xpose.msra.mxu0 0.0
    %369 = vmatprep.subr.mxu0 0.0
    %370 = vmatpush1.xpose.msra.mxu0 0.0
    %371 = vmatprep.subr.mxu0 0.0
    %372 = vmatpush1.xpose.msra.mxu0 0.0
    %373 = vmatprep.subr.mxu0 0.0
    %374 = vmatpush1.xpose.msra.mxu0 0.0
    %375 = vmatprep.subr.mxu0 0.0
    %376 = vmatpush1.xpose.msra.mxu0 0.0
    %377 = vmatprep.subr.mxu0 0.0
    %378 = vmatpush1.xpose.msra.mxu0 0.0
    %379 = vmatprep.subr.mxu0 0.0
    %380 = vmatpush1.xpose.msra.mxu0 0.0
    %381 = vmatprep.subr.mxu0 0.0
    %382 = vmatpush1.xpose.msra.mxu0 0.0
    %383 = vmatprep.subr.mxu0 0.0
    %384 = vmatpush1.xpose.msra.mxu0 0.0
    %385 = vmatprep.subr.mxu0 0.0
    %386 = vmatpush1.xpose.msra.mxu0 0.0
    %387 = vmatprep.subr.mxu0 0.0
    %388 = vmatpush1.xpose.msra.mxu0 0.0
    %389 = vmatprep.subr.mxu0 0.0
    %390 = vmatpush1.xpose.msra.mxu0 0.0
    %391 = vmatprep.subr.mxu0 0.0
    %392 = vmatpush1.xpose.msra.mxu0 0.0
    %393 = vmatprep.subr.mxu0 0.0
    %394 = vmatpush1.xpose.msra.mxu0 0.0
    %395 = vmatprep.subr.mxu0 0.0
    %396 = vmatpush1.xpose.msra.mxu0 0.0
    %397 = vmatprep.subr.mxu0 0.0
    %398 = vmatpush1.xpose.msra.mxu0 0.0
    %399 = vmatprep.subr.mxu0 0.0
    %400 = vmatpush1.xpose.msra.mxu0 0.0
    %401 = vmatprep.subr.mxu0 0.0
    %402 = vmatpush1.xpose.msra.mxu0 0.0
    %403 = vmatprep.mubr.f32.mxu0 0.0
    %404 = vmatmul.mubr.f32.gmra.mrb[0].mxu0 %v331
    %v405 = vpop.f32.mrb[0].mxu0
    %v406 = vadd.f32 0.0, %v405
    %v407 = vpop.f32.mrb[0].mxu0
    %408 = vmatprep.mubr.f32.mxu0 0.0
    %409 = vmatmul.mubr.f32.gmra.mrb[0].mxu0 %v333
    %v410 = vpop.f32.mrb[0].mxu0
    %v411 = vadd.f32 0.0, %v410
    %v412 = vpop.f32.mrb[0].mxu0
    %413 = vmatprep.mubr.f32.mxu0 0.0
    %414 = vmatmul.mubr.f32.gmra.mrb[0].mxu0 %v335
    %v415 = vpop.f32.mrb[0].mxu0
    %v416 = vadd.f32 0.0, %v415
    %v417 = vpop.f32.mrb[0].mxu0
    %418 = vmatprep.mubr.f32.mxu0 0.0
    %419 = vmatmul.mubr.f32.gmra.mrb[0].mxu0 %v337
    %v420 = vpop.f32.mrb[0].mxu0
    %v421 = vadd.f32 0.0, %v420
    %v422 = vpop.f32.mrb[0].mxu0
    %423 = vdwg.mxu0
    %v424 = vsel %vm52, %v154, 0
    %v426 = vsel %vm52, %v195, 0
    %v428 = vsel %vm52, %v211, 0
    %v430 = vsel %vm52, %v227, 0
    %432 = vmatprep.subr.mxu0 0.0
    %433 = vmatpush1.xpose.msra.mxu0 %v60
    %434 = vmatprep.subr.mxu0 0.0
    %435 = vmatpush1.xpose.msra.mxu0 0.0
    %436 = vmatprep.subr.mxu0 0.0
    %437 = vmatpush1.xpose.msra.mxu0 0.0
    %438 = vmatprep.subr.mxu0 0.0
    %439 = vmatpush1.xpose.msra.mxu0 0.0
    %440 = vmatprep.subr.mxu0 0.0
    %441 = vmatpush1.xpose.msra.mxu0 0.0
    %442 = vmatprep.subr.mxu0 0.0
    %443 = vmatpush1.xpose.msra.mxu0 0.0
    %444 = vmatprep.subr.mxu0 0.0
    %445 = vmatpush1.xpose.msra.mxu0 0.0
    %446 = vmatprep.subr.mxu0 0.0
    %447 = vmatpush1.xpose.msra.mxu0 0.0
    %448 = vmatprep.subr.mxu0 0.0
    %449 = vmatpush1.xpose.msra.mxu0 0.0
    %450 = vmatprep.subr.mxu0 0.0
    %451 = vmatpush1.xpose.msra.mxu0 0.0
    %452 = vmatprep.subr.mxu0 0.0
    %453 = vmatpush1.xpose.msra.mxu0 0.0
    %454 = vmatprep.subr.mxu0 0.0
    %455 = vmatpush1.xpose.msra.mxu0 0.0
    %456 = vmatprep.subr.mxu0 0.0
    %457 = vmatpush1.xpose.msra.mxu0 0.0
    %458 = vmatprep.subr.mxu0 0.0
    %459 = vmatpush1.xpose.msra.mxu0 0.0
    %460 = vmatprep.subr.mxu0 0.0
    %461 = vmatpush1.xpose.msra.mxu0 0.0
    %462 = vmatprep.subr.mxu0 0.0
    %463 = vmatpush1.xpose.msra.mxu0 0.0
    %464 = vmatprep.subr.mxu0 0.0
    %465 = vmatpush1.xpose.msra.mxu0 0.0
    %466 = vmatprep.subr.mxu0 0.0
    %467 = vmatpush1.xpose.msra.mxu0 0.0
    %468 = vmatprep.subr.mxu0 0.0
    %469 = vmatpush1.xpose.msra.mxu0 0.0
    %470 = vmatprep.subr.mxu0 0.0
    %471 = vmatpush1.xpose.msra.mxu0 0.0
    %472 = vmatprep.subr.mxu0 0.0
    %473 = vmatpush1.xpose.msra.mxu0 0.0
    %474 = vmatprep.subr.mxu0 0.0
    %475 = vmatpush1.xpose.msra.mxu0 0.0
    %476 = vmatprep.subr.mxu0 0.0
    %477 = vmatpush1.xpose.msra.mxu0 0.0
    %478 = vmatprep.subr.mxu0 0.0
    %479 = vmatpush1.xpose.msra.mxu0 0.0
    %480 = vmatprep.subr.mxu0 0.0
    %481 = vmatpush1.xpose.msra.mxu0 0.0
    %482 = vmatprep.subr.mxu0 0.0
    %483 = vmatpush1.xpose.msra.mxu0 0.0
    %484 = vmatprep.subr.mxu0 0.0
    %485 = vmatpush1.xpose.msra.mxu0 0.0
    %486 = vmatprep.subr.mxu0 0.0
    %487 = vmatpush1.xpose.msra.mxu0 0.0
    %488 = vmatprep.subr.mxu0 0.0
    %489 = vmatpush1.xpose.msra.mxu0 0.0
    %490 = vmatprep.subr.mxu0 0.0
    %491 = vmatpush1.xpose.msra.mxu0 0.0
    %492 = vmatprep.subr.mxu0 0.0
    %493 = vmatpush1.xpose.msra.mxu0 0.0
    %494 = vmatprep.subr.mxu0 0.0
    %495 = vmatpush1.xpose.msra.mxu0 0.0
    %496 = vmatprep.mubr.f32.mxu0 0.0
    %497 = vmatmul.mubr.f32.gmra.mrb[0].mxu0 %v424
    %v498 = vpop.f32.mrb[0].mxu0
    %v499 = vadd.f32 0.0, %v498
    %v500 = vpop.f32.mrb[0].mxu0
    %501 = vmatprep.mubr.f32.mxu0 0.0
    %502 = vmatmul.mubr.f32.gmra.mrb[0].mxu0 %v426
    %v503 = vpop.f32.mrb[0].mxu0
    %v504 = vadd.f32 0.0, %v503
    %v505 = vpop.f32.mrb[0].mxu0
    %506 = vmatprep.mubr.f32.mxu0 0.0
    %507 = vmatmul.mubr.f32.gmra.mrb[0].mxu0 %v428
    %v508 = vpop.f32.mrb[0].mxu0
    %v509 = vadd.f32 0.0, %v508
    %v510 = vpop.f32.mrb[0].mxu0
    %511 = vmatprep.mubr.f32.mxu0 0.0
    %512 = vmatmul.mubr.f32.gmra.mrb[0].mxu0 %v430
    %v513 = vpop.f32.mrb[0].mxu0
    %v514 = vadd.f32 0.0, %v513
    %v515 = vpop.f32.mrb[0].mxu0
    %516 = vdwg.mxu0
    %v517 = vsel %vm52, %v159, 0
    %v519 = vsel %vm52, %v197, 0
    %v521 = vsel %vm52, %v213, 0
    %v523 = vsel %vm52, %v229, 0
    %525 = vmatprep.subr.mxu0 0.0
    %526 = vmatpush1.xpose.msra.mxu0 %v63
    %527 = vmatprep.subr.mxu0 0.0
    %528 = vmatpush1.xpose.msra.mxu0 0.0
    %529 = vmatprep.subr.mxu0 0.0
    %530 = vmatpush1.xpose.msra.mxu0 0.0
    %531 = vmatprep.subr.mxu0 0.0
    %532 = vmatpush1.xpose.msra.mxu0 0.0
    %533 = vmatprep.subr.mxu0 0.0
    %534 = vmatpush1.xpose.msra.mxu0 0.0
    %535 = vmatprep.subr.mxu0 0.0
    %536 = vmatpush1.xpose.msra.mxu0 0.0
    %537 = vmatprep.subr.mxu0 0.0
    %538 = vmatpush1.xpose.msra.mxu0 0.0
    %539 = vmatprep.subr.mxu0 0.0
    %540 = vmatpush1.xpose.msra.mxu0 0.0
    %541 = vmatprep.subr.mxu0 0.0
    %542 = vmatpush1.xpose.msra.mxu0 0.0
    %543 = vmatprep.subr.mxu0 0.0
    %544 = vmatpush1.xpose.msra.mxu0 0.0
    %545 = vmatprep.subr.mxu0 0.0
    %546 = vmatpush1.xpose.msra.mxu0 0.0
    %547 = vmatprep.subr.mxu0 0.0
    %548 = vmatpush1.xpose.msra.mxu0 0.0
    %549 = vmatprep.subr.mxu0 0.0
    %550 = vmatpush1.xpose.msra.mxu0 0.0
    %551 = vmatprep.subr.mxu0 0.0
    %552 = vmatpush1.xpose.msra.mxu0 0.0
    %553 = vmatprep.subr.mxu0 0.0
    %554 = vmatpush1.xpose.msra.mxu0 0.0
    %555 = vmatprep.subr.mxu0 0.0
    %556 = vmatpush1.xpose.msra.mxu0 0.0
    %557 = vmatprep.subr.mxu0 0.0
    %558 = vmatpush1.xpose.msra.mxu0 0.0
    %559 = vmatprep.subr.mxu0 0.0
    %560 = vmatpush1.xpose.msra.mxu0 0.0
    %561 = vmatprep.subr.mxu0 0.0
    %562 = vmatpush1.xpose.msra.mxu0 0.0
    %563 = vmatprep.subr.mxu0 0.0
    %564 = vmatpush1.xpose.msra.mxu0 0.0
    %565 = vmatprep.subr.mxu0 0.0
    %566 = vmatpush1.xpose.msra.mxu0 0.0
    %567 = vmatprep.subr.mxu0 0.0
    %568 = vmatpush1.xpose.msra.mxu0 0.0
    %569 = vmatprep.subr.mxu0 0.0
    %570 = vmatpush1.xpose.msra.mxu0 0.0
    %571 = vmatprep.subr.mxu0 0.0
    %572 = vmatpush1.xpose.msra.mxu0 0.0
    %573 = vmatprep.subr.mxu0 0.0
    %574 = vmatpush1.xpose.msra.mxu0 0.0
    %575 = vmatprep.subr.mxu0 0.0
    %576 = vmatpush1.xpose.msra.mxu0 0.0
    %577 = vmatprep.subr.mxu0 0.0
    %578 = vmatpush1.xpose.msra.mxu0 0.0
    %579 = vmatprep.subr.mxu0 0.0
    %580 = vmatpush1.xpose.msra.mxu0 0.0
    %581 = vmatprep.subr.mxu0 0.0
    %582 = vmatpush1.xpose.msra.mxu0 0.0
    %583 = vmatprep.subr.mxu0 0.0
    %584 = vmatpush1.xpose.msra.mxu0 0.0
    %585 = vmatprep.subr.mxu0 0.0
    %586 = vmatpush1.xpose.msra.mxu0 0.0
    %587 = vmatprep.subr.mxu0 0.0
    %588 = vmatpush1.xpose.msra.mxu0 0.0
    %589 = vmatprep.mubr.f32.mxu0 0.0
    %590 = vmatmul.mubr.f32.gmra.mrb[0].mxu0 %v517
    %v591 = vpop.f32.mrb[0].mxu0
    %v592 = vadd.f32 0.0, %v591
    %v593 = vpop.f32.mrb[0].mxu0
    %594 = vmatprep.mubr.f32.mxu0 0.0
    %595 = vmatmul.mubr.f32.gmra.mrb[0].mxu0 %v519
    %v596 = vpop.f32.mrb[0].mxu0
    %v597 = vadd.f32 0.0, %v596
    %v598 = vpop.f32.mrb[0].mxu0
    %599 = vmatprep.mubr.f32.mxu0 0.0
    %600 = vmatmul.mubr.f32.gmra.mrb[0].mxu0 %v521
    %v601 = vpop.f32.mrb[0].mxu0
    %v602 = vadd.f32 0.0, %v601
    %v603 = vpop.f32.mrb[0].mxu0
    %604 = vmatprep.mubr.f32.mxu0 0.0
    %605 = vmatmul.mubr.f32.gmra.mrb[0].mxu0 %v523
    %v606 = vpop.f32.mrb[0].mxu0
    %v607 = vadd.f32 0.0, %v606
    %v608 = vpop.f32.mrb[0].mxu0
    %609 = vdwg.mxu0
    %v610 = vsel %vm52, %v164, 0
    %v612 = vsel %vm52, %v199, 0
    %v614 = vsel %vm52, %v215, 0
    %v616 = vsel %vm52, %v231, 0
    %618 = vmatprep.subr.mxu0 0.0
    %619 = vmatpush1.xpose.msra.mxu0 %v66
    %620 = vmatprep.subr.mxu0 0.0
    %621 = vmatpush1.xpose.msra.mxu0 0.0
    %622 = vmatprep.subr.mxu0 0.0
    %623 = vmatpush1.xpose.msra.mxu0 0.0
    %624 = vmatprep.subr.mxu0 0.0
    %625 = vmatpush1.xpose.msra.mxu0 0.0
    %626 = vmatprep.subr.mxu0 0.0
    %627 = vmatpush1.xpose.msra.mxu0 0.0
    %628 = vmatprep.subr.mxu0 0.0
    %629 = vmatpush1.xpose.msra.mxu0 0.0
    %630 = vmatprep.subr.mxu0 0.0
    %631 = vmatpush1.xpose.msra.mxu0 0.0
    %632 = vmatprep.subr.mxu0 0.0
    %633 = vmatpush1.xpose.msra.mxu0 0.0
    %634 = vmatprep.subr.mxu0 0.0
    %635 = vmatpush1.xpose.msra.mxu0 0.0
    %636 = vmatprep.subr.mxu0 0.0
    %637 = vmatpush1.xpose.msra.mxu0 0.0
    %638 = vmatprep.subr.mxu0 0.0
    %639 = vmatpush1.xpose.msra.mxu0 0.0
    %640 = vmatprep.subr.mxu0 0.0
    %641 = vmatpush1.xpose.msra.mxu0 0.0
    %642 = vmatprep.subr.mxu0 0.0
    %643 = vmatpush1.xpose.msra.mxu0 0.0
    %644 = vmatprep.subr.mxu0 0.0
    %645 = vmatpush1.xpose.msra.mxu0 0.0
    %646 = vmatprep.subr.mxu0 0.0
    %647 = vmatpush1.xpose.msra.mxu0 0.0
    %648 = vmatprep.subr.mxu0 0.0
    %649 = vmatpush1.xpose.msra.mxu0 0.0
    %650 = vmatprep.subr.mxu0 0.0
    %651 = vmatpush1.xpose.msra.mxu0 0.0
    %652 = vmatprep.subr.mxu0 0.0
    %653 = vmatpush1.xpose.msra.mxu0 0.0
    %654 = vmatprep.subr.mxu0 0.0
    %655 = vmatpush1.xpose.msra.mxu0 0.0
    %656 = vmatprep.subr.mxu0 0.0
    %657 = vmatpush1.xpose.msra.mxu0 0.0
    %658 = vmatprep.subr.mxu0 0.0
    %659 = vmatpush1.xpose.msra.mxu0 0.0
    %660 = vmatprep.subr.mxu0 0.0
    %661 = vmatpush1.xpose.msra.mxu0 0.0
    %662 = vmatprep.subr.mxu0 0.0
    %663 = vmatpush1.xpose.msra.mxu0 0.0
    %664 = vmatprep.subr.mxu0 0.0
    %665 = vmatpush1.xpose.msra.mxu0 0.0
    %666 = vmatprep.subr.mxu0 0.0
    %667 = vmatpush1.xpose.msra.mxu0 0.0
    %668 = vmatprep.subr.mxu0 0.0
    %669 = vmatpush1.xpose.msra.mxu0 0.0
    %670 = vmatprep.subr.mxu0 0.0
    %671 = vmatpush1.xpose.msra.mxu0 0.0
    %672 = vmatprep.subr.mxu0 0.0
    %673 = vmatpush1.xpose.msra.mxu0 0.0
    %674 = vmatprep.subr.mxu0 0.0
    %675 = vmatpush1.xpose.msra.mxu0 0.0
    %676 = vmatprep.subr.mxu0 0.0
    %677 = vmatpush1.xpose.msra.mxu0 0.0
    %678 = vmatprep.subr.mxu0 0.0
    %679 = vmatpush1.xpose.msra.mxu0 0.0
    %680 = vmatprep.subr.mxu0 0.0
    %681 = vmatpush1.xpose.msra.mxu0 0.0
    %682 = vmatprep.mubr.f32.mxu0 0.0
    %683 = vmatmul.mubr.f32.gmra.mrb[0].mxu0 %v610
    %v684 = vpop.f32.mrb[0].mxu0
    %v685 = vadd.f32 0.0, %v684
    %v686 = vpop.f32.mrb[0].mxu0
    %687 = vmatprep.mubr.f32.mxu0 0.0
    %688 = vmatmul.mubr.f32.gmra.mrb[0].mxu0 %v612
    %v689 = vpop.f32.mrb[0].mxu0
    %v690 = vadd.f32 0.0, %v689
    %v691 = vpop.f32.mrb[0].mxu0
    %692 = vmatprep.mubr.f32.mxu0 0.0
    %693 = vmatmul.mubr.f32.gmra.mrb[0].mxu0 %v614
    %v694 = vpop.f32.mrb[0].mxu0
    %v695 = vadd.f32 0.0, %v694
    %v696 = vpop.f32.mrb[0].mxu0
    %697 = vmatprep.mubr.f32.mxu0 0.0
    %698 = vmatmul.mubr.f32.gmra.mrb[0].mxu0 %v616
    %v699 = vpop.f32.mrb[0].mxu0
    %v700 = vadd.f32 0.0, %v699
    %v701 = vpop.f32.mrb[0].mxu0
    %702 = vdwg.mxu0
    %v703 = vsel %vm52, %v169, 0
    %v705 = vsel %vm52, %v201, 0
    %v707 = vsel %vm52, %v217, 0
    %v709 = vsel %vm52, %v233, 0
    %711 = vmatprep.subr.mxu0 0.0
    %712 = vmatpush1.xpose.msra.mxu0 %v69
    %713 = vmatprep.subr.mxu0 0.0
    %714 = vmatpush1.xpose.msra.mxu0 0.0
    %715 = vmatprep.subr.mxu0 0.0
    %716 = vmatpush1.xpose.msra.mxu0 0.0
    %717 = vmatprep.subr.mxu0 0.0
    %718 = vmatpush1.xpose.msra.mxu0 0.0
    %719 = vmatprep.subr.mxu0 0.0
    %720 = vmatpush1.xpose.msra.mxu0 0.0
    %721 = vmatprep.subr.mxu0 0.0
    %722 = vmatpush1.xpose.msra.mxu0 0.0
    %723 = vmatprep.subr.mxu0 0.0
    %724 = vmatpush1.xpose.msra.mxu0 0.0
    %725 = vmatprep.subr.mxu0 0.0
    %726 = vmatpush1.xpose.msra.mxu0 0.0
    %727 = vmatprep.subr.mxu0 0.0
    %728 = vmatpush1.xpose.msra.mxu0 0.0
    %729 = vmatprep.subr.mxu0 0.0
    %730 = vmatpush1.xpose.msra.mxu0 0.0
    %731 = vmatprep.subr.mxu0 0.0
    %732 = vmatpush1.xpose.msra.mxu0 0.0
    %733 = vmatprep.subr.mxu0 0.0
    %734 = vmatpush1.xpose.msra.mxu0 0.0
    %735 = vmatprep.subr.mxu0 0.0
    %736 = vmatpush1.xpose.msra.mxu0 0.0
    %737 = vmatprep.subr.mxu0 0.0
    %738 = vmatpush1.xpose.msra.mxu0 0.0
    %739 = vmatprep.subr.mxu0 0.0
    %740 = vmatpush1.xpose.msra.mxu0 0.0
    %741 = vmatprep.subr.mxu0 0.0
    %742 = vmatpush1.xpose.msra.mxu0 0.0
    %743 = vmatprep.subr.mxu0 0.0
    %744 = vmatpush1.xpose.msra.mxu0 0.0
    %745 = vmatprep.subr.mxu0 0.0
    %746 = vmatpush1.xpose.msra.mxu0 0.0
    %747 = vmatprep.subr.mxu0 0.0
    %748 = vmatpush1.xpose.msra.mxu0 0.0
    %749 = vmatprep.subr.mxu0 0.0
    %750 = vmatpush1.xpose.msra.mxu0 0.0
    %751 = vmatprep.subr.mxu0 0.0
    %752 = vmatpush1.xpose.msra.mxu0 0.0
    %753 = vmatprep.subr.mxu0 0.0
    %754 = vmatpush1.xpose.msra.mxu0 0.0
    %755 = vmatprep.subr.mxu0 0.0
    %756 = vmatpush1.xpose.msra.mxu0 0.0
    %757 = vmatprep.subr.mxu0 0.0
    %758 = vmatpush1.xpose.msra.mxu0 0.0
    %759 = vmatprep.subr.mxu0 0.0
    %760 = vmatpush1.xpose.msra.mxu0 0.0
    %761 = vmatprep.subr.mxu0 0.0
    %762 = vmatpush1.xpose.msra.mxu0 0.0
    %763 = vmatprep.subr.mxu0 0.0
    %764 = vmatpush1.xpose.msra.mxu0 0.0
    %765 = vmatprep.subr.mxu0 0.0
    %766 = vmatpush1.xpose.msra.mxu0 0.0
    %767 = vmatprep.subr.mxu0 0.0
    %768 = vmatpush1.xpose.msra.mxu0 0.0
    %769 = vmatprep.subr.mxu0 0.0
    %770 = vmatpush1.xpose.msra.mxu0 0.0
    %771 = vmatprep.subr.mxu0 0.0
    %772 = vmatpush1.xpose.msra.mxu0 0.0
    %773 = vmatprep.subr.mxu0 0.0
    %774 = vmatpush1.xpose.msra.mxu0 0.0
    %775 = vmatprep.mubr.f32.mxu0 0.0
    %776 = vmatmul.mubr.f32.gmra.mrb[0].mxu0 %v703
    %v777 = vpop.f32.mrb[0].mxu0
    %v778 = vadd.f32 0.0, %v777
    %v779 = vpop.f32.mrb[0].mxu0
    %780 = vmatprep.mubr.f32.mxu0 0.0
    %781 = vmatmul.mubr.f32.gmra.mrb[0].mxu0 %v705
    %v782 = vpop.f32.mrb[0].mxu0
    %v783 = vadd.f32 0.0, %v782
    %v784 = vpop.f32.mrb[0].mxu0
    %785 = vmatprep.mubr.f32.mxu0 0.0
    %786 = vmatmul.mubr.f32.gmra.mrb[0].mxu0 %v707
    %v787 = vpop.f32.mrb[0].mxu0
    %v788 = vadd.f32 0.0, %v787
    %v789 = vpop.f32.mrb[0].mxu0
    %790 = vmatprep.mubr.f32.mxu0 0.0
    %791 = vmatmul.mubr.f32.gmra.mrb[0].mxu0 %v709
    %v792 = vpop.f32.mrb[0].mxu0
    %v793 = vadd.f32 0.0, %v792
    %v794 = vpop.f32.mrb[0].mxu0
    %795 = vdwg.mxu0
    %v796 = vsel %vm52, %v174, 0
    %v798 = vsel %vm52, %v203, 0
    %v800 = vsel %vm52, %v219, 0
    %v802 = vsel %vm52, %v235, 0
    %804 = vmatprep.subr.mxu0 0.0
    %805 = vmatpush1.xpose.msra.mxu0 %v72
    %806 = vmatprep.subr.mxu0 0.0
    %807 = vmatpush1.xpose.msra.mxu0 0.0
    %808 = vmatprep.subr.mxu0 0.0
    %809 = vmatpush1.xpose.msra.mxu0 0.0
    %810 = vmatprep.subr.mxu0 0.0
    %811 = vmatpush1.xpose.msra.mxu0 0.0
    %812 = vmatprep.subr.mxu0 0.0
    %813 = vmatpush1.xpose.msra.mxu0 0.0
    %814 = vmatprep.subr.mxu0 0.0
    %815 = vmatpush1.xpose.msra.mxu0 0.0
    %816 = vmatprep.subr.mxu0 0.0
    %817 = vmatpush1.xpose.msra.mxu0 0.0
    %818 = vmatprep.subr.mxu0 0.0
    %819 = vmatpush1.xpose.msra.mxu0 0.0
    %820 = vmatprep.subr.mxu0 0.0
    %821 = vmatpush1.xpose.msra.mxu0 0.0
    %822 = vmatprep.subr.mxu0 0.0
    %823 = vmatpush1.xpose.msra.mxu0 0.0
    %824 = vmatprep.subr.mxu0 0.0
    %825 = vmatpush1.xpose.msra.mxu0 0.0
    %826 = vmatprep.subr.mxu0 0.0
    %827 = vmatpush1.xpose.msra.mxu0 0.0
    %828 = vmatprep.subr.mxu0 0.0
    %829 = vmatpush1.xpose.msra.mxu0 0.0
    %830 = vmatprep.subr.mxu0 0.0
    %831 = vmatpush1.xpose.msra.mxu0 0.0
    %832 = vmatprep.subr.mxu0 0.0
    %833 = vmatpush1.xpose.msra.mxu0 0.0
    %834 = vmatprep.subr.mxu0 0.0
    %835 = vmatpush1.xpose.msra.mxu0 0.0
    %836 = vmatprep.subr.mxu0 0.0
    %837 = vmatpush1.xpose.msra.mxu0 0.0
    %838 = vmatprep.subr.mxu0 0.0
    %839 = vmatpush1.xpose.msra.mxu0 0.0
    %840 = vmatprep.subr.mxu0 0.0
    %841 = vmatpush1.xpose.msra.mxu0 0.0
    %842 = vmatprep.subr.mxu0 0.0
    %843 = vmatpush1.xpose.msra.mxu0 0.0
    %844 = vmatprep.subr.mxu0 0.0
    %845 = vmatpush1.xpose.msra.mxu0 0.0
    %846 = vmatprep.subr.mxu0 0.0
    %847 = vmatpush1.xpose.msra.mxu0 0.0
    %848 = vmatprep.subr.mxu0 0.0
    %849 = vmatpush1.xpose.msra.mxu0 0.0
    %850 = vmatprep.subr.mxu0 0.0
    %851 = vmatpush1.xpose.msra.mxu0 0.0
    %852 = vmatprep.subr.mxu0 0.0
    %853 = vmatpush1.xpose.msra.mxu0 0.0
    %854 = vmatprep.subr.mxu0 0.0
    %855 = vmatpush1.xpose.msra.mxu0 0.0
    %856 = vmatprep.subr.mxu0 0.0
    %857 = vmatpush1.xpose.msra.mxu0 0.0
    %858 = vmatprep.subr.mxu0 0.0
    %859 = vmatpush1.xpose.msra.mxu0 0.0
    %860 = vmatprep.subr.mxu0 0.0
    %861 = vmatpush1.xpose.msra.mxu0 0.0
    %862 = vmatprep.subr.mxu0 0.0
    %863 = vmatpush1.xpose.msra.mxu0 0.0
    %864 = vmatprep.subr.mxu0 0.0
    %865 = vmatpush1.xpose.msra.mxu0 0.0
    %866 = vmatprep.subr.mxu0 0.0
    %867 = vmatpush1.xpose.msra.mxu0 0.0
    %868 = vmatprep.mubr.f32.mxu0 0.0
    %869 = vmatmul.mubr.f32.gmra.mrb[0].mxu0 %v796
    %v870 = vpop.f32.mrb[0].mxu0
    %v871 = vadd.f32 0.0, %v870
    %v872 = vpop.f32.mrb[0].mxu0
    %873 = vmatprep.mubr.f32.mxu0 0.0
    %874 = vmatmul.mubr.f32.gmra.mrb[0].mxu0 %v798
    %v875 = vpop.f32.mrb[0].mxu0
    %v876 = vadd.f32 0.0, %v875
    %v877 = vpop.f32.mrb[0].mxu0
    %878 = vmatprep.mubr.f32.mxu0 0.0
    %879 = vmatmul.mubr.f32.gmra.mrb[0].mxu0 %v800
    %v880 = vpop.f32.mrb[0].mxu0
    %v881 = vadd.f32 0.0, %v880
    %v882 = vpop.f32.mrb[0].mxu0
    %883 = vmatprep.mubr.f32.mxu0 0.0
    %884 = vmatmul.mubr.f32.gmra.mrb[0].mxu0 %v802
    %v885 = vpop.f32.mrb[0].mxu0
    %v886 = vadd.f32 0.0, %v885
    %v887 = vpop.f32.mrb[0].mxu0
    %888 = vdwg.mxu0
    %v889 = vsel %vm52, %v179, 0
    %v891 = vsel %vm52, %v205, 0
    %v893 = vsel %vm52, %v221, 0
    %v895 = vsel %vm52, %v237, 0
    %897 = vmatprep.subr.mxu0 0.0
    %898 = vmatpush1.xpose.msra.mxu0 %v75
    %899 = vmatprep.subr.mxu0 0.0
    %900 = vmatpush1.xpose.msra.mxu0 0.0
    %901 = vmatprep.subr.mxu0 0.0
    %902 = vmatpush1.xpose.msra.mxu0 0.0
    %903 = vmatprep.subr.mxu0 0.0
    %904 = vmatpush1.xpose.msra.mxu0 0.0
    %905 = vmatprep.subr.mxu0 0.0
    %906 = vmatpush1.xpose.msra.mxu0 0.0
    %907 = vmatprep.subr.mxu0 0.0
    %908 = vmatpush1.xpose.msra.mxu0 0.0
    %909 = vmatprep.subr.mxu0 0.0
    %910 = vmatpush1.xpose.msra.mxu0 0.0
    %911 = vmatprep.subr.mxu0 0.0
    %912 = vmatpush1.xpose.msra.mxu0 0.0
    %913 = vmatprep.subr.mxu0 0.0
    %914 = vmatpush1.xpose.msra.mxu0 0.0
    %915 = vmatprep.subr.mxu0 0.0
    %916 = vmatpush1.xpose.msra.mxu0 0.0
    %917 = vmatprep.subr.mxu0 0.0
    %918 = vmatpush1.xpose.msra.mxu0 0.0
    %919 = vmatprep.subr.mxu0 0.0
    %920 = vmatpush1.xpose.msra.mxu0 0.0
    %921 = vmatprep.subr.mxu0 0.0
    %922 = vmatpush1.xpose.msra.mxu0 0.0
    %923 = vmatprep.subr.mxu0 0.0
    %924 = vmatpush1.xpose.msra.mxu0 0.0
    %925 = vmatprep.subr.mxu0 0.0
    %926 = vmatpush1.xpose.msra.mxu0 0.0
    %927 = vmatprep.subr.mxu0 0.0
    %928 = vmatpush1.xpose.msra.mxu0 0.0
    %929 = vmatprep.subr.mxu0 0.0
    %930 = vmatpush1.xpose.msra.mxu0 0.0
    %931 = vmatprep.subr.mxu0 0.0
    %932 = vmatpush1.xpose.msra.mxu0 0.0
    %933 = vmatprep.subr.mxu0 0.0
    %934 = vmatpush1.xpose.msra.mxu0 0.0
    %935 = vmatprep.subr.mxu0 0.0
    %936 = vmatpush1.xpose.msra.mxu0 0.0
    %937 = vmatprep.subr.mxu0 0.0
    %938 = vmatpush1.xpose.msra.mxu0 0.0
    %939 = vmatprep.subr.mxu0 0.0
    %940 = vmatpush1.xpose.msra.mxu0 0.0
    %941 = vmatprep.subr.mxu0 0.0
    %942 = vmatpush1.xpose.msra.mxu0 0.0
    %943 = vmatprep.subr.mxu0 0.0
    %944 = vmatpush1.xpose.msra.mxu0 0.0
    %945 = vmatprep.subr.mxu0 0.0
    %946 = vmatpush1.xpose.msra.mxu0 0.0
    %947 = vmatprep.subr.mxu0 0.0
    %948 = vmatpush1.xpose.msra.mxu0 0.0
    %949 = vmatprep.subr.mxu0 0.0
    %950 = vmatpush1.xpose.msra.mxu0 0.0
    %951 = vmatprep.subr.mxu0 0.0
    %952 = vmatpush1.xpose.msra.mxu0 0.0
    %953 = vmatprep.subr.mxu0 0.0
    %954 = vmatpush1.xpose.msra.mxu0 0.0
    %955 = vmatprep.subr.mxu0 0.0
    %956 = vmatpush1.xpose.msra.mxu0 0.0
    %957 = vmatprep.subr.mxu0 0.0
    %958 = vmatpush1.xpose.msra.mxu0 0.0
    %959 = vmatprep.subr.mxu0 0.0
    %960 = vmatpush1.xpose.msra.mxu0 0.0
    %961 = vmatprep.mubr.f32.mxu0 0.0
    %962 = vmatmul.mubr.f32.gmra.mrb[0].mxu0 %v889
    %v963 = vpop.f32.mrb[0].mxu0
    %v964 = vadd.f32 0.0, %v963
    %v965 = vpop.f32.mrb[0].mxu0
    %966 = vmatprep.mubr.f32.mxu0 0.0
    %967 = vmatmul.mubr.f32.gmra.mrb[0].mxu0 %v891
    %v968 = vpop.f32.mrb[0].mxu0
    %v969 = vadd.f32 0.0, %v968
    %v970 = vpop.f32.mrb[0].mxu0
    %971 = vmatprep.mubr.f32.mxu0 0.0
    %972 = vmatmul.mubr.f32.gmra.mrb[0].mxu0 %v893
    %v973 = vpop.f32.mrb[0].mxu0
    %v974 = vadd.f32 0.0, %v973
    %v975 = vpop.f32.mrb[0].mxu0
    %976 = vmatprep.mubr.f32.mxu0 0.0
    %977 = vmatmul.mubr.f32.gmra.mrb[0].mxu0 %v895
    %v978 = vpop.f32.mrb[0].mxu0
    %v979 = vadd.f32 0.0, %v978
    %v980 = vpop.f32.mrb[0].mxu0
    %981 = vdwg.mxu0
    %v982 = vmul.f32 %v313, 0.17677669
    %v983 = vmul.f32 %v318, 0.17677669
    %v984 = vmul.f32 %v323, 0.17677669
    %v985 = vmul.f32 %v328, 0.17677669
    %v986 = vmul.f32 %v406, 0.17677669
    %v987 = vmul.f32 %v411, 0.17677669
    %v988 = vmul.f32 %v416, 0.17677669
    %v989 = vmul.f32 %v421, 0.17677669
    %v990 = vmul.f32 %v499, 0.17677669
    %v991 = vmul.f32 %v504, 0.17677669
    %v992 = vmul.f32 %v509, 0.17677669
    %v993 = vmul.f32 %v514, 0.17677669
    %v994 = vmul.f32 %v592, 0.17677669
    %v995 = vmul.f32 %v597, 0.17677669
    %v996 = vmul.f32 %v602, 0.17677669
    %v997 = vmul.f32 %v607, 0.17677669
    %v998 = vmul.f32 %v685, 0.17677669
    %v999 = vmul.f32 %v690, 0.17677669
    %v1000 = vmul.f32 %v695, 0.17677669
    %v1001 = vmul.f32 %v700, 0.17677669
    %v1002 = vmul.f32 %v778, 0.17677669
    %v1003 = vmul.f32 %v783, 0.17677669
    %v1004 = vmul.f32 %v788, 0.17677669
    %v1005 = vmul.f32 %v793, 0.17677669
    %v1006 = vmul.f32 %v871, 0.17677669
    %v1007 = vmul.f32 %v876, 0.17677669
    %v1008 = vmul.f32 %v881, 0.17677669
    %v1009 = vmul.f32 %v886, 0.17677669
    %v1010 = vmul.f32 %v964, 0.17677669
    %v1011 = vmul.f32 %v969, 0.17677669
    %v1012 = vmul.f32 %v974, 0.17677669
    %v1013 = vmul.f32 %v979, 0.17677669
    %vm1014 = vcmask 64512
    %v1015 = vsel %vm1014, %v982, -inf
    %1016 = vmax.xlane.f32.xlu0 %v1015
    %v1017 = vpop.xlane.xlu0 %1016
    %v1018 = vsel %vm1014, %v983, -inf
    %1019 = vmax.xlane.f32.xlu0 %v1018
    %v1020 = vpop.xlane.xlu0 %1019
    %v1021 = vsel %vm1014, %v984, -inf
    %1022 = vmax.xlane.f32.xlu0 %v1021
    %v1023 = vpop.xlane.xlu0 %1022
    %v1024 = vsel %vm1014, %v985, -inf
    %1025 = vmax.xlane.f32.xlu0 %v1024
    %v1026 = vpop.xlane.xlu0 %1025
    %v1027 = vsel %vm1014, %v986, -inf
    %1028 = vmax.xlane.f32.xlu0 %v1027
    %v1029 = vpop.xlane.xlu0 %1028
    %v1030 = vsel %vm1014, %v987, -inf
    %1031 = vmax.xlane.f32.xlu0 %v1030
    %v1032 = vpop.xlane.xlu0 %1031
    %v1033 = vsel %vm1014, %v988, -inf
    %1034 = vmax.xlane.f32.xlu0 %v1033
    %v1035 = vpop.xlane.xlu0 %1034
    %v1036 = vsel %vm1014, %v989, -inf
    %1037 = vmax.xlane.f32.xlu0 %v1036
    %v1038 = vpop.xlane.xlu0 %1037
    %v1039 = vsel %vm1014, %v990, -inf
    %1040 = vmax.xlane.f32.xlu0 %v1039
    %v1041 = vpop.xlane.xlu0 %1040
    %v1042 = vsel %vm1014, %v991, -inf
    %1043 = vmax.xlane.f32.xlu0 %v1042
    %v1044 = vpop.xlane.xlu0 %1043
    %v1045 = vsel %vm1014, %v992, -inf
    %1046 = vmax.xlane.f32.xlu0 %v1045
    %v1047 = vpop.xlane.xlu0 %1046
    %v1048 = vsel %vm1014, %v993, -inf
    %1049 = vmax.xlane.f32.xlu0 %v1048
    %v1050 = vpop.xlane.xlu0 %1049
    %v1051 = vsel %vm1014, %v994, -inf
    %1052 = vmax.xlane.f32.xlu0 %v1051
    %v1053 = vpop.xlane.xlu0 %1052
    %v1054 = vsel %vm1014, %v995, -inf
    %1055 = vmax.xlane.f32.xlu0 %v1054
    %v1056 = vpop.xlane.xlu0 %1055
    %v1057 = vsel %vm1014, %v996, -inf
    %1058 = vmax.xlane.f32.xlu0 %v1057
    %v1059 = vpop.xlane.xlu0 %1058
    %v1060 = vsel %vm1014, %v997, -inf
    %1061 = vmax.xlane.f32.xlu0 %v1060
    %v1062 = vpop.xlane.xlu0 %1061
    %v1063 = vsel %vm1014, %v998, -inf
    %1064 = vmax.xlane.f32.xlu0 %v1063
    %v1065 = vpop.xlane.xlu0 %1064
    %v1066 = vsel %vm1014, %v999, -inf
    %1067 = vmax.xlane.f32.xlu0 %v1066
    %v1068 = vpop.xlane.xlu0 %1067
    %v1069 = vsel %vm1014, %v1000, -inf
    %1070 = vmax.xlane.f32.xlu0 %v1069
    %v1071 = vpop.xlane.xlu0 %1070
    %v1072 = vsel %vm1014, %v1001, -inf
    %1073 = vmax.xlane.f32.xlu0 %v1072
    %v1074 = vpop.xlane.xlu0 %1073
    %v1075 = vsel %vm1014, %v1002, -inf
    %1076 = vmax.xlane.f32.xlu0 %v1075
    %v1077 = vpop.xlane.xlu0 %1076
    %v1078 = vsel %vm1014, %v1003, -inf
    %1079 = vmax.xlane.f32.xlu0 %v1078
    %v1080 = vpop.xlane.xlu0 %1079
    %v1081 = vsel %vm1014, %v1004, -inf
    %1082 = vmax.xlane.f32.xlu0 %v1081
    %v1083 = vpop.xlane.xlu0 %1082
    %v1084 = vsel %vm1014, %v1005, -inf
    %1085 = vmax.xlane.f32.xlu0 %v1084
    %v1086 = vpop.xlane.xlu0 %1085
    %v1087 = vsel %vm1014, %v1006, -inf
    %1088 = vmax.xlane.f32.xlu0 %v1087
    %v1089 = vpop.xlane.xlu0 %1088
    %v1090 = vsel %vm1014, %v1007, -inf
    %1091 = vmax.xlane.f32.xlu0 %v1090
    %v1092 = vpop.xlane.xlu0 %1091
    %v1093 = vsel %vm1014, %v1008, -inf
    %1094 = vmax.xlane.f32.xlu0 %v1093
    %v1095 = vpop.xlane.xlu0 %1094
    %v1096 = vsel %vm1014, %v1009, -inf
    %1097 = vmax.xlane.f32.xlu0 %v1096
    %v1098 = vpop.xlane.xlu0 %1097
    %v1099 = vsel %vm1014, %v1010, -inf
    %1100 = vmax.xlane.f32.xlu0 %v1099
    %v1101 = vpop.xlane.xlu0 %1100
    %v1102 = vsel %vm1014, %v1011, -inf
    %1103 = vmax.xlane.f32.xlu0 %v1102
    %v1104 = vpop.xlane.xlu0 %1103
    %v1105 = vsel %vm1014, %v1012, -inf
    %1106 = vmax.xlane.f32.xlu0 %v1105
    %v1107 = vpop.xlane.xlu0 %1106
    %v1108 = vsel %vm1014, %v1013, -inf
    %1109 = vmax.xlane.f32.xlu0 %v1108
    %v1110 = vpop.xlane.xlu0 %1109
    %v1111 = vsub.f32 %v982, %v1017
    %v1112 = vsub.f32 %v983, %v1020
    %v1113 = vsub.f32 %v984, %v1023
    %v1114 = vsub.f32 %v985, %v1026
    %v1115 = vsub.f32 %v986, %v1029
    %v1116 = vsub.f32 %v987, %v1032
    %v1117 = vsub.f32 %v988, %v1035
    %v1118 = vsub.f32 %v989, %v1038
    %v1119 = vsub.f32 %v990, %v1041
    %v1120 = vsub.f32 %v991, %v1044
    %v1121 = vsub.f32 %v992, %v1047
    %v1122 = vsub.f32 %v993, %v1050
    %v1123 = vsub.f32 %v994, %v1053
    %v1124 = vsub.f32 %v995, %v1056
    %v1125 = vsub.f32 %v996, %v1059
    %v1126 = vsub.f32 %v997, %v1062
    %v1127 = vsub.f32 %v998, %v1065
    %v1128 = vsub.f32 %v999, %v1068
    %v1129 = vsub.f32 %v1000, %v1071
    %v1130 = vsub.f32 %v1001, %v1074
    %v1131 = vsub.f32 %v1002, %v1077
    %v1132 = vsub.f32 %v1003, %v1080
    %v1133 = vsub.f32 %v1004, %v1083
    %v1134 = vsub.f32 %v1005, %v1086
    %v1135 = vsub.f32 %v1006, %v1089
    %v1136 = vsub.f32 %v1007, %v1092
    %v1137 = vsub.f32 %v1008, %v1095
    %v1138 = vsub.f32 %v1009, %v1098
    %v1139 = vsub.f32 %v1010, %v1101
    %v1140 = vsub.f32 %v1011, %v1104
    %v1141 = vsub.f32 %v1012, %v1107
    %v1142 = vsub.f32 %v1013, %v1110
    %v1143 = vmul.f32 %v1111, 1.442695
    %v1144 = vpow.pop %v1143
    %v1145 = vmul.f32 %v1112, 1.442695
    %v1146 = vpow.pop %v1145
    %v1147 = vmul.f32 %v1113, 1.442695
    %v1148 = vpow.pop %v1147
    %v1149 = vmul.f32 %v1114, 1.442695
    %v1150 = vpow.pop %v1149
    %v1151 = vmul.f32 %v1115, 1.442695
    %v1152 = vpow.pop %v1151
    %v1153 = vmul.f32 %v1116, 1.442695
    %v1154 = vpow.pop %v1153
    %v1155 = vmul.f32 %v1117, 1.442695
    %v1156 = vpow.pop %v1155
    %v1157 = vmul.f32 %v1118, 1.442695
    %v1158 = vpow.pop %v1157
    %v1159 = vmul.f32 %v1119, 1.442695
    %v1160 = vpow.pop %v1159
    %v1161 = vmul.f32 %v1120, 1.442695
    %v1162 = vpow.pop %v1161
    %v1163 = vmul.f32 %v1121, 1.442695
    %v1164 = vpow.pop %v1163
    %v1165 = vmul.f32 %v1122, 1.442695
    %v1166 = vpow.pop %v1165
    %v1167 = vmul.f32 %v1123, 1.442695
    %v1168 = vpow.pop %v1167
    %v1169 = vmul.f32 %v1124, 1.442695
    %v1170 = vpow.pop %v1169
    %v1171 = vmul.f32 %v1125, 1.442695
    %v1172 = vpow.pop %v1171
    %v1173 = vmul.f32 %v1126, 1.442695
    %v1174 = vpow.pop %v1173
    %v1175 = vmul.f32 %v1127, 1.442695
    %v1176 = vpow.pop %v1175
    %v1177 = vmul.f32 %v1128, 1.442695
    %v1178 = vpow.pop %v1177
    %v1179 = vmul.f32 %v1129, 1.442695
    %v1180 = vpow.pop %v1179
    %v1181 = vmul.f32 %v1130, 1.442695
    %v1182 = vpow.pop %v1181
    %v1183 = vmul.f32 %v1131, 1.442695
    %v1184 = vpow.pop %v1183
    %v1185 = vmul.f32 %v1132, 1.442695
    %v1186 = vpow.pop %v1185
    %v1187 = vmul.f32 %v1133, 1.442695
    %v1188 = vpow.pop %v1187
    %v1189 = vmul.f32 %v1134, 1.442695
    %v1190 = vpow.pop %v1189
    %v1191 = vmul.f32 %v1135, 1.442695
    %v1192 = vpow.pop %v1191
    %v1193 = vmul.f32 %v1136, 1.442695
    %v1194 = vpow.pop %v1193
    %v1195 = vmul.f32 %v1137, 1.442695
    %v1196 = vpow.pop %v1195
    %v1197 = vmul.f32 %v1138, 1.442695
    %v1198 = vpow.pop %v1197
    %v1199 = vmul.f32 %v1139, 1.442695
    %v1200 = vpow.pop %v1199
    %v1201 = vmul.f32 %v1140, 1.442695
    %v1202 = vpow.pop %v1201
    %v1203 = vmul.f32 %v1141, 1.442695
    %v1204 = vpow.pop %v1203
    %v1205 = vmul.f32 %v1142, 1.442695
    %v1206 = vpow.pop %v1205
    %v1207 = vsel %vm1014, %v1144, 0.0
    %1208 = vadd.xlane.f32.xlu0 %v1207
    %v1209 = vpop.xlane.xlu0 %1208
    %v1210 = vsel %vm1014, %v1146, 0.0
    %1211 = vadd.xlane.f32.xlu0 %v1210
    %v1212 = vpop.xlane.xlu0 %1211
    %v1213 = vsel %vm1014, %v1148, 0.0
    %1214 = vadd.xlane.f32.xlu0 %v1213
    %v1215 = vpop.xlane.xlu0 %1214
    %v1216 = vsel %vm1014, %v1150, 0.0
    %1217 = vadd.xlane.f32.xlu0 %v1216
    %v1218 = vpop.xlane.xlu0 %1217
    %v1219 = vsel %vm1014, %v1152, 0.0
    %1220 = vadd.xlane.f32.xlu0 %v1219
    %v1221 = vpop.xlane.xlu0 %1220
    %v1222 = vsel %vm1014, %v1154, 0.0
    %1223 = vadd.xlane.f32.xlu0 %v1222
    %v1224 = vpop.xlane.xlu0 %1223
    %v1225 = vsel %vm1014, %v1156, 0.0
    %1226 = vadd.xlane.f32.xlu0 %v1225
    %v1227 = vpop.xlane.xlu0 %1226
    %v1228 = vsel %vm1014, %v1158, 0.0
    %1229 = vadd.xlane.f32.xlu0 %v1228
    %v1230 = vpop.xlane.xlu0 %1229
    %v1231 = vsel %vm1014, %v1160, 0.0
    %1232 = vadd.xlane.f32.xlu0 %v1231
    %v1233 = vpop.xlane.xlu0 %1232
    %v1234 = vsel %vm1014, %v1162, 0.0
    %1235 = vadd.xlane.f32.xlu0 %v1234
    %v1236 = vpop.xlane.xlu0 %1235
    %v1237 = vsel %vm1014, %v1164, 0.0
    %1238 = vadd.xlane.f32.xlu0 %v1237
    %v1239 = vpop.xlane.xlu0 %1238
    %v1240 = vsel %vm1014, %v1166, 0.0
    %1241 = vadd.xlane.f32.xlu0 %v1240
    %v1242 = vpop.xlane.xlu0 %1241
    %v1243 = vsel %vm1014, %v1168, 0.0
    %1244 = vadd.xlane.f32.xlu0 %v1243
    %v1245 = vpop.xlane.xlu0 %1244
    %v1246 = vsel %vm1014, %v1170, 0.0
    %1247 = vadd.xlane.f32.xlu0 %v1246
    %v1248 = vpop.xlane.xlu0 %1247
    %v1249 = vsel %vm1014, %v1172, 0.0
    %1250 = vadd.xlane.f32.xlu0 %v1249
    %v1251 = vpop.xlane.xlu0 %1250
    %v1252 = vsel %vm1014, %v1174, 0.0
    %1253 = vadd.xlane.f32.xlu0 %v1252
    %v1254 = vpop.xlane.xlu0 %1253
    %v1255 = vsel %vm1014, %v1176, 0.0
    %1256 = vadd.xlane.f32.xlu0 %v1255
    %v1257 = vpop.xlane.xlu0 %1256
    %v1258 = vsel %vm1014, %v1178, 0.0
    %1259 = vadd.xlane.f32.xlu0 %v1258
    %v1260 = vpop.xlane.xlu0 %1259
    %v1261 = vsel %vm1014, %v1180, 0.0
    %1262 = vadd.xlane.f32.xlu0 %v1261
    %v1263 = vpop.xlane.xlu0 %1262
    %v1264 = vsel %vm1014, %v1182, 0.0
    %1265 = vadd.xlane.f32.xlu0 %v1264
    %v1266 = vpop.xlane.xlu0 %1265
    %v1267 = vsel %vm1014, %v1184, 0.0
    %1268 = vadd.xlane.f32.xlu0 %v1267
    %v1269 = vpop.xlane.xlu0 %1268
    %v1270 = vsel %vm1014, %v1186, 0.0
    %1271 = vadd.xlane.f32.xlu0 %v1270
    %v1272 = vpop.xlane.xlu0 %1271
    %v1273 = vsel %vm1014, %v1188, 0.0
    %1274 = vadd.xlane.f32.xlu0 %v1273
    %v1275 = vpop.xlane.xlu0 %1274
    %v1276 = vsel %vm1014, %v1190, 0.0
    %1277 = vadd.xlane.f32.xlu0 %v1276
    %v1278 = vpop.xlane.xlu0 %1277
    %v1279 = vsel %vm1014, %v1192, 0.0
    %1280 = vadd.xlane.f32.xlu0 %v1279
    %v1281 = vpop.xlane.xlu0 %1280
    %v1282 = vsel %vm1014, %v1194, 0.0
    %1283 = vadd.xlane.f32.xlu0 %v1282
    %v1284 = vpop.xlane.xlu0 %1283
    %v1285 = vsel %vm1014, %v1196, 0.0
    %1286 = vadd.xlane.f32.xlu0 %v1285
    %v1287 = vpop.xlane.xlu0 %1286
    %v1288 = vsel %vm1014, %v1198, 0.0
    %1289 = vadd.xlane.f32.xlu0 %v1288
    %v1290 = vpop.xlane.xlu0 %1289
    %v1291 = vsel %vm1014, %v1200, 0.0
    %1292 = vadd.xlane.f32.xlu0 %v1291
    %v1293 = vpop.xlane.xlu0 %1292
    %v1294 = vsel %vm1014, %v1202, 0.0
    %1295 = vadd.xlane.f32.xlu0 %v1294
    %v1296 = vpop.xlane.xlu0 %1295
    %v1297 = vsel %vm1014, %v1204, 0.0
    %1298 = vadd.xlane.f32.xlu0 %v1297
    %v1299 = vpop.xlane.xlu0 %1298
    %v1300 = vsel %vm1014, %v1206, 0.0
    %1301 = vadd.xlane.f32.xlu0 %v1300
    %v1302 = vpop.xlane.xlu0 %1301
    %v1303 = vrcp.pop %v1209
    %v1304 = vrcp.pop %v1212
    %v1305 = vrcp.pop %v1215
    %v1306 = vrcp.pop %v1218
    %v1307 = vrcp.pop %v1221
    %v1308 = vrcp.pop %v1224
    %v1309 = vrcp.pop %v1227
    %v1310 = vrcp.pop %v1230
    %v1311 = vrcp.pop %v1233
    %v1312 = vrcp.pop %v1236
    %v1313 = vrcp.pop %v1239
    %v1314 = vrcp.pop %v1242
    %v1315 = vrcp.pop %v1245
    %v1316 = vrcp.pop %v1248
    %v1317 = vrcp.pop %v1251
    %v1318 = vrcp.pop %v1254
    %v1319 = vrcp.pop %v1257
    %v1320 = vrcp.pop %v1260
    %v1321 = vrcp.pop %v1263
    %v1322 = vrcp.pop %v1266
    %v1323 = vrcp.pop %v1269
    %v1324 = vrcp.pop %v1272
    %v1325 = vrcp.pop %v1275
    %v1326 = vrcp.pop %v1278
    %v1327 = vrcp.pop %v1281
    %v1328 = vrcp.pop %v1284
    %v1329 = vrcp.pop %v1287
    %v1330 = vrcp.pop %v1290
    %v1331 = vrcp.pop %v1293
    %v1332 = vrcp.pop %v1296
    %v1333 = vrcp.pop %v1299
    %v1334 = vrcp.pop %v1302
    %v1339 = vlaneseq
    %v1340 = vand.u32 %v1339, 127
    %v1341 = vlaneseq
    %v1342 = vshrl.u32 %v1341, 7
    %v1343 = vsub.s32 %v1340, %v1342
    %v1344 = vrot.slane %v1303, %v1343
    %v1345 = vadd.s32 %v1340, 4294967288
    %v1346 = vlaneseq
    %v1347 = vshrl.u32 %v1346, 7
    %v1348 = vsub.s32 %v1345, %v1347
    %v1349 = vrot.slane %v1304, %v1348
    %vm1350 = vcmask 130112
    %v1351 = vsel %vm1350, %v1349, %v1344
    %v1352 = vadd.s32 %v1340, 4294967280
    %v1353 = vlaneseq
    %v1354 = vshrl.u32 %v1353, 7
    %v1355 = vsub.s32 %v1352, %v1354
    %v1356 = vrot.slane %v1305, %v1355
    %vm1357 = vcmask 195712
    %v1358 = vsel %vm1357, %v1356, %v1351
    %v1359 = vadd.s32 %v1340, 4294967272
    %v1360 = vlaneseq
    %v1361 = vshrl.u32 %v1360, 7
    %v1362 = vsub.s32 %v1359, %v1361
    %v1363 = vrot.slane %v1306, %v1362
    %vm1364 = vcmask 261312
    %v1365 = vsel %vm1364, %v1363, %v1358
    %v1366 = vsel %vm52, %v1365, 0
    %1368 = vmatprep.subr.mxu0 0.0
    %1369 = vmatpush1.msra.mxu0 %v1144
    %1370 = vmatprep.subr.mxu0 0.0
    %1371 = vmatpush1.msra.mxu0 %v1146
    %1372 = vmatprep.subr.mxu0 0.0
    %1373 = vmatpush1.msra.mxu0 %v1148
    %1374 = vmatprep.subr.mxu0 0.0
    %1375 = vmatpush1.msra.mxu0 %v1150
    %1376 = vmatprep.subr.mxu0 0.0
    %1377 = vmatpush1.msra.mxu0 0.0
    %1378 = vmatprep.subr.mxu0 0.0
    %1379 = vmatpush1.msra.mxu0 0.0
    %1380 = vmatprep.subr.mxu0 0.0
    %1381 = vmatpush1.msra.mxu0 0.0
    %1382 = vmatprep.subr.mxu0 0.0
    %1383 = vmatpush1.msra.mxu0 0.0
    %1384 = vmatprep.subr.mxu0 0.0
    %1385 = vmatpush1.msra.mxu0 0.0
    %1386 = vmatprep.subr.mxu0 0.0
    %1387 = vmatpush1.msra.mxu0 0.0
    %1388 = vmatprep.subr.mxu0 0.0
    %1389 = vmatpush1.msra.mxu0 0.0
    %1390 = vmatprep.subr.mxu0 0.0
    %1391 = vmatpush1.msra.mxu0 0.0
    %1392 = vmatprep.subr.mxu0 0.0
    %1393 = vmatpush1.msra.mxu0 0.0
    %1394 = vmatprep.subr.mxu0 0.0
    %1395 = vmatpush1.msra.mxu0 0.0
    %1396 = vmatprep.subr.mxu0 0.0
    %1397 = vmatpush1.msra.mxu0 0.0
    %1398 = vmatprep.subr.mxu0 0.0
    %1399 = vmatpush1.msra.mxu0 0.0
    %1400 = vmatprep.subr.mxu0 0.0
    %1401 = vmatpush1.msra.mxu0 0.0
    %1402 = vmatprep.subr.mxu0 0.0
    %1403 = vmatpush1.msra.mxu0 0.0
    %1404 = vmatprep.subr.mxu0 0.0
    %1405 = vmatpush1.msra.mxu0 0.0
    %1406 = vmatprep.subr.mxu0 0.0
    %1407 = vmatpush1.msra.mxu0 0.0
    %1408 = vmatprep.subr.mxu0 0.0
    %1409 = vmatpush1.msra.mxu0 0.0
    %1410 = vmatprep.subr.mxu0 0.0
    %1411 = vmatpush1.msra.mxu0 0.0
    %1412 = vmatprep.subr.mxu0 0.0
    %1413 = vmatpush1.msra.mxu0 0.0
    %1414 = vmatprep.subr.mxu0 0.0
    %1415 = vmatpush1.msra.mxu0 0.0
    %1416 = vmatprep.subr.mxu0 0.0
    %1417 = vmatpush1.msra.mxu0 0.0
    %1418 = vmatprep.subr.mxu0 0.0
    %1419 = vmatpush1.msra.mxu0 0.0
    %1420 = vmatprep.subr.mxu0 0.0
    %1421 = vmatpush1.msra.mxu0 0.0
    %1422 = vmatprep.subr.mxu0 0.0
    %1423 = vmatpush1.msra.mxu0 0.0
    %1424 = vmatprep.subr.mxu0 0.0
    %1425 = vmatpush1.msra.mxu0 0.0
    %1426 = vmatprep.subr.mxu0 0.0
    %1427 = vmatpush1.msra.mxu0 0.0
    %1428 = vmatprep.subr.mxu0 0.0
    %1429 = vmatpush1.msra.mxu0 0.0
    %1430 = vmatprep.subr.mxu0 0.0
    %1431 = vmatpush1.msra.mxu0 0.0
    %1432 = vmatprep.mubr.f32.mxu0 0.0
    %1433 = vmatmul.mubr.f32.gmra.mrb[0].mxu0 %v1366
    %v1434 = vpop.f32.mrb[0].mxu0
    %v1435 = vadd.f32 0.0, %v1434
    %v1436 = vpop.f32.mrb[0].mxu0
    %1437 = vdwg.mxu0
    %v1442 = vlaneseq
    %v1443 = vshrl.u32 %v1442, 7
    %v1444 = vsub.s32 %v1340, %v1443
    %v1445 = vrot.slane %v1307, %v1444
    %v1446 = vlaneseq
    %v1447 = vshrl.u32 %v1446, 7
    %v1448 = vsub.s32 %v1345, %v1447
    %v1449 = vrot.slane %v1308, %v1448
    %v1450 = vsel %vm1350, %v1449, %v1445
    %v1451 = vlaneseq
    %v1452 = vshrl.u32 %v1451, 7
    %v1453 = vsub.s32 %v1352, %v1452
    %v1454 = vrot.slane %v1309, %v1453
    %v1455 = vsel %vm1357, %v1454, %v1450
    %v1456 = vlaneseq
    %v1457 = vshrl.u32 %v1456, 7
    %v1458 = vsub.s32 %v1359, %v1457
    %v1459 = vrot.slane %v1310, %v1458
    %v1460 = vsel %vm1364, %v1459, %v1455
    %v1461 = vsel %vm52, %v1460, 0
    %1463 = vmatprep.subr.mxu0 0.0
    %1464 = vmatpush1.msra.mxu0 %v1152
    %1465 = vmatprep.subr.mxu0 0.0
    %1466 = vmatpush1.msra.mxu0 %v1154
    %1467 = vmatprep.subr.mxu0 0.0
    %1468 = vmatpush1.msra.mxu0 %v1156
    %1469 = vmatprep.subr.mxu0 0.0
    %1470 = vmatpush1.msra.mxu0 %v1158
    %1471 = vmatprep.subr.mxu0 0.0
    %1472 = vmatpush1.msra.mxu0 0.0
    %1473 = vmatprep.subr.mxu0 0.0
    %1474 = vmatpush1.msra.mxu0 0.0
    %1475 = vmatprep.subr.mxu0 0.0
    %1476 = vmatpush1.msra.mxu0 0.0
    %1477 = vmatprep.subr.mxu0 0.0
    %1478 = vmatpush1.msra.mxu0 0.0
    %1479 = vmatprep.subr.mxu0 0.0
    %1480 = vmatpush1.msra.mxu0 0.0
    %1481 = vmatprep.subr.mxu0 0.0
    %1482 = vmatpush1.msra.mxu0 0.0
    %1483 = vmatprep.subr.mxu0 0.0
    %1484 = vmatpush1.msra.mxu0 0.0
    %1485 = vmatprep.subr.mxu0 0.0
    %1486 = vmatpush1.msra.mxu0 0.0
    %1487 = vmatprep.subr.mxu0 0.0
    %1488 = vmatpush1.msra.mxu0 0.0
    %1489 = vmatprep.subr.mxu0 0.0
    %1490 = vmatpush1.msra.mxu0 0.0
    %1491 = vmatprep.subr.mxu0 0.0
    %1492 = vmatpush1.msra.mxu0 0.0
    %1493 = vmatprep.subr.mxu0 0.0
    %1494 = vmatpush1.msra.mxu0 0.0
    %1495 = vmatprep.subr.mxu0 0.0
    %1496 = vmatpush1.msra.mxu0 0.0
    %1497 = vmatprep.subr.mxu0 0.0
    %1498 = vmatpush1.msra.mxu0 0.0
    %1499 = vmatprep.subr.mxu0 0.0
    %1500 = vmatpush1.msra.mxu0 0.0
    %1501 = vmatprep.subr.mxu0 0.0
    %1502 = vmatpush1.msra.mxu0 0.0
    %1503 = vmatprep.subr.mxu0 0.0
    %1504 = vmatpush1.msra.mxu0 0.0
    %1505 = vmatprep.subr.mxu0 0.0
    %1506 = vmatpush1.msra.mxu0 0.0
    %1507 = vmatprep.subr.mxu0 0.0
    %1508 = vmatpush1.msra.mxu0 0.0
    %1509 = vmatprep.subr.mxu0 0.0
    %1510 = vmatpush1.msra.mxu0 0.0
    %1511 = vmatprep.subr.mxu0 0.0
    %1512 = vmatpush1.msra.mxu0 0.0
    %1513 = vmatprep.subr.mxu0 0.0
    %1514 = vmatpush1.msra.mxu0 0.0
    %1515 = vmatprep.subr.mxu0 0.0
    %1516 = vmatpush1.msra.mxu0 0.0
    %1517 = vmatprep.subr.mxu0 0.0
    %1518 = vmatpush1.msra.mxu0 0.0
    %1519 = vmatprep.subr.mxu0 0.0
    %1520 = vmatpush1.msra.mxu0 0.0
    %1521 = vmatprep.subr.mxu0 0.0
    %1522 = vmatpush1.msra.mxu0 0.0
    %1523 = vmatprep.subr.mxu0 0.0
    %1524 = vmatpush1.msra.mxu0 0.0
    %1525 = vmatprep.subr.mxu0 0.0
    %1526 = vmatpush1.msra.mxu0 0.0
    %1527 = vmatprep.mubr.f32.mxu0 0.0
    %1528 = vmatmul.mubr.f32.gmra.mrb[0].mxu0 %v1461
    %v1529 = vpop.f32.mrb[0].mxu0
    %v1530 = vadd.f32 0.0, %v1529
    %v1531 = vpop.f32.mrb[0].mxu0
    %1532 = vdwg.mxu0
    %v1537 = vlaneseq
    %v1538 = vshrl.u32 %v1537, 7
    %v1539 = vsub.s32 %v1340, %v1538
    %v1540 = vrot.slane %v1311, %v1539
    %v1541 = vlaneseq
    %v1542 = vshrl.u32 %v1541, 7
    %v1543 = vsub.s32 %v1345, %v1542
    %v1544 = vrot.slane %v1312, %v1543
    %v1545 = vsel %vm1350, %v1544, %v1540
    %v1546 = vlaneseq
    %v1547 = vshrl.u32 %v1546, 7
    %v1548 = vsub.s32 %v1352, %v1547
    %v1549 = vrot.slane %v1313, %v1548
    %v1550 = vsel %vm1357, %v1549, %v1545
    %v1551 = vlaneseq
    %v1552 = vshrl.u32 %v1551, 7
    %v1553 = vsub.s32 %v1359, %v1552
    %v1554 = vrot.slane %v1314, %v1553
    %v1555 = vsel %vm1364, %v1554, %v1550
    %v1556 = vsel %vm52, %v1555, 0
    %1558 = vmatprep.subr.mxu0 0.0
    %1559 = vmatpush1.msra.mxu0 %v1160
    %1560 = vmatprep.subr.mxu0 0.0
    %1561 = vmatpush1.msra.mxu0 %v1162
    %1562 = vmatprep.subr.mxu0 0.0
    %1563 = vmatpush1.msra.mxu0 %v1164
    %1564 = vmatprep.subr.mxu0 0.0
    %1565 = vmatpush1.msra.mxu0 %v1166
    %1566 = vmatprep.subr.mxu0 0.0
    %1567 = vmatpush1.msra.mxu0 0.0
    %1568 = vmatprep.subr.mxu0 0.0
    %1569 = vmatpush1.msra.mxu0 0.0
    %1570 = vmatprep.subr.mxu0 0.0
    %1571 = vmatpush1.msra.mxu0 0.0
    %1572 = vmatprep.subr.mxu0 0.0
    %1573 = vmatpush1.msra.mxu0 0.0
    %1574 = vmatprep.subr.mxu0 0.0
    %1575 = vmatpush1.msra.mxu0 0.0
    %1576 = vmatprep.subr.mxu0 0.0
    %1577 = vmatpush1.msra.mxu0 0.0
    %1578 = vmatprep.subr.mxu0 0.0
    %1579 = vmatpush1.msra.mxu0 0.0
    %1580 = vmatprep.subr.mxu0 0.0
    %1581 = vmatpush1.msra.mxu0 0.0
    %1582 = vmatprep.subr.mxu0 0.0
    %1583 = vmatpush1.msra.mxu0 0.0
    %1584 = vmatprep.subr.mxu0 0.0
    %1585 = vmatpush1.msra.mxu0 0.0
    %1586 = vmatprep.subr.mxu0 0.0
    %1587 = vmatpush1.msra.mxu0 0.0
    %1588 = vmatprep.subr.mxu0 0.0
    %1589 = vmatpush1.msra.mxu0 0.0
    %1590 = vmatprep.subr.mxu0 0.0
    %1591 = vmatpush1.msra.mxu0 0.0
    %1592 = vmatprep.subr.mxu0 0.0
    %1593 = vmatpush1.msra.mxu0 0.0
    %1594 = vmatprep.subr.mxu0 0.0
    %1595 = vmatpush1.msra.mxu0 0.0
    %1596 = vmatprep.subr.mxu0 0.0
    %1597 = vmatpush1.msra.mxu0 0.0
    %1598 = vmatprep.subr.mxu0 0.0
    %1599 = vmatpush1.msra.mxu0 0.0
    %1600 = vmatprep.subr.mxu0 0.0
    %1601 = vmatpush1.msra.mxu0 0.0
    %1602 = vmatprep.subr.mxu0 0.0
    %1603 = vmatpush1.msra.mxu0 0.0
    %1604 = vmatprep.subr.mxu0 0.0
    %1605 = vmatpush1.msra.mxu0 0.0
    %1606 = vmatprep.subr.mxu0 0.0
    %1607 = vmatpush1.msra.mxu0 0.0
    %1608 = vmatprep.subr.mxu0 0.0
    %1609 = vmatpush1.msra.mxu0 0.0
    %1610 = vmatprep.subr.mxu0 0.0
    %1611 = vmatpush1.msra.mxu0 0.0
    %1612 = vmatprep.subr.mxu0 0.0
    %1613 = vmatpush1.msra.mxu0 0.0
    %1614 = vmatprep.subr.mxu0 0.0
    %1615 = vmatpush1.msra.mxu0 0.0
    %1616 = vmatprep.subr.mxu0 0.0
    %1617 = vmatpush1.msra.mxu0 0.0
    %1618 = vmatprep.subr.mxu0 0.0
    %1619 = vmatpush1.msra.mxu0 0.0
    %1620 = vmatprep.subr.mxu0 0.0
    %1621 = vmatpush1.msra.mxu0 0.0
    %1622 = vmatprep.mubr.f32.mxu0 0.0
    %1623 = vmatmul.mubr.f32.gmra.mrb[0].mxu0 %v1556
    %v1624 = vpop.f32.mrb[0].mxu0
    %v1625 = vadd.f32 0.0, %v1624
    %v1626 = vpop.f32.mrb[0].mxu0
    %1627 = vdwg.mxu0
    %v1632 = vlaneseq
    %v1633 = vshrl.u32 %v1632, 7
    %v1634 = vsub.s32 %v1340, %v1633
    %v1635 = vrot.slane %v1315, %v1634
    %v1636 = vlaneseq
    %v1637 = vshrl.u32 %v1636, 7
    %v1638 = vsub.s32 %v1345, %v1637
    %v1639 = vrot.slane %v1316, %v1638
    %v1640 = vsel %vm1350, %v1639, %v1635
    %v1641 = vlaneseq
    %v1642 = vshrl.u32 %v1641, 7
    %v1643 = vsub.s32 %v1352, %v1642
    %v1644 = vrot.slane %v1317, %v1643
    %v1645 = vsel %vm1357, %v1644, %v1640
    %v1646 = vlaneseq
    %v1647 = vshrl.u32 %v1646, 7
    %v1648 = vsub.s32 %v1359, %v1647
    %v1649 = vrot.slane %v1318, %v1648
    %v1650 = vsel %vm1364, %v1649, %v1645
    %v1651 = vsel %vm52, %v1650, 0
    %1653 = vmatprep.subr.mxu0 0.0
    %1654 = vmatpush1.msra.mxu0 %v1168
    %1655 = vmatprep.subr.mxu0 0.0
    %1656 = vmatpush1.msra.mxu0 %v1170
    %1657 = vmatprep.subr.mxu0 0.0
    %1658 = vmatpush1.msra.mxu0 %v1172
    %1659 = vmatprep.subr.mxu0 0.0
    %1660 = vmatpush1.msra.mxu0 %v1174
    %1661 = vmatprep.subr.mxu0 0.0
    %1662 = vmatpush1.msra.mxu0 0.0
    %1663 = vmatprep.subr.mxu0 0.0
    %1664 = vmatpush1.msra.mxu0 0.0
    %1665 = vmatprep.subr.mxu0 0.0
    %1666 = vmatpush1.msra.mxu0 0.0
    %1667 = vmatprep.subr.mxu0 0.0
    %1668 = vmatpush1.msra.mxu0 0.0
    %1669 = vmatprep.subr.mxu0 0.0
    %1670 = vmatpush1.msra.mxu0 0.0
    %1671 = vmatprep.subr.mxu0 0.0
    %1672 = vmatpush1.msra.mxu0 0.0
    %1673 = vmatprep.subr.mxu0 0.0
    %1674 = vmatpush1.msra.mxu0 0.0
    %1675 = vmatprep.subr.mxu0 0.0
    %1676 = vmatpush1.msra.mxu0 0.0
    %1677 = vmatprep.subr.mxu0 0.0
    %1678 = vmatpush1.msra.mxu0 0.0
    %1679 = vmatprep.subr.mxu0 0.0
    %1680 = vmatpush1.msra.mxu0 0.0
    %1681 = vmatprep.subr.mxu0 0.0
    %1682 = vmatpush1.msra.mxu0 0.0
    %1683 = vmatprep.subr.mxu0 0.0
    %1684 = vmatpush1.msra.mxu0 0.0
    %1685 = vmatprep.subr.mxu0 0.0
    %1686 = vmatpush1.msra.mxu0 0.0
    %1687 = vmatprep.subr.mxu0 0.0
    %1688 = vmatpush1.msra.mxu0 0.0
    %1689 = vmatprep.subr.mxu0 0.0
    %1690 = vmatpush1.msra.mxu0 0.0
    %1691 = vmatprep.subr.mxu0 0.0
    %1692 = vmatpush1.msra.mxu0 0.0
    %1693 = vmatprep.subr.mxu0 0.0
    %1694 = vmatpush1.msra.mxu0 0.0
    %1695 = vmatprep.subr.mxu0 0.0
    %1696 = vmatpush1.msra.mxu0 0.0
    %1697 = vmatprep.subr.mxu0 0.0
    %1698 = vmatpush1.msra.mxu0 0.0
    %1699 = vmatprep.subr.mxu0 0.0
    %1700 = vmatpush1.msra.mxu0 0.0
    %1701 = vmatprep.subr.mxu0 0.0
    %1702 = vmatpush1.msra.mxu0 0.0
    %1703 = vmatprep.subr.mxu0 0.0
    %1704 = vmatpush1.msra.mxu0 0.0
    %1705 = vmatprep.subr.mxu0 0.0
    %1706 = vmatpush1.msra.mxu0 0.0
    %1707 = vmatprep.subr.mxu0 0.0
    %1708 = vmatpush1.msra.mxu0 0.0
    %1709 = vmatprep.subr.mxu0 0.0
    %1710 = vmatpush1.msra.mxu0 0.0
    %1711 = vmatprep.subr.mxu0 0.0
    %1712 = vmatpush1.msra.mxu0 0.0
    %1713 = vmatprep.subr.mxu0 0.0
    %1714 = vmatpush1.msra.mxu0 0.0
    %1715 = vmatprep.subr.mxu0 0.0
    %1716 = vmatpush1.msra.mxu0 0.0
    %1717 = vmatprep.mubr.f32.mxu0 0.0
    %1718 = vmatmul.mubr.f32.gmra.mrb[0].mxu0 %v1651
    %v1719 = vpop.f32.mrb[0].mxu0
    %v1720 = vadd.f32 0.0, %v1719
    %v1721 = vpop.f32.mrb[0].mxu0
    %1722 = vdwg.mxu0
    %v1727 = vlaneseq
    %v1728 = vshrl.u32 %v1727, 7
    %v1729 = vsub.s32 %v1340, %v1728
    %v1730 = vrot.slane %v1319, %v1729
    %v1731 = vlaneseq
    %v1732 = vshrl.u32 %v1731, 7
    %v1733 = vsub.s32 %v1345, %v1732
    %v1734 = vrot.slane %v1320, %v1733
    %v1735 = vsel %vm1350, %v1734, %v1730
    %v1736 = vlaneseq
    %v1737 = vshrl.u32 %v1736, 7
    %v1738 = vsub.s32 %v1352, %v1737
    %v1739 = vrot.slane %v1321, %v1738
    %v1740 = vsel %vm1357, %v1739, %v1735
    %v1741 = vlaneseq
    %v1742 = vshrl.u32 %v1741, 7
    %v1743 = vsub.s32 %v1359, %v1742
    %v1744 = vrot.slane %v1322, %v1743
    %v1745 = vsel %vm1364, %v1744, %v1740
    %v1746 = vsel %vm52, %v1745, 0
    %1748 = vmatprep.subr.mxu0 0.0
    %1749 = vmatpush1.msra.mxu0 %v1176
    %1750 = vmatprep.subr.mxu0 0.0
    %1751 = vmatpush1.msra.mxu0 %v1178
    %1752 = vmatprep.subr.mxu0 0.0
    %1753 = vmatpush1.msra.mxu0 %v1180
    %1754 = vmatprep.subr.mxu0 0.0
    %1755 = vmatpush1.msra.mxu0 %v1182
    %1756 = vmatprep.subr.mxu0 0.0
    %1757 = vmatpush1.msra.mxu0 0.0
    %1758 = vmatprep.subr.mxu0 0.0
    %1759 = vmatpush1.msra.mxu0 0.0
    %1760 = vmatprep.subr.mxu0 0.0
    %1761 = vmatpush1.msra.mxu0 0.0
    %1762 = vmatprep.subr.mxu0 0.0
    %1763 = vmatpush1.msra.mxu0 0.0
    %1764 = vmatprep.subr.mxu0 0.0
    %1765 = vmatpush1.msra.mxu0 0.0
    %1766 = vmatprep.subr.mxu0 0.0
    %1767 = vmatpush1.msra.mxu0 0.0
    %1768 = vmatprep.subr.mxu0 0.0
    %1769 = vmatpush1.msra.mxu0 0.0
    %1770 = vmatprep.subr.mxu0 0.0
    %1771 = vmatpush1.msra.mxu0 0.0
    %1772 = vmatprep.subr.mxu0 0.0
    %1773 = vmatpush1.msra.mxu0 0.0
    %1774 = vmatprep.subr.mxu0 0.0
    %1775 = vmatpush1.msra.mxu0 0.0
    %1776 = vmatprep.subr.mxu0 0.0
    %1777 = vmatpush1.msra.mxu0 0.0
    %1778 = vmatprep.subr.mxu0 0.0
    %1779 = vmatpush1.msra.mxu0 0.0
    %1780 = vmatprep.subr.mxu0 0.0
    %1781 = vmatpush1.msra.mxu0 0.0
    %1782 = vmatprep.subr.mxu0 0.0
    %1783 = vmatpush1.msra.mxu0 0.0
    %1784 = vmatprep.subr.mxu0 0.0
    %1785 = vmatpush1.msra.mxu0 0.0
    %1786 = vmatprep.subr.mxu0 0.0
    %1787 = vmatpush1.msra.mxu0 0.0
    %1788 = vmatprep.subr.mxu0 0.0
    %1789 = vmatpush1.msra.mxu0 0.0
    %1790 = vmatprep.subr.mxu0 0.0
    %1791 = vmatpush1.msra.mxu0 0.0
    %1792 = vmatprep.subr.mxu0 0.0
    %1793 = vmatpush1.msra.mxu0 0.0
    %1794 = vmatprep.subr.mxu0 0.0
    %1795 = vmatpush1.msra.mxu0 0.0
    %1796 = vmatprep.subr.mxu0 0.0
    %1797 = vmatpush1.msra.mxu0 0.0
    %1798 = vmatprep.subr.mxu0 0.0
    %1799 = vmatpush1.msra.mxu0 0.0
    %1800 = vmatprep.subr.mxu0 0.0
    %1801 = vmatpush1.msra.mxu0 0.0
    %1802 = vmatprep.subr.mxu0 0.0
    %1803 = vmatpush1.msra.mxu0 0.0
    %1804 = vmatprep.subr.mxu0 0.0
    %1805 = vmatpush1.msra.mxu0 0.0
    %1806 = vmatprep.subr.mxu0 0.0
    %1807 = vmatpush1.msra.mxu0 0.0
    %1808 = vmatprep.subr.mxu0 0.0
    %1809 = vmatpush1.msra.mxu0 0.0
    %1810 = vmatprep.subr.mxu0 0.0
    %1811 = vmatpush1.msra.mxu0 0.0
    %1812 = vmatprep.mubr.f32.mxu0 0.0
    %1813 = vmatmul.mubr.f32.gmra.mrb[0].mxu0 %v1746
    %v1814 = vpop.f32.mrb[0].mxu0
    %v1815 = vadd.f32 0.0, %v1814
    %v1816 = vpop.f32.mrb[0].mxu0
    %1817 = vdwg.mxu0
    %v1822 = vlaneseq
    %v1823 = vshrl.u32 %v1822, 7
    %v1824 = vsub.s32 %v1340, %v1823
    %v1825 = vrot.slane %v1323, %v1824
    %v1826 = vlaneseq
    %v1827 = vshrl.u32 %v1826, 7
    %v1828 = vsub.s32 %v1345, %v1827
    %v1829 = vrot.slane %v1324, %v1828
    %v1830 = vsel %vm1350, %v1829, %v1825
    %v1831 = vlaneseq
    %v1832 = vshrl.u32 %v1831, 7
    %v1833 = vsub.s32 %v1352, %v1832
    %v1834 = vrot.slane %v1325, %v1833
    %v1835 = vsel %vm1357, %v1834, %v1830
    %v1836 = vlaneseq
    %v1837 = vshrl.u32 %v1836, 7
    %v1838 = vsub.s32 %v1359, %v1837
    %v1839 = vrot.slane %v1326, %v1838
    %v1840 = vsel %vm1364, %v1839, %v1835
    %v1841 = vsel %vm52, %v1840, 0
    %1843 = vmatprep.subr.mxu0 0.0
    %1844 = vmatpush1.msra.mxu0 %v1184
    %1845 = vmatprep.subr.mxu0 0.0
    %1846 = vmatpush1.msra.mxu0 %v1186
    %1847 = vmatprep.subr.mxu0 0.0
    %1848 = vmatpush1.msra.mxu0 %v1188
    %1849 = vmatprep.subr.mxu0 0.0
    %1850 = vmatpush1.msra.mxu0 %v1190
    %1851 = vmatprep.subr.mxu0 0.0
    %1852 = vmatpush1.msra.mxu0 0.0
    %1853 = vmatprep.subr.mxu0 0.0
    %1854 = vmatpush1.msra.mxu0 0.0
    %1855 = vmatprep.subr.mxu0 0.0
    %1856 = vmatpush1.msra.mxu0 0.0
    %1857 = vmatprep.subr.mxu0 0.0
    %1858 = vmatpush1.msra.mxu0 0.0
    %1859 = vmatprep.subr.mxu0 0.0
    %1860 = vmatpush1.msra.mxu0 0.0
    %1861 = vmatprep.subr.mxu0 0.0
    %1862 = vmatpush1.msra.mxu0 0.0
    %1863 = vmatprep.subr.mxu0 0.0
    %1864 = vmatpush1.msra.mxu0 0.0
    %1865 = vmatprep.subr.mxu0 0.0
    %1866 = vmatpush1.msra.mxu0 0.0
    %1867 = vmatprep.subr.mxu0 0.0
    %1868 = vmatpush1.msra.mxu0 0.0
    %1869 = vmatprep.subr.mxu0 0.0
    %1870 = vmatpush1.msra.mxu0 0.0
    %1871 = vmatprep.subr.mxu0 0.0
    %1872 = vmatpush1.msra.mxu0 0.0
    %1873 = vmatprep.subr.mxu0 0.0
    %1874 = vmatpush1.msra.mxu0 0.0
    %1875 = vmatprep.subr.mxu0 0.0
    %1876 = vmatpush1.msra.mxu0 0.0
    %1877 = vmatprep.subr.mxu0 0.0
    %1878 = vmatpush1.msra.mxu0 0.0
    %1879 = vmatprep.subr.mxu0 0.0
    %1880 = vmatpush1.msra.mxu0 0.0
    %1881 = vmatprep.subr.mxu0 0.0
    %1882 = vmatpush1.msra.mxu0 0.0
    %1883 = vmatprep.subr.mxu0 0.0
    %1884 = vmatpush1.msra.mxu0 0.0
    %1885 = vmatprep.subr.mxu0 0.0
    %1886 = vmatpush1.msra.mxu0 0.0
    %1887 = vmatprep.subr.mxu0 0.0
    %1888 = vmatpush1.msra.mxu0 0.0
    %1889 = vmatprep.subr.mxu0 0.0
    %1890 = vmatpush1.msra.mxu0 0.0
    %1891 = vmatprep.subr.mxu0 0.0
    %1892 = vmatpush1.msra.mxu0 0.0
    %1893 = vmatprep.subr.mxu0 0.0
    %1894 = vmatpush1.msra.mxu0 0.0
    %1895 = vmatprep.subr.mxu0 0.0
    %1896 = vmatpush1.msra.mxu0 0.0
    %1897 = vmatprep.subr.mxu0 0.0
    %1898 = vmatpush1.msra.mxu0 0.0
    %1899 = vmatprep.subr.mxu0 0.0
    %1900 = vmatpush1.msra.mxu0 0.0
    %1901 = vmatprep.subr.mxu0 0.0
    %1902 = vmatpush1.msra.mxu0 0.0
    %1903 = vmatprep.subr.mxu0 0.0
    %1904 = vmatpush1.msra.mxu0 0.0
    %1905 = vmatprep.subr.mxu0 0.0
    %1906 = vmatpush1.msra.mxu0 0.0
    %1907 = vmatprep.mubr.f32.mxu0 0.0
    %1908 = vmatmul.mubr.f32.gmra.mrb[0].mxu0 %v1841
    %v1909 = vpop.f32.mrb[0].mxu0
    %v1910 = vadd.f32 0.0, %v1909
    %v1911 = vpop.f32.mrb[0].mxu0
    %1912 = vdwg.mxu0
    %v1917 = vlaneseq
    %v1918 = vshrl.u32 %v1917, 7
    %v1919 = vsub.s32 %v1340, %v1918
    %v1920 = vrot.slane %v1327, %v1919
    %v1921 = vlaneseq
    %v1922 = vshrl.u32 %v1921, 7
    %v1923 = vsub.s32 %v1345, %v1922
    %v1924 = vrot.slane %v1328, %v1923
    %v1925 = vsel %vm1350, %v1924, %v1920
    %v1926 = vlaneseq
    %v1927 = vshrl.u32 %v1926, 7
    %v1928 = vsub.s32 %v1352, %v1927
    %v1929 = vrot.slane %v1329, %v1928
    %v1930 = vsel %vm1357, %v1929, %v1925
    %v1931 = vlaneseq
    %v1932 = vshrl.u32 %v1931, 7
    %v1933 = vsub.s32 %v1359, %v1932
    %v1934 = vrot.slane %v1330, %v1933
    %v1935 = vsel %vm1364, %v1934, %v1930
    %v1936 = vsel %vm52, %v1935, 0
    %1938 = vmatprep.subr.mxu0 0.0
    %1939 = vmatpush1.msra.mxu0 %v1192
    %1940 = vmatprep.subr.mxu0 0.0
    %1941 = vmatpush1.msra.mxu0 %v1194
    %1942 = vmatprep.subr.mxu0 0.0
    %1943 = vmatpush1.msra.mxu0 %v1196
    %1944 = vmatprep.subr.mxu0 0.0
    %1945 = vmatpush1.msra.mxu0 %v1198
    %1946 = vmatprep.subr.mxu0 0.0
    %1947 = vmatpush1.msra.mxu0 0.0
    %1948 = vmatprep.subr.mxu0 0.0
    %1949 = vmatpush1.msra.mxu0 0.0
    %1950 = vmatprep.subr.mxu0 0.0
    %1951 = vmatpush1.msra.mxu0 0.0
    %1952 = vmatprep.subr.mxu0 0.0
    %1953 = vmatpush1.msra.mxu0 0.0
    %1954 = vmatprep.subr.mxu0 0.0
    %1955 = vmatpush1.msra.mxu0 0.0
    %1956 = vmatprep.subr.mxu0 0.0
    %1957 = vmatpush1.msra.mxu0 0.0
    %1958 = vmatprep.subr.mxu0 0.0
    %1959 = vmatpush1.msra.mxu0 0.0
    %1960 = vmatprep.subr.mxu0 0.0
    %1961 = vmatpush1.msra.mxu0 0.0
    %1962 = vmatprep.subr.mxu0 0.0
    %1963 = vmatpush1.msra.mxu0 0.0
    %1964 = vmatprep.subr.mxu0 0.0
    %1965 = vmatpush1.msra.mxu0 0.0
    %1966 = vmatprep.subr.mxu0 0.0
    %1967 = vmatpush1.msra.mxu0 0.0
    %1968 = vmatprep.subr.mxu0 0.0
    %1969 = vmatpush1.msra.mxu0 0.0
    %1970 = vmatprep.subr.mxu0 0.0
    %1971 = vmatpush1.msra.mxu0 0.0
    %1972 = vmatprep.subr.mxu0 0.0
    %1973 = vmatpush1.msra.mxu0 0.0
    %1974 = vmatprep.subr.mxu0 0.0
    %1975 = vmatpush1.msra.mxu0 0.0
    %1976 = vmatprep.subr.mxu0 0.0
    %1977 = vmatpush1.msra.mxu0 0.0
    %1978 = vmatprep.subr.mxu0 0.0
    %1979 = vmatpush1.msra.mxu0 0.0
    %1980 = vmatprep.subr.mxu0 0.0
    %1981 = vmatpush1.msra.mxu0 0.0
    %1982 = vmatprep.subr.mxu0 0.0
    %1983 = vmatpush1.msra.mxu0 0.0
    %1984 = vmatprep.subr.mxu0 0.0
    %1985 = vmatpush1.msra.mxu0 0.0
    %1986 = vmatprep.subr.mxu0 0.0
    %1987 = vmatpush1.msra.mxu0 0.0
    %1988 = vmatprep.subr.mxu0 0.0
    %1989 = vmatpush1.msra.mxu0 0.0
    %1990 = vmatprep.subr.mxu0 0.0
    %1991 = vmatpush1.msra.mxu0 0.0
    %1992 = vmatprep.subr.mxu0 0.0
    %1993 = vmatpush1.msra.mxu0 0.0
    %1994 = vmatprep.subr.mxu0 0.0
    %1995 = vmatpush1.msra.mxu0 0.0
    %1996 = vmatprep.subr.mxu0 0.0
    %1997 = vmatpush1.msra.mxu0 0.0
    %1998 = vmatprep.subr.mxu0 0.0
    %1999 = vmatpush1.msra.mxu0 0.0
    %2000 = vmatprep.subr.mxu0 0.0
    %2001 = vmatpush1.msra.mxu0 0.0
    %2002 = vmatprep.mubr.f32.mxu0 0.0
    %2003 = vmatmul.mubr.f32.gmra.mrb[0].mxu0 %v1936
    %v2004 = vpop.f32.mrb[0].mxu0
    %v2005 = vadd.f32 0.0, %v2004
    %v2006 = vpop.f32.mrb[0].mxu0
    %2007 = vdwg.mxu0
    %v2012 = vlaneseq
    %v2013 = vshrl.u32 %v2012, 7
    %v2014 = vsub.s32 %v1340, %v2013
    %v2015 = vrot.slane %v1331, %v2014
    %v2016 = vlaneseq
    %v2017 = vshrl.u32 %v2016, 7
    %v2018 = vsub.s32 %v1345, %v2017
    %v2019 = vrot.slane %v1332, %v2018
    %v2020 = vsel %vm1350, %v2019, %v2015
    %v2021 = vlaneseq
    %v2022 = vshrl.u32 %v2021, 7
    %v2023 = vsub.s32 %v1352, %v2022
    %v2024 = vrot.slane %v1333, %v2023
    %v2025 = vsel %vm1357, %v2024, %v2020
    %v2026 = vlaneseq
    %v2027 = vshrl.u32 %v2026, 7
    %v2028 = vsub.s32 %v1359, %v2027
    %v2029 = vrot.slane %v1334, %v2028
    %v2030 = vsel %vm1364, %v2029, %v2025
    %v2031 = vsel %vm52, %v2030, 0
    %2033 = vmatprep.subr.mxu0 0.0
    %2034 = vmatpush1.msra.mxu0 %v1200
    %2035 = vmatprep.subr.mxu0 0.0
    %2036 = vmatpush1.msra.mxu0 %v1202
    %2037 = vmatprep.subr.mxu0 0.0
    %2038 = vmatpush1.msra.mxu0 %v1204
    %2039 = vmatprep.subr.mxu0 0.0
    %2040 = vmatpush1.msra.mxu0 %v1206
    %2041 = vmatprep.subr.mxu0 0.0
    %2042 = vmatpush1.msra.mxu0 0.0
    %2043 = vmatprep.subr.mxu0 0.0
    %2044 = vmatpush1.msra.mxu0 0.0
    %2045 = vmatprep.subr.mxu0 0.0
    %2046 = vmatpush1.msra.mxu0 0.0
    %2047 = vmatprep.subr.mxu0 0.0
    %2048 = vmatpush1.msra.mxu0 0.0
    %2049 = vmatprep.subr.mxu0 0.0
    %2050 = vmatpush1.msra.mxu0 0.0
    %2051 = vmatprep.subr.mxu0 0.0
    %2052 = vmatpush1.msra.mxu0 0.0
    %2053 = vmatprep.subr.mxu0 0.0
    %2054 = vmatpush1.msra.mxu0 0.0
    %2055 = vmatprep.subr.mxu0 0.0
    %2056 = vmatpush1.msra.mxu0 0.0
    %2057 = vmatprep.subr.mxu0 0.0
    %2058 = vmatpush1.msra.mxu0 0.0
    %2059 = vmatprep.subr.mxu0 0.0
    %2060 = vmatpush1.msra.mxu0 0.0
    %2061 = vmatprep.subr.mxu0 0.0
    %2062 = vmatpush1.msra.mxu0 0.0
    %2063 = vmatprep.subr.mxu0 0.0
    %2064 = vmatpush1.msra.mxu0 0.0
    %2065 = vmatprep.subr.mxu0 0.0
    %2066 = vmatpush1.msra.mxu0 0.0
    %2067 = vmatprep.subr.mxu0 0.0
    %2068 = vmatpush1.msra.mxu0 0.0
    %2069 = vmatprep.subr.mxu0 0.0
    %2070 = vmatpush1.msra.mxu0 0.0
    %2071 = vmatprep.subr.mxu0 0.0
    %2072 = vmatpush1.msra.mxu0 0.0
    %2073 = vmatprep.subr.mxu0 0.0
    %2074 = vmatpush1.msra.mxu0 0.0
    %2075 = vmatprep.subr.mxu0 0.0
    %2076 = vmatpush1.msra.mxu0 0.0
    %2077 = vmatprep.subr.mxu0 0.0
    %2078 = vmatpush1.msra.mxu0 0.0
    %2079 = vmatprep.subr.mxu0 0.0
    %2080 = vmatpush1.msra.mxu0 0.0
    %2081 = vmatprep.subr.mxu0 0.0
    %2082 = vmatpush1.msra.mxu0 0.0
    %2083 = vmatprep.subr.mxu0 0.0
    %2084 = vmatpush1.msra.mxu0 0.0
    %2085 = vmatprep.subr.mxu0 0.0
    %2086 = vmatpush1.msra.mxu0 0.0
    %2087 = vmatprep.subr.mxu0 0.0
    %2088 = vmatpush1.msra.mxu0 0.0
    %2089 = vmatprep.subr.mxu0 0.0
    %2090 = vmatpush1.msra.mxu0 0.0
    %2091 = vmatprep.subr.mxu0 0.0
    %2092 = vmatpush1.msra.mxu0 0.0
    %2093 = vmatprep.subr.mxu0 0.0
    %2094 = vmatpush1.msra.mxu0 0.0
    %2095 = vmatprep.subr.mxu0 0.0
    %2096 = vmatpush1.msra.mxu0 0.0
    %2097 = vmatprep.mubr.f32.mxu0 0.0
    %2098 = vmatmul.mubr.f32.gmra.mrb[0].mxu0 %v2031
    %v2099 = vpop.f32.mrb[0].mxu0
    %v2100 = vadd.f32 0.0, %v2099
    %v2101 = vpop.f32.mrb[0].mxu0
    %2102 = vdwg.mxu0
    %v2103 = vmul.f32 %v1435, 0.03125
    %v2104 = vmul.f32 %v1530, 0.03125
    %v2105 = vmul.f32 %v1625, 0.03125
    %v2106 = vmul.f32 %v1720, 0.03125
    %v2107 = vmul.f32 %v1815, 0.03125
    %v2108 = vmul.f32 %v1910, 0.03125
    %v2109 = vmul.f32 %v2005, 0.03125
    %v2110 = vmul.f32 %v2100, 0.03125
    %v2119 = vrot.slane %v2104, 7
    %vm2120 = vcmask 1041409
    %v2121 = vsel %vm2120, %v2119, %v2103
    %v2122 = vrot.slane %v2105, 6
    %vm2123 = vcmask 1042434
    %v2124 = vsel %vm2123, %v2122, %v2121
    %v2125 = vrot.slane %v2106, 5
    %vm2126 = vcmask 1043459
    %v2127 = vsel %vm2126, %v2125, %v2124
    %v2128 = vrot.slane %v2107, 4
    %vm2129 = vcmask 1044484
    %v2130 = vsel %vm2129, %v2128, %v2127
    %v2131 = vrot.slane %v2108, 3
    %vm2132 = vcmask 1045509
    %v2133 = vsel %vm2132, %v2131, %v2130
    %v2134 = vrot.slane %v2109, 2
    %vm2135 = vcmask 1046534
    %v2136 = vsel %vm2135, %v2134, %v2133
    %v2137 = vrot.slane %v2110, 1
    %vm2138 = vcmask 1047559
    %v2139 = vsel %vm2138, %v2137, %v2136
    %v2141 = vsel %vm1014, %v2139, -inf
    %2142 = vmax.xlane.f32.xlu0 %v2141
    %v2143 = vpop.xlane.xlu0 %2142
    %v2145 = vrot.slane %v2143, 1
    %v2146 = vrot.slane %v2143, 2
    %v2147 = vrot.slane %v2143, 3
    %v2148 = vrot.slane %v2143, 4
    %v2149 = vrot.slane %v2143, 5
    %v2150 = vrot.slane %v2143, 6
    %v2151 = vrot.slane %v2143, 7
    %v2160 = vsub.f32 %v2103, %v2143
    %v2161 = vsub.f32 %v2104, %v2145
    %v2162 = vsub.f32 %v2105, %v2146
    %v2163 = vsub.f32 %v2106, %v2147
    %v2164 = vsub.f32 %v2107, %v2148
    %v2165 = vsub.f32 %v2108, %v2149
    %v2166 = vsub.f32 %v2109, %v2150
    %v2167 = vsub.f32 %v2110, %v2151
    %v2168 = vmul.f32 %v2160, 1.442695
    %v2169 = vpow.pop %v2168
    %v2170 = vmul.f32 %v2161, 1.442695
    %v2171 = vpow.pop %v2170
    %v2172 = vmul.f32 %v2162, 1.442695
    %v2173 = vpow.pop %v2172
    %v2174 = vmul.f32 %v2163, 1.442695
    %v2175 = vpow.pop %v2174
    %v2176 = vmul.f32 %v2164, 1.442695
    %v2177 = vpow.pop %v2176
    %v2178 = vmul.f32 %v2165, 1.442695
    %v2179 = vpow.pop %v2178
    %v2180 = vmul.f32 %v2166, 1.442695
    %v2181 = vpow.pop %v2180
    %v2182 = vmul.f32 %v2167, 1.442695
    %v2183 = vpow.pop %v2182
    %v2192 = vrot.slane %v2171, 7
    %v2193 = vsel %vm2120, %v2192, %v2169
    %v2194 = vrot.slane %v2173, 6
    %v2195 = vsel %vm2123, %v2194, %v2193
    %v2196 = vrot.slane %v2175, 5
    %v2197 = vsel %vm2126, %v2196, %v2195
    %v2198 = vrot.slane %v2177, 4
    %v2199 = vsel %vm2129, %v2198, %v2197
    %v2200 = vrot.slane %v2179, 3
    %v2201 = vsel %vm2132, %v2200, %v2199
    %v2202 = vrot.slane %v2181, 2
    %v2203 = vsel %vm2135, %v2202, %v2201
    %v2204 = vrot.slane %v2183, 1
    %v2205 = vsel %vm2138, %v2204, %v2203
    %v2207 = vsel %vm1014, %v2205, 0.0
    %2208 = vadd.xlane.f32.xlu0 %v2207
    %v2209 = vpop.xlane.xlu0 %2208
    %v2210 = vrcp.pop %v2209
    %v2212 = vrot.slane %v2210, 1
    %v2213 = vrot.slane %v2210, 2
    %v2214 = vrot.slane %v2210, 3
    %v2215 = vrot.slane %v2210, 4
    %v2216 = vrot.slane %v2210, 5
    %v2217 = vrot.slane %v2210, 6
    %v2218 = vrot.slane %v2210, 7
    %v2227 = vmul.f32 %v2169, %v2210
    %v2228 = vmul.f32 %v2171, %v2212
    %v2229 = vmul.f32 %v2173, %v2213
    %v2230 = vmul.f32 %v2175, %v2214
    %v2231 = vmul.f32 %v2177, %v2215
    %v2232 = vmul.f32 %v2179, %v2216
    %v2233 = vmul.f32 %v2181, %v2217
    %v2234 = vmul.f32 %v2183, %v2218
    %v2235 = vlaneseq
    %v2236 = vshrl.u32 %v2235, 7
    %v2237 = vsub.s32 0, %v2236
    %v2238 = vrot.slane %v2227, %v2237
    %2240 = vbcast.lane.b32.xlu0 %v2238, 256
    %v2241 = vpop.permute.xlu0 %2240
    %v2242 = vlaneseq
    %v2243 = vshrl.u32 %v2242, 7
    %v2244 = vsub.s32 0, %v2243
    %v2245 = vrot.slane %v2228, %v2244
    %2247 = vbcast.lane.b32.xlu0 %v2245, 256
    %v2248 = vpop.permute.xlu0 %2247
    %v2249 = vlaneseq
    %v2250 = vshrl.u32 %v2249, 7
    %v2251 = vsub.s32 0, %v2250
    %v2252 = vrot.slane %v2229, %v2251
    %2254 = vbcast.lane.b32.xlu0 %v2252, 256
    %v2255 = vpop.permute.xlu0 %2254
    %v2256 = vlaneseq
    %v2257 = vshrl.u32 %v2256, 7
    %v2258 = vsub.s32 0, %v2257
    %v2259 = vrot.slane %v2230, %v2258
    %2261 = vbcast.lane.b32.xlu0 %v2259, 256
    %v2262 = vpop.permute.xlu0 %2261
    %v2263 = vlaneseq
    %v2264 = vshrl.u32 %v2263, 7
    %v2265 = vsub.s32 0, %v2264
    %v2266 = vrot.slane %v2231, %v2265
    %2268 = vbcast.lane.b32.xlu0 %v2266, 256
    %v2269 = vpop.permute.xlu0 %2268
    %v2270 = vlaneseq
    %v2271 = vshrl.u32 %v2270, 7
    %v2272 = vsub.s32 0, %v2271
    %v2273 = vrot.slane %v2232, %v2272
    %2275 = vbcast.lane.b32.xlu0 %v2273, 256
    %v2276 = vpop.permute.xlu0 %2275
    %v2277 = vlaneseq
    %v2278 = vshrl.u32 %v2277, 7
    %v2279 = vsub.s32 0, %v2278
    %v2280 = vrot.slane %v2233, %v2279
    %2282 = vbcast.lane.b32.xlu0 %v2280, 256
    %v2283 = vpop.permute.xlu0 %2282
    %v2284 = vlaneseq
    %v2285 = vshrl.u32 %v2284, 7
    %v2286 = vsub.s32 0, %v2285
    %v2287 = vrot.slane %v2234, %v2286
    %2289 = vbcast.lane.b32.xlu0 %v2287, 256
    %v2290 = vpop.permute.xlu0 %2289
    %v2291 = vmul.f32 %v2241, %v40
    %v2292 = vmul.f32 %v2248, %v41
    %v2293 = vmul.f32 %v2255, %v42
    %v2294 = vmul.f32 %v2262, %v43
    %v2295 = vmul.f32 %v2269, %v44
    %v2296 = vmul.f32 %v2276, %v45
    %v2297 = vmul.f32 %v2283, %v46
    %v2298 = vmul.f32 %v2290, %v47
    %v2299 = vsel %vm52, %v2291, 0.0
    %v2300 = vrot.slane %v2299, 4
    %v2301 = vadd.f32 %v2299, %v2300
    %v2302 = vrot.slane %v2301, 2
    %v2303 = vadd.f32 %v2301, %v2302
    %v2304 = vrot.slane %v2303, 1
    %v2305 = vadd.f32 %v2303, %v2304
    %v2306 = vsel %vm52, %v2292, 0.0
    %v2307 = vrot.slane %v2306, 4
    %v2308 = vadd.f32 %v2306, %v2307
    %v2309 = vrot.slane %v2308, 2
    %v2310 = vadd.f32 %v2308, %v2309
    %v2311 = vrot.slane %v2310, 1
    %v2312 = vadd.f32 %v2310, %v2311
    %v2313 = vsel %vm52, %v2293, 0.0
    %v2314 = vrot.slane %v2313, 4
    %v2315 = vadd.f32 %v2313, %v2314
    %v2316 = vrot.slane %v2315, 2
    %v2317 = vadd.f32 %v2315, %v2316
    %v2318 = vrot.slane %v2317, 1
    %v2319 = vadd.f32 %v2317, %v2318
    %v2320 = vsel %vm52, %v2294, 0.0
    %v2321 = vrot.slane %v2320, 4
    %v2322 = vadd.f32 %v2320, %v2321
    %v2323 = vrot.slane %v2322, 2
    %v2324 = vadd.f32 %v2322, %v2323
    %v2325 = vrot.slane %v2324, 1
    %v2326 = vadd.f32 %v2324, %v2325
    %v2327 = vsel %vm52, %v2295, 0.0
    %v2328 = vrot.slane %v2327, 4
    %v2329 = vadd.f32 %v2327, %v2328
    %v2330 = vrot.slane %v2329, 2
    %v2331 = vadd.f32 %v2329, %v2330
    %v2332 = vrot.slane %v2331, 1
    %v2333 = vadd.f32 %v2331, %v2332
    %v2334 = vsel %vm52, %v2296, 0.0
    %v2335 = vrot.slane %v2334, 4
    %v2336 = vadd.f32 %v2334, %v2335
    %v2337 = vrot.slane %v2336, 2
    %v2338 = vadd.f32 %v2336, %v2337
    %v2339 = vrot.slane %v2338, 1
    %v2340 = vadd.f32 %v2338, %v2339
    %v2341 = vsel %vm52, %v2297, 0.0
    %v2342 = vrot.slane %v2341, 4
    %v2343 = vadd.f32 %v2341, %v2342
    %v2344 = vrot.slane %v2343, 2
    %v2345 = vadd.f32 %v2343, %v2344
    %v2346 = vrot.slane %v2345, 1
    %v2347 = vadd.f32 %v2345, %v2346
    %v2348 = vsel %vm52, %v2298, 0.0
    %v2349 = vrot.slane %v2348, 4
    %v2350 = vadd.f32 %v2348, %v2349
    %v2351 = vrot.slane %v2350, 2
    %v2352 = vadd.f32 %v2350, %v2351
    %v2353 = vrot.slane %v2352, 1
    %v2354 = vadd.f32 %v2352, %v2353
    %v2363 = vsel %vm2120, %v2312, %v2305
    %v2364 = vsel %vm2123, %v2319, %v2363
    %v2365 = vsel %vm2126, %v2326, %v2364
    %v2366 = vsel %vm2129, %v2333, %v2365
    %v2367 = vsel %vm2132, %v2340, %v2366
    %v2368 = vsel %vm2135, %v2347, %v2367
    %v2369 = vsel %vm2138, %v2354, %v2368
    %2371 = vst.msk [vmem:[#allocation7] sm:$0xff] %vm52, %v2369
    // Predicated region
    $region18: #{tpu_custom_call.1} parent=1 // pred_check
      _
    $region19: #{tpu_custom_call.1} parent=1 // pred_check_branch
      %2373 = sbr.rel (0) target = $region21
    $region20: #{tpu_custom_call.1} parent=1 // pred_region
      %s2375 = ssub.s32 128, 128
      %2376 = vsyncadd [#allocation4], %s2375
      %s2378 = sshll.u32 [#allocation7], 4
      %s2379 = int_to_ptr.vmem [resolvable:$true] %s2378
      %2381 = dma.vmem_to_hbm [thread:$0]  %s2379, 128, %s2, [#allocation4]
    $region21: #{tpu_custom_call.1} parent=1 // pred_fallthru
      _
    // Predicated region
    $region22: #{tpu_custom_call.1} parent=1 // pred_check
      _
    $region23: #{tpu_custom_call.1} parent=1 // pred_check_branch
      %2383 = sbr.rel (0) target = $region25
    $region24: #{tpu_custom_call.1} parent=1 // pred_region
      %2384 = dma.done [#allocation4], 128
    $region25: #{tpu_custom_call.1} parent=1 // pred_fallthru
      _
    %2385 = vsyncpa [#allocation3], 1
    %2386 = vsyncpa [#allocation6], 1
    %2387 = vsyncpa [#allocation4], 1

</llo_original>
